<compile_context>
chip_gen: v5e
topology: v5e:2x2
jax: 0.10.0
libtpu: 0.0.40
codegen_flags: <defaults>
</compile_context>

<pallas_src>
import functools

import jax
import jax.numpy as jnp
from jax import lax
from jax.experimental import pallas as pl
from jax.experimental.pallas import tpu as pltpu


def _patch_expand_kernel(x_ref, w_ref, g_ref, gt_ref, gamma_ref, beta_ref, o_ref,
                         *, eps, th, wres):
    # x_ref     : (TH*W, dim)      input rows (b, h, w) of the current tile
    # w_ref     : (2, dim, dim)    expand weight^T split into p1 halves, bf16
    # g_ref     : (dim, 2)         chunk indicator per half: g[c, p2] = 1 if c // Cq == p2
    # gt_ref    : (2, dim)         its transpose
    # gamma_ref : (1, dim)         LayerNorm gamma, tiled x2 over (p2, c) channels (f32)
    # beta_ref  : (1, dim)         LayerNorm beta,  tiled x2 over (p2, c) channels (f32)
    # o_ref     : (TH, 2, W, dim)  output block, memory order (h, p1, w, (p2, c))
    x = x_ref[...].astype(jnp.bfloat16)                                   # (TM, dim)
    g = g_ref[...]                                                        # (dim, 2)
    gt = gt_ref[...]                                                      # (2, dim)
    gamma = gamma_ref[...]                                                # (1, dim)
    beta = beta_ref[...]                                                  # (1, dim)
    d = x.shape[-1]
    inv_cq = 2.0 / d                                                      # 1 / Cq, Cq = dim // 2

    for p1 in range(2):                                                   # static unroll
        w = w_ref[p1]                                                     # (dim, dim) bf16
        y = jnp.dot(x, w, preferred_element_type=jnp.float32)             # (TM, dim) f32

        # Per-chunk mean / mean-of-squares via tiny MXU segment-sums (no lane slicing).
        s1 = jnp.dot(y, g, preferred_element_type=jnp.float32) * inv_cq   # (TM, 2)
        s2 = jnp.dot(y * y, g, preferred_element_type=jnp.float32) * inv_cq
        var = s2 - s1 * s1
        inv = lax.rsqrt(var + eps)                                        # (TM, 2)

        # Broadcast per-chunk statistics back over their channel groups.
        mean_full = jnp.dot(s1, gt, preferred_element_type=jnp.float32)   # (TM, dim)
        inv_full = jnp.dot(inv, gt, preferred_element_type=jnp.float32)   # (TM, dim)

        z = (y - mean_full) * (inv_full * gamma) + beta                   # (TM, dim)
        # (TH*W, dim) -> (TH, W, dim): pure row-regrouping (free when W % 8 == 0).
        o_ref[:, p1, :, :] = z.reshape(th, wres, d).astype(o_ref.dtype)


def patch_expand(x, expand_weight, gamma, beta, input_resolution, *, eps=1e-5,
                 target_rows=512):
    """Pallas implementation of PatchExpand.forward (dim_scale=2).

    x             : (B, H*W, dim)
    expand_weight : (2*dim, dim)   nn.Linear(dim, 2*dim, bias=False).weight
    gamma, beta   : (dim//2,)      LayerNorm affine parameters
    returns       : (B, 4*H*W, dim//2)
    """
    H, W = input_resolution
    B, L, dim = x.shape
    assert L == H * W, "input feature has wrong size"
    assert dim % 2 == 0, "dim must be even (output channels = dim // 2)"
    C2 = 2 * dim
    Cq = dim // 2
    assert expand_weight.shape == (C2, dim)
    assert gamma.shape == (Cq,) and beta.shape == (Cq,)

    # Host-side (jit-constant) preparation.
    # Columns of W^T are ordered (p1, p2, c); split into the two p1 halves.
    w_t = expand_weight.T.astype(jnp.bfloat16)                            # (dim, 2*dim)
    w_stack = jnp.stack([w_t[:, :dim], w_t[:, dim:]], axis=0)             # (2, dim, dim)

    # Per-half chunk indicator over the (p2, c) channel axis: 2 chunks of Cq.
    chunk_of_c = jnp.arange(dim) // Cq                                    # (dim,)
    g = (chunk_of_c[:, None] == jnp.arange(2)[None, :]).astype(jnp.float32)   # (dim, 2)
    gt = g.T                                                              # (2, dim)
    gamma_t = jnp.tile(gamma.astype(jnp.float32), 2)[None, :]             # (1, dim)
    beta_t = jnp.tile(beta.astype(jnp.float32), 2)[None, :]               # (1, dim)

    # Tile whole image rows: each grid step handles TH rows of W pixels (TM = TH*W rows).
    rows = B * H
    divs = [d for d in range(1, rows + 1) if rows % d == 0]
    cands = [d for d in divs if (d * W) % 8 == 0]
    if cands:
        under = [d for d in cands if d * W <= target_rows]
        th = max(under) if under else min(cands)
    else:
        # TODO(synk): when (TH*W) % 8 can never be satisfied, fall back to one full block.
        th = rows
    tm = th * W
    grid = (rows // th,)

    x_flat = x.reshape(rows * W, dim)

    kernel = functools.partial(_patch_expand_kernel, eps=eps, th=th, wres=W)
    y = pl.pallas_call(
        kernel,
        out_shape=jax.ShapeDtypeStruct((rows, 2, W, dim), x.dtype),
        grid_spec=pl.GridSpec(
            grid=grid,
            in_specs=[
                pl.BlockSpec((tm, dim), lambda i: (i, 0)),        # x rows (tiled)
                pl.BlockSpec((2, dim, dim), lambda i: (0, 0, 0)),  # expand weight halves
                pl.BlockSpec((dim, 2), lambda i: (0, 0)),          # chunk indicator
                pl.BlockSpec((2, dim), lambda i: (0, 0)),          # chunk indicator^T
                pl.BlockSpec((1, dim), lambda i: (0, 0)),          # gamma (tiled x2)
                pl.BlockSpec((1, dim), lambda i: (0, 0)),          # beta  (tiled x2)
            ],
            out_specs=pl.BlockSpec((th, 2, W, dim), lambda i: (i, 0, 0, 0)),
        ),
        compiler_params=pltpu.CompilerParams(
            dimension_semantics=("parallel",),
        ),
    )(x_flat, w_stack, g, gt, gamma_t, beta_t)

    # (B*H, 2, W, dim) has flat order (b, h, p1, w, p2, c) == torch's rearrange + view,
    # so this reshape is pure metadata (no transpose, no extra HBM traffic).
    return y.reshape(B, 4 * H * W, Cq)


def _reference(x, expand_weight, gamma, beta, input_resolution, *, eps=1e-5):
    """Pure-JAX mirror of PatchExpand.forward (expand -> rearrange -> LayerNorm).

    Uses the same bf16-operand / f32-accumulation choice as the kernel for the expand
    matmul so tolerances stay tight; everything else is plain f32.
    """
    H, W = input_resolution
    B, L, dim = x.shape
    Cq = dim // 2
    y = jnp.dot(
        x.astype(jnp.bfloat16),
        expand_weight.T.astype(jnp.bfloat16),
        preferred_element_type=jnp.float32,
    )                                                                     # (B, L, 2*dim)
    y = y.reshape(B, H, W, 2, 2, Cq).transpose(0, 1, 3, 2, 4, 5)
    y = y.reshape(B, 4 * H * W, Cq)
    mu = y.mean(-1, keepdims=True)
    var = ((y - mu) ** 2).mean(-1, keepdims=True)
    out = (y - mu) * lax.rsqrt(var + eps) * gamma + beta
    return out.astype(x.dtype)


if __name__ == "__main__":
    key = jax.random.PRNGKey(0)
    kx, kw, kg, kb = jax.random.split(key, 4)

    B, H, W, dim = 2, 16, 16, 64
    x = jax.random.normal(kx, (B, H * W, dim), dtype=jnp.float32)
    expand_weight = jax.random.normal(kw, (2 * dim, dim), dtype=jnp.float32) / jnp.sqrt(dim)
    gamma = 1.0 + 0.1 * jax.random.normal(kg, (dim // 2,), dtype=jnp.float32)
    beta = 0.1 * jax.random.normal(kb, (dim // 2,), dtype=jnp.float32)

    out = patch_expand(x, expand_weight, gamma, beta, (H, W))
    out = jax.block_until_ready(out)

    ref = _reference(x, expand_weight, gamma, beta, (H, W))
    assert out.shape == (B, 4 * H * W, dim // 2), out.shape
    max_err = float(jnp.max(jnp.abs(out - ref)))
    assert jnp.allclose(out, ref, atol=2e-3, rtol=2e-3), max_err

    print("KERNEL_OK")
</pallas_src>

<mosaic_0001>
module attributes {stable_mosaic.version = 11 : i64} {
  func.func @_patch_expand_kernel(%arg0: i32, %arg1: memref<512x64xf32, #tpu.memory_space<vmem>>, %arg2: memref<2x64x64xbf16, #tpu.memory_space<vmem>>, %arg3: memref<64x2xf32, #tpu.memory_space<vmem>>, %arg4: memref<2x64xf32, #tpu.memory_space<vmem>>, %arg5: memref<1x64xf32, #tpu.memory_space<vmem>>, %arg6: memref<1x64xf32, #tpu.memory_space<vmem>>, %arg7: memref<32x2x16x64xf32, #tpu.memory_space<vmem>>) attributes {dimension_semantics = [#tpu.dimension_semantics<parallel>], iteration_bounds = array<i64: 1>, scalar_prefetch = 0 : i64, scratch_operands = 0 : i64, tpu.core_type = #tpu.core_type<tc>, window_params = [{transform_indices = @transform_0, window_bounds = array<i64: 512, 64>}, {pipeline_mode = #tpu.pipeline_mode<synchronous>, transform_indices = @transform_1, window_bounds = array<i64: 2, 64, 64>}, {pipeline_mode = #tpu.pipeline_mode<synchronous>, transform_indices = @transform_2, window_bounds = array<i64: 64, 2>}, {pipeline_mode = #tpu.pipeline_mode<synchronous>, transform_indices = @transform_3, window_bounds = array<i64: 2, 64>}, {pipeline_mode = #tpu.pipeline_mode<synchronous>, transform_indices = @transform_4, window_bounds = array<i64: 1, 64>}, {pipeline_mode = #tpu.pipeline_mode<synchronous>, transform_indices = @transform_5, window_bounds = array<i64: 1, 64>}, {transform_indices = @transform_6, window_bounds = array<i64: 32, 2, 16, 64>}]} {
    %c0 = arith.constant 0 : index
    %c0_0 = arith.constant 0 : index
    %0 = vector.load %arg1[%c0, %c0_0] : memref<512x64xf32, #tpu.memory_space<vmem>>, vector<512x64xf32>
    %1 = arith.truncf %0 : vector<512x64xf32> to vector<512x64xbf16>
    %c0_1 = arith.constant 0 : index
    %c0_2 = arith.constant 0 : index
    %2 = vector.load %arg3[%c0_1, %c0_2] : memref<64x2xf32, #tpu.memory_space<vmem>>, vector<64x2xf32>
    %c0_3 = arith.constant 0 : index
    %c0_4 = arith.constant 0 : index
    %3 = vector.load %arg4[%c0_3, %c0_4] : memref<2x64xf32, #tpu.memory_space<vmem>>, vector<2x64xf32>
    %c0_5 = arith.constant 0 : index
    %c0_6 = arith.constant 0 : index
    %4 = vector.load %arg5[%c0_5, %c0_6] : memref<1x64xf32, #tpu.memory_space<vmem>>, vector<1x64xf32>
    %c0_7 = arith.constant 0 : index
    %c0_8 = arith.constant 0 : index
    %5 = vector.load %arg6[%c0_7, %c0_8] : memref<1x64xf32, #tpu.memory_space<vmem>>, vector<1x64xf32>
    %c0_9 = arith.constant 0 : index
    %c0_10 = arith.constant 0 : index
    %c0_11 = arith.constant 0 : index
    %6 = vector.load %arg2[%c0_9, %c0_10, %c0_11] : memref<2x64x64xbf16, #tpu.memory_space<vmem>>, vector<1x64x64xbf16>
    %7 = vector.shape_cast %6 : vector<1x64x64xbf16> to vector<64x64xbf16>
    %cst = arith.constant dense<0.000000e+00> : vector<512x64xf32>
    %8 = tpu.matmul %1, %7, %cst {dimension_numbers = #tpu.dot_dimension_numbers<[1], [0], [0], [1], [0, 0, 1, 1], [], []>} : vector<512x64xbf16>, vector<64x64xbf16>, vector<512x64xf32> -> vector<512x64xf32>
    %cst_12 = arith.constant dense<0.000000e+00> : vector<512x2xf32>
    %9 = tpu.matmul %8, %2, %cst_12 {dimension_numbers = #tpu.dot_dimension_numbers<[1], [0], [0], [1], [0, 0, 1, 1], [], []>} : vector<512x64xf32>, vector<64x2xf32>, vector<512x2xf32> -> vector<512x2xf32>
    %cst_13 = arith.constant 3.125000e-02 : f32
    %10 = vector.broadcast %cst_13 : f32 to vector<512x2xf32>
    %11 = arith.mulf %9, %10 : vector<512x2xf32>
    %12 = arith.mulf %8, %8 : vector<512x64xf32>
    %cst_14 = arith.constant dense<0.000000e+00> : vector<512x2xf32>
    %13 = tpu.matmul %12, %2, %cst_14 {dimension_numbers = #tpu.dot_dimension_numbers<[1], [0], [0], [1], [0, 0, 1, 1], [], []>} : vector<512x64xf32>, vector<64x2xf32>, vector<512x2xf32> -> vector<512x2xf32>
    %cst_15 = arith.constant 3.125000e-02 : f32
    %14 = vector.broadcast %cst_15 : f32 to vector<512x2xf32>
    %15 = arith.mulf %13, %14 : vector<512x2xf32>
    %16 = arith.mulf %11, %11 : vector<512x2xf32>
    %17 = arith.subf %15, %16 : vector<512x2xf32>
    %cst_16 = arith.constant 9.99999974E-6 : f32
    %18 = vector.broadcast %cst_16 : f32 to vector<512x2xf32>
    %19 = arith.addf %17, %18 : vector<512x2xf32>
    %20 = math.rsqrt %19 : vector<512x2xf32>
    %cst_17 = arith.constant dense<0.000000e+00> : vector<512x64xf32>
    %21 = tpu.matmul %11, %3, %cst_17 {dimension_numbers = #tpu.dot_dimension_numbers<[1], [0], [0], [1], [0, 0, 1, 1], [], []>} : vector<512x2xf32>, vector<2x64xf32>, vector<512x64xf32> -> vector<512x64xf32>
    %cst_18 = arith.constant dense<0.000000e+00> : vector<512x64xf32>
    %22 = tpu.matmul %20, %3, %cst_18 {dimension_numbers = #tpu.dot_dimension_numbers<[1], [0], [0], [1], [0, 0, 1, 1], [], []>} : vector<512x2xf32>, vector<2x64xf32>, vector<512x64xf32> -> vector<512x64xf32>
    %23 = arith.subf %8, %21 : vector<512x64xf32>
    %24 = vector.broadcast %4 : vector<1x64xf32> to vector<512x64xf32>
    %25 = arith.mulf %22, %24 : vector<512x64xf32>
    %26 = arith.mulf %23, %25 : vector<512x64xf32>
    %27 = vector.broadcast %5 : vector<1x64xf32> to vector<512x64xf32>
    %28 = arith.addf %26, %27 : vector<512x64xf32>
    %29 = vector.shape_cast %28 : vector<512x64xf32> to vector<32x16x64xf32>
    %c0_19 = arith.constant 0 : index
    %c0_20 = arith.constant 0 : index
    %c0_21 = arith.constant 0 : index
    %c0_22 = arith.constant 0 : index
    %30 = vector.load %arg7[%c0_19, %c0_20, %c0_21, %c0_22] : memref<32x2x16x64xf32, #tpu.memory_space<vmem>>, vector<32x1x16x64xf32>
    %31 = vector.shape_cast %30 : vector<32x1x16x64xf32> to vector<32x16x64xf32>
    %32 = vector.shape_cast %29 : vector<32x16x64xf32> to vector<32x1x16x64xf32>
    tpu.vector_store %arg7[%c0_19, %c0_20, %c0_21, %c0_22], %32 {strides = array<i32>} : memref<32x2x16x64xf32, #tpu.memory_space<vmem>>, vector<32x1x16x64xf32>,
    %c1 = arith.constant 1 : index
    %c0_23 = arith.constant 0 : index
    %c0_24 = arith.constant 0 : index
    %33 = vector.load %arg2[%c1, %c0_23, %c0_24] : memref<2x64x64xbf16, #tpu.memory_space<vmem>>, vector<1x64x64xbf16>
    %34 = vector.shape_cast %33 : vector<1x64x64xbf16> to vector<64x64xbf16>
    %cst_25 = arith.constant dense<0.000000e+00> : vector<512x64xf32>
    %35 = tpu.matmul %1, %34, %cst_25 {dimension_numbers = #tpu.dot_dimension_numbers<[1], [0], [0], [1], [0, 0, 1, 1], [], []>} : vector<512x64xbf16>, vector<64x64xbf16>, vector<512x64xf32> -> vector<512x64xf32>
    %cst_26 = arith.constant dense<0.000000e+00> : vector<512x2xf32>
    %36 = tpu.matmul %35, %2, %cst_26 {dimension_numbers = #tpu.dot_dimension_numbers<[1], [0], [0], [1], [0, 0, 1, 1], [], []>} : vector<512x64xf32>, vector<64x2xf32>, vector<512x2xf32> -> vector<512x2xf32>
    %cst_27 = arith.constant 3.125000e-02 : f32
    %37 = vector.broadcast %cst_27 : f32 to vector<512x2xf32>
    %38 = arith.mulf %36, %37 : vector<512x2xf32>
    %39 = arith.mulf %35, %35 : vector<512x64xf32>
    %cst_28 = arith.constant dense<0.000000e+00> : vector<512x2xf32>
    %40 = tpu.matmul %39, %2, %cst_28 {dimension_numbers = #tpu.dot_dimension_numbers<[1], [0], [0], [1], [0, 0, 1, 1], [], []>} : vector<512x64xf32>, vector<64x2xf32>, vector<512x2xf32> -> vector<512x2xf32>
    %cst_29 = arith.constant 3.125000e-02 : f32
    %41 = vector.broadcast %cst_29 : f32 to vector<512x2xf32>
    %42 = arith.mulf %40, %41 : vector<512x2xf32>
    %43 = arith.mulf %38, %38 : vector<512x2xf32>
    %44 = arith.subf %42, %43 : vector<512x2xf32>
    %cst_30 = arith.constant 9.99999974E-6 : f32
    %45 = vector.broadcast %cst_30 : f32 to vector<512x2xf32>
    %46 = arith.addf %44, %45 : vector<512x2xf32>
    %47 = math.rsqrt %46 : vector<512x2xf32>
    %cst_31 = arith.constant dense<0.000000e+00> : vector<512x64xf32>
    %48 = tpu.matmul %38, %3, %cst_31 {dimension_numbers = #tpu.dot_dimension_numbers<[1], [0], [0], [1], [0, 0, 1, 1], [], []>} : vector<512x2xf32>, vector<2x64xf32>, vector<512x64xf32> -> vector<512x64xf32>
    %cst_32 = arith.constant dense<0.000000e+00> : vector<512x64xf32>
    %49 = tpu.matmul %47, %3, %cst_32 {dimension_numbers = #tpu.dot_dimension_numbers<[1], [0], [0], [1], [0, 0, 1, 1], [], []>} : vector<512x2xf32>, vector<2x64xf32>, vector<512x64xf32> -> vector<512x64xf32>
    %50 = arith.subf %35, %48 : vector<512x64xf32>
    %51 = vector.broadcast %4 : vector<1x64xf32> to vector<512x64xf32>
    %52 = arith.mulf %49, %51 : vector<512x64xf32>
    %53 = arith.mulf %50, %52 : vector<512x64xf32>
    %54 = vector.broadcast %5 : vector<1x64xf32> to vector<512x64xf32>
    %55 = arith.addf %53, %54 : vector<512x64xf32>
    %56 = vector.shape_cast %55 : vector<512x64xf32> to vector<32x16x64xf32>
    %c0_33 = arith.constant 0 : index
    %c1_34 = arith.constant 1 : index
    %c0_35 = arith.constant 0 : index
    %c0_36 = arith.constant 0 : index
    %57 = vector.load %arg7[%c0_33, %c1_34, %c0_35, %c0_36] : memref<32x2x16x64xf32, #tpu.memory_space<vmem>>, vector<32x1x16x64xf32>
    %58 = vector.shape_cast %57 : vector<32x1x16x64xf32> to vector<32x16x64xf32>
    %59 = vector.shape_cast %56 : vector<32x16x64xf32> to vector<32x1x16x64xf32>
    tpu.vector_store %arg7[%c0_33, %c1_34, %c0_35, %c0_36], %59 {strides = array<i32>} : memref<32x2x16x64xf32, #tpu.memory_space<vmem>>, vector<32x1x16x64xf32>,
    return
  }
  func.func @transform_0(%arg0: i32) -> (i32, i32) {
    %c0_i32 = arith.constant 0 : i32
    %c0_i32_0 = arith.constant 0 : i32
    return %arg0, %c0_i32 : i32, i32
  }
  func.func @transform_1(%arg0: i32) -> (i32, i32, i32) {
    %c0_i32 = arith.constant 0 : i32
    %c0_i32_0 = arith.constant 0 : i32
    %c0_i32_1 = arith.constant 0 : i32
    %c0_i32_2 = arith.constant 0 : i32
    return %c0_i32, %c0_i32_0, %c0_i32_1 : i32, i32, i32
  }
  func.func @transform_2(%arg0: i32) -> (i32, i32) {
    %c0_i32 = arith.constant 0 : i32
    %c0_i32_0 = arith.constant 0 : i32
    %c0_i32_1 = arith.constant 0 : i32
    return %c0_i32, %c0_i32_0 : i32, i32
  }
  func.func @transform_3(%arg0: i32) -> (i32, i32) {
    %c0_i32 = arith.constant 0 : i32
    %c0_i32_0 = arith.constant 0 : i32
    %c0_i32_1 = arith.constant 0 : i32
    return %c0_i32, %c0_i32_0 : i32, i32
  }
  func.func @transform_4(%arg0: i32) -> (i32, i32) {
    %c0_i32 = arith.constant 0 : i32
    %c0_i32_0 = arith.constant 0 : i32
    %c0_i32_1 = arith.constant 0 : i32
    return %c0_i32, %c0_i32_0 : i32, i32
  }
  func.func @transform_5(%arg0: i32) -> (i32, i32) {
    %c0_i32 = arith.constant 0 : i32
    %c0_i32_0 = arith.constant 0 : i32
    %c0_i32_1 = arith.constant 0 : i32
    return %c0_i32, %c0_i32_0 : i32, i32
  }
  func.func @transform_6(%arg0: i32) -> (i32, i32, i32, i32) {
    %c0_i32 = arith.constant 0 : i32
    %c0_i32_0 = arith.constant 0 : i32
    %c0_i32_1 = arith.constant 0 : i32
    %c0_i32_2 = arith.constant 0 : i32
    return %arg0, %c0_i32, %c0_i32_0, %c0_i32_1 : i32, i32, i32, i32
  }
}

</mosaic_0001>

<llo_original>
// kernel: tpu_custom_call.1
$region0: #{tpu_custom_call.1}
  #allocation0 [shape = 'u32[]', space=smem, size = 0x4, offset = 0x4, fixed_abs, tag = 'smem constant byte address 0x4 - core index']
  #allocation1 [shape = 'u32[72,128]{1,0:T(1,128)}', space=vmem, size = 0x9000, scoped, tag = 'internal scratch']
  %s0 = inlined_call_operand.vmem [shape: f32[512,64], index: 0, kind: input, shape index: {}]
  %s1 = inlined_call_operand.vmem [shape: bf16[2,64,64], index: 1, kind: input, shape index: {}]
  %s2 = inlined_call_operand.vmem [shape: f32[64,2], index: 2, kind: input, shape index: {}]
  %s3 = inlined_call_operand.vmem [shape: f32[2,64], index: 3, kind: input, shape index: {}]
  %s4 = inlined_call_operand.vmem [shape: f32[1,64], index: 4, kind: input, shape index: {}]
  %s5 = inlined_call_operand.vmem [shape: f32[1,64], index: 5, kind: input, shape index: {}]
  %s6 = inlined_call_operand.hbm [shape: f32[32,2,16,64], index: 6, kind: output, shape index: {}]
  %s7 = sld [smem:[#allocation0]]
  $region34: #{tpu_custom_call.1} parent=0
    _
  %s9 = ssub.s32 1, %s7
  %s10 = scalar_select 0, %s9, %s7
  $region1: #{tpu_custom_call.1} parent=0
    #allocation2 [shape = 'u8[524288]{0}', space=vmem, size = 0x80000, scoped, tag = 'output window, operand 0, single buffered']
    #allocation3 [shape = 's32[1]{0}', space=sflag, size = 0x4, scoped, tag = 'scoped memory for tpu_custom_call.1']
    %11 = vsyncpa [#allocation3], 0
    // Predicated region
    $region2: #{tpu_custom_call.1} parent=1 // pred_check
      _
    $region3: #{tpu_custom_call.1} parent=1 // pred_check_branch
      %13 = sbr.rel (0) target = $region5
    $region4: #{tpu_custom_call.1} parent=1 // pred_region
      _
    $region5: #{tpu_custom_call.1} parent=1 // pred_fallthru
      _
    // Predicated region
    $region6: #{tpu_custom_call.1} parent=1 // pred_check
      _
    $region7: #{tpu_custom_call.1} parent=1 // pred_check_branch
      %15 = sbr.rel (0) target = $region9
    $region8: #{tpu_custom_call.1} parent=1 // pred_region
      _
    $region9: #{tpu_custom_call.1} parent=1 // pred_fallthru
      _
    // Predicated region
    $region10: #{tpu_custom_call.1} parent=1 // pred_check
      _
    $region11: #{tpu_custom_call.1} parent=1 // pred_check_branch
      %17 = sbr.rel (0) target = $region13
    $region12: #{tpu_custom_call.1} parent=1 // pred_region
      _
    $region13: #{tpu_custom_call.1} parent=1 // pred_fallthru
      _
    // Predicated region
    $region14: #{tpu_custom_call.1} parent=1 // pred_check
      _
    $region15: #{tpu_custom_call.1} parent=1 // pred_check_branch
      %19 = sbr.rel (0) target = $region17
    $region16: #{tpu_custom_call.1} parent=1 // pred_region
      _
    $region17: #{tpu_custom_call.1} parent=1 // pred_fallthru
      _
    // Predicated region
    $region18: #{tpu_custom_call.1} parent=1 // pred_check
      _
    $region19: #{tpu_custom_call.1} parent=1 // pred_check_branch
      %21 = sbr.rel (0) target = $region21
    $region20: #{tpu_custom_call.1} parent=1 // pred_region
      _
    $region21: #{tpu_custom_call.1} parent=1 // pred_fallthru
      _
    // Predicated region
    $region22: #{tpu_custom_call.1} parent=1 // pred_check
      _
    $region23: #{tpu_custom_call.1} parent=1 // pred_check_branch
      %23 = sbr.rel (0) target = $region25
    $region24: #{tpu_custom_call.1} parent=1 // pred_region
      _
    $region25: #{tpu_custom_call.1} parent=1 // pred_fallthru
      _
    %v25 = vld [vmem:[%s0] sm:$0xff]
    %v26 = vld [vmem:[%s0 + $0x8] sm:$0xff]
    %v27 = vld [vmem:[%s0 + $0x10] sm:$0xff]
    %v28 = vld [vmem:[%s0 + $0x18] sm:$0xff]
    %v29 = vld [vmem:[%s0 + $0x20] sm:$0xff]
    %v30 = vld [vmem:[%s0 + $0x28] sm:$0xff]
    %v31 = vld [vmem:[%s0 + $0x30] sm:$0xff]
    %v32 = vld [vmem:[%s0 + $0x38] sm:$0xff]
    %v33 = vld [vmem:[%s0 + $0x40] sm:$0xff]
    %v34 = vld [vmem:[%s0 + $0x48] sm:$0xff]
    %v35 = vld [vmem:[%s0 + $0x50] sm:$0xff]
    %v36 = vld [vmem:[%s0 + $0x58] sm:$0xff]
    %v37 = vld [vmem:[%s0 + $0x60] sm:$0xff]
    %v38 = vld [vmem:[%s0 + $0x68] sm:$0xff]
    %v39 = vld [vmem:[%s0 + $0x70] sm:$0xff]
    %v40 = vld [vmem:[%s0 + $0x78] sm:$0xff]
    %v41 = vld [vmem:[%s0 + $0x80] sm:$0xff]
    %v42 = vld [vmem:[%s0 + $0x88] sm:$0xff]
    %v43 = vld [vmem:[%s0 + $0x90] sm:$0xff]
    %v44 = vld [vmem:[%s0 + $0x98] sm:$0xff]
    %v45 = vld [vmem:[%s0 + $0xa0] sm:$0xff]
    %v46 = vld [vmem:[%s0 + $0xa8] sm:$0xff]
    %v47 = vld [vmem:[%s0 + $0xb0] sm:$0xff]
    %v48 = vld [vmem:[%s0 + $0xb8] sm:$0xff]
    %v49 = vld [vmem:[%s0 + $0xc0] sm:$0xff]
    %v50 = vld [vmem:[%s0 + $0xc8] sm:$0xff]
    %v51 = vld [vmem:[%s0 + $0xd0] sm:$0xff]
    %v52 = vld [vmem:[%s0 + $0xd8] sm:$0xff]
    %v53 = vld [vmem:[%s0 + $0xe0] sm:$0xff]
    %v54 = vld [vmem:[%s0 + $0xe8] sm:$0xff]
    %v55 = vld [vmem:[%s0 + $0xf0] sm:$0xff]
    %v56 = vld [vmem:[%s0 + $0xf8] sm:$0xff]
    %v57 = vld [vmem:[%s0 + $0x100] sm:$0xff]
    %v58 = vld [vmem:[%s0 + $0x108] sm:$0xff]
    %v59 = vld [vmem:[%s0 + $0x110] sm:$0xff]
    %v60 = vld [vmem:[%s0 + $0x118] sm:$0xff]
    %v61 = vld [vmem:[%s0 + $0x120] sm:$0xff]
    %v62 = vld [vmem:[%s0 + $0x128] sm:$0xff]
    %v63 = vld [vmem:[%s0 + $0x130] sm:$0xff]
    %v64 = vld [vmem:[%s0 + $0x138] sm:$0xff]
    %v65 = vld [vmem:[%s0 + $0x140] sm:$0xff]
    %v66 = vld [vmem:[%s0 + $0x148] sm:$0xff]
    %v67 = vld [vmem:[%s0 + $0x150] sm:$0xff]
    %v68 = vld [vmem:[%s0 + $0x158] sm:$0xff]
    %v69 = vld [vmem:[%s0 + $0x160] sm:$0xff]
    %v70 = vld [vmem:[%s0 + $0x168] sm:$0xff]
    %v71 = vld [vmem:[%s0 + $0x170] sm:$0xff]
    %v72 = vld [vmem:[%s0 + $0x178] sm:$0xff]
    %v73 = vld [vmem:[%s0 + $0x180] sm:$0xff]
    %v74 = vld [vmem:[%s0 + $0x188] sm:$0xff]
    %v75 = vld [vmem:[%s0 + $0x190] sm:$0xff]
    %v76 = vld [vmem:[%s0 + $0x198] sm:$0xff]
    %v77 = vld [vmem:[%s0 + $0x1a0] sm:$0xff]
    %v78 = vld [vmem:[%s0 + $0x1a8] sm:$0xff]
    %v79 = vld [vmem:[%s0 + $0x1b0] sm:$0xff]
    %v80 = vld [vmem:[%s0 + $0x1b8] sm:$0xff]
    %v81 = vld [vmem:[%s0 + $0x1c0] sm:$0xff]
    %v82 = vld [vmem:[%s0 + $0x1c8] sm:$0xff]
    %v83 = vld [vmem:[%s0 + $0x1d0] sm:$0xff]
    %v84 = vld [vmem:[%s0 + $0x1d8] sm:$0xff]
    %v85 = vld [vmem:[%s0 + $0x1e0] sm:$0xff]
    %v86 = vld [vmem:[%s0 + $0x1e8] sm:$0xff]
    %v87 = vld [vmem:[%s0 + $0x1f0] sm:$0xff]
    %v88 = vld [vmem:[%s0 + $0x1f8] sm:$0xff]
    %v89 = vpack.c.bf16 %v26, %v25
    %v90 = vpack.c.bf16 %v28, %v27
    %v91 = vpack.c.bf16 %v30, %v29
    %v92 = vpack.c.bf16 %v32, %v31
    %v93 = vpack.c.bf16 %v34, %v33
    %v94 = vpack.c.bf16 %v36, %v35
    %v95 = vpack.c.bf16 %v38, %v37
    %v96 = vpack.c.bf16 %v40, %v39
    %v97 = vpack.c.bf16 %v42, %v41
    %v98 = vpack.c.bf16 %v44, %v43
    %v99 = vpack.c.bf16 %v46, %v45
    %v100 = vpack.c.bf16 %v48, %v47
    %v101 = vpack.c.bf16 %v50, %v49
    %v102 = vpack.c.bf16 %v52, %v51
    %v103 = vpack.c.bf16 %v54, %v53
    %v104 = vpack.c.bf16 %v56, %v55
    %v105 = vpack.c.bf16 %v58, %v57
    %v106 = vpack.c.bf16 %v60, %v59
    %v107 = vpack.c.bf16 %v62, %v61
    %v108 = vpack.c.bf16 %v64, %v63
    %v109 = vpack.c.bf16 %v66, %v65
    %v110 = vpack.c.bf16 %v68, %v67
    %v111 = vpack.c.bf16 %v70, %v69
    %v112 = vpack.c.bf16 %v72, %v71
    %v113 = vpack.c.bf16 %v74, %v73
    %v114 = vpack.c.bf16 %v76, %v75
    %v115 = vpack.c.bf16 %v78, %v77
    %v116 = vpack.c.bf16 %v80, %v79
    %v117 = vpack.c.bf16 %v82, %v81
    %v118 = vpack.c.bf16 %v84, %v83
    %v119 = vpack.c.bf16 %v86, %v85
    %v120 = vpack.c.bf16 %v88, %v87
    %v121 = vld [vmem:[%s2] sm:$0xff]
    %v122 = vld [vmem:[%s2 + $0x8] sm:$0xff]
    %v123 = vld [vmem:[%s2 + $0x10] sm:$0xff]
    %v124 = vld [vmem:[%s2 + $0x18] sm:$0xff]
    %v125 = vld [vmem:[%s2 + $0x20] sm:$0xff]
    %v126 = vld [vmem:[%s2 + $0x28] sm:$0xff]
    %v127 = vld [vmem:[%s2 + $0x30] sm:$0xff]
    %v128 = vld [vmem:[%s2 + $0x38] sm:$0xff]
    %v129 = vld [vmem:[%s3] sm:$0x3]
    %v130 = vld [vmem:[%s4] sm:$0x1]
    %v131 = vld [vmem:[%s5] sm:$0x1]
    %v132 = vld [vmem:[%s1] sm:$0xf]
    %v133 = vld [vmem:[%s1 + $0x4] sm:$0xf]
    %v134 = vld [vmem:[%s1 + $0x8] sm:$0xf]
    %v135 = vld [vmem:[%s1 + $0xc] sm:$0xf]
    %v136 = vld [vmem:[%s1 + $0x10] sm:$0xf]
    %v137 = vld [vmem:[%s1 + $0x14] sm:$0xf]
    %v138 = vld [vmem:[%s1 + $0x18] sm:$0xf]
    %v139 = vld [vmem:[%s1 + $0x1c] sm:$0xf]
    %v148 = vunpack.c.l.b16 %v132
    %v149 = vunpack.c.l.b16 %v133
    %v150 = vunpack.c.l.b16 %v134
    %v151 = vunpack.c.l.b16 %v135
    %v152 = vunpack.c.l.b16 %v136
    %v153 = vunpack.c.l.b16 %v137
    %v154 = vunpack.c.l.b16 %v138
    %v155 = vunpack.c.l.b16 %v139
    %v156 = vpack.c.b16 %v149, %v148
    %v157 = vpack.c.b16 %v151, %v150
    %v158 = vpack.c.b16 %v153, %v152
    %v159 = vpack.c.b16 %v155, %v154
    %vm164 = vcmask 523264
    %v166 = vsel %vm164, %v89, 0
    %v169 = vsel %vm164, %v90, 0
    %v172 = vsel %vm164, %v91, 0
    %v175 = vsel %vm164, %v92, 0
    %v178 = vsel %vm164, %v93, 0
    %v181 = vsel %vm164, %v94, 0
    %v184 = vsel %vm164, %v95, 0
    %v187 = vsel %vm164, %v96, 0
    %v190 = vsel %vm164, %v97, 0
    %v193 = vsel %vm164, %v98, 0
    %v196 = vsel %vm164, %v99, 0
    %v199 = vsel %vm164, %v100, 0
    %v202 = vsel %vm164, %v101, 0
    %v205 = vsel %vm164, %v102, 0
    %v208 = vsel %vm164, %v103, 0
    %v211 = vsel %vm164, %v104, 0
    %v214 = vsel %vm164, %v105, 0
    %v217 = vsel %vm164, %v106, 0
    %v220 = vsel %vm164, %v107, 0
    %v223 = vsel %vm164, %v108, 0
    %v226 = vsel %vm164, %v109, 0
    %v229 = vsel %vm164, %v110, 0
    %v232 = vsel %vm164, %v111, 0
    %v235 = vsel %vm164, %v112, 0
    %v238 = vsel %vm164, %v113, 0
    %v241 = vsel %vm164, %v114, 0
    %v244 = vsel %vm164, %v115, 0
    %v247 = vsel %vm164, %v116, 0
    %v250 = vsel %vm164, %v117, 0
    %v253 = vsel %vm164, %v118, 0
    %v256 = vsel %vm164, %v119, 0
    %v259 = vsel %vm164, %v120, 0
    %261 = vmatpush.bf16.msra.mxu0 0
    %262 = vmatpush.bf16.msra.mxu0 0
    %263 = vmatpush.bf16.msra.mxu0 0
    %264 = vmatpush.bf16.msra.mxu0 0
    %265 = vmatpush.bf16.msra.mxu0 %v159
    %266 = vmatpush.bf16.msra.mxu0 %v158
    %267 = vmatpush.bf16.msra.mxu0 %v157
    %268 = vmatpush.bf16.msra.mxu0 %v156
    %269 = vmatmul.bf16.gmra.mxu0 %v166
    %v270 = vpop.f32.mrf.mxu0
    %v271 = vadd.f32 0.0, %v270
    %v272 = vpop.f32.mrf.mxu0
    %v273 = vadd.f32 0.0, %v272
    %274 = vmatmul.bf16.gmra.mxu0 %v169
    %v275 = vpop.f32.mrf.mxu0
    %v276 = vadd.f32 0.0, %v275
    %v277 = vpop.f32.mrf.mxu0
    %v278 = vadd.f32 0.0, %v277
    %279 = vmatmul.bf16.gmra.mxu0 %v172
    %v280 = vpop.f32.mrf.mxu0
    %v281 = vadd.f32 0.0, %v280
    %v282 = vpop.f32.mrf.mxu0
    %v283 = vadd.f32 0.0, %v282
    %284 = vmatmul.bf16.gmra.mxu0 %v175
    %v285 = vpop.f32.mrf.mxu0
    %v286 = vadd.f32 0.0, %v285
    %v287 = vpop.f32.mrf.mxu0
    %v288 = vadd.f32 0.0, %v287
    %289 = vmatmul.bf16.gmra.mxu0 %v178
    %v290 = vpop.f32.mrf.mxu0
    %v291 = vadd.f32 0.0, %v290
    %v292 = vpop.f32.mrf.mxu0
    %v293 = vadd.f32 0.0, %v292
    %294 = vmatmul.bf16.gmra.mxu0 %v181
    %v295 = vpop.f32.mrf.mxu0
    %v296 = vadd.f32 0.0, %v295
    %v297 = vpop.f32.mrf.mxu0
    %v298 = vadd.f32 0.0, %v297
    %299 = vmatmul.bf16.gmra.mxu0 %v184
    %v300 = vpop.f32.mrf.mxu0
    %v301 = vadd.f32 0.0, %v300
    %v302 = vpop.f32.mrf.mxu0
    %v303 = vadd.f32 0.0, %v302
    %304 = vmatmul.bf16.gmra.mxu0 %v187
    %v305 = vpop.f32.mrf.mxu0
    %v306 = vadd.f32 0.0, %v305
    %v307 = vpop.f32.mrf.mxu0
    %v308 = vadd.f32 0.0, %v307
    %309 = vmatmul.bf16.gmra.mxu0 %v190
    %v310 = vpop.f32.mrf.mxu0
    %v311 = vadd.f32 0.0, %v310
    %v312 = vpop.f32.mrf.mxu0
    %v313 = vadd.f32 0.0, %v312
    %314 = vmatmul.bf16.gmra.mxu0 %v193
    %v315 = vpop.f32.mrf.mxu0
    %v316 = vadd.f32 0.0, %v315
    %v317 = vpop.f32.mrf.mxu0
    %v318 = vadd.f32 0.0, %v317
    %319 = vmatmul.bf16.gmra.mxu0 %v196
    %v320 = vpop.f32.mrf.mxu0
    %v321 = vadd.f32 0.0, %v320
    %v322 = vpop.f32.mrf.mxu0
    %v323 = vadd.f32 0.0, %v322
    %324 = vmatmul.bf16.gmra.mxu0 %v199
    %v325 = vpop.f32.mrf.mxu0
    %v326 = vadd.f32 0.0, %v325
    %v327 = vpop.f32.mrf.mxu0
    %v328 = vadd.f32 0.0, %v327
    %329 = vmatmul.bf16.gmra.mxu0 %v202
    %v330 = vpop.f32.mrf.mxu0
    %v331 = vadd.f32 0.0, %v330
    %v332 = vpop.f32.mrf.mxu0
    %v333 = vadd.f32 0.0, %v332
    %334 = vmatmul.bf16.gmra.mxu0 %v205
    %v335 = vpop.f32.mrf.mxu0
    %v336 = vadd.f32 0.0, %v335
    %v337 = vpop.f32.mrf.mxu0
    %v338 = vadd.f32 0.0, %v337
    %339 = vmatmul.bf16.gmra.mxu0 %v208
    %v340 = vpop.f32.mrf.mxu0
    %v341 = vadd.f32 0.0, %v340
    %v342 = vpop.f32.mrf.mxu0
    %v343 = vadd.f32 0.0, %v342
    %344 = vmatmul.bf16.gmra.mxu0 %v211
    %v345 = vpop.f32.mrf.mxu0
    %v346 = vadd.f32 0.0, %v345
    %v347 = vpop.f32.mrf.mxu0
    %v348 = vadd.f32 0.0, %v347
    %349 = vmatmul.bf16.gmra.mxu0 %v214
    %v350 = vpop.f32.mrf.mxu0
    %v351 = vadd.f32 0.0, %v350
    %v352 = vpop.f32.mrf.mxu0
    %v353 = vadd.f32 0.0, %v352
    %354 = vmatmul.bf16.gmra.mxu0 %v217
    %v355 = vpop.f32.mrf.mxu0
    %v356 = vadd.f32 0.0, %v355
    %v357 = vpop.f32.mrf.mxu0
    %v358 = vadd.f32 0.0, %v357
    %359 = vmatmul.bf16.gmra.mxu0 %v220
    %v360 = vpop.f32.mrf.mxu0
    %v361 = vadd.f32 0.0, %v360
    %v362 = vpop.f32.mrf.mxu0
    %v363 = vadd.f32 0.0, %v362
    %364 = vmatmul.bf16.gmra.mxu0 %v223
    %v365 = vpop.f32.mrf.mxu0
    %v366 = vadd.f32 0.0, %v365
    %v367 = vpop.f32.mrf.mxu0
    %v368 = vadd.f32 0.0, %v367
    %369 = vmatmul.bf16.gmra.mxu0 %v226
    %v370 = vpop.f32.mrf.mxu0
    %v371 = vadd.f32 0.0, %v370
    %v372 = vpop.f32.mrf.mxu0
    %v373 = vadd.f32 0.0, %v372
    %374 = vmatmul.bf16.gmra.mxu0 %v229
    %v375 = vpop.f32.mrf.mxu0
    %v376 = vadd.f32 0.0, %v375
    %v377 = vpop.f32.mrf.mxu0
    %v378 = vadd.f32 0.0, %v377
    %379 = vmatmul.bf16.gmra.mxu0 %v232
    %v380 = vpop.f32.mrf.mxu0
    %v381 = vadd.f32 0.0, %v380
    %v382 = vpop.f32.mrf.mxu0
    %v383 = vadd.f32 0.0, %v382
    %384 = vmatmul.bf16.gmra.mxu0 %v235
    %v385 = vpop.f32.mrf.mxu0
    %v386 = vadd.f32 0.0, %v385
    %v387 = vpop.f32.mrf.mxu0
    %v388 = vadd.f32 0.0, %v387
    %389 = vmatmul.bf16.gmra.mxu0 %v238
    %v390 = vpop.f32.mrf.mxu0
    %v391 = vadd.f32 0.0, %v390
    %v392 = vpop.f32.mrf.mxu0
    %v393 = vadd.f32 0.0, %v392
    %394 = vmatmul.bf16.gmra.mxu0 %v241
    %v395 = vpop.f32.mrf.mxu0
    %v396 = vadd.f32 0.0, %v395
    %v397 = vpop.f32.mrf.mxu0
    %v398 = vadd.f32 0.0, %v397
    %399 = vmatmul.bf16.gmra.mxu0 %v244
    %v400 = vpop.f32.mrf.mxu0
    %v401 = vadd.f32 0.0, %v400
    %v402 = vpop.f32.mrf.mxu0
    %v403 = vadd.f32 0.0, %v402
    %404 = vmatmul.bf16.gmra.mxu0 %v247
    %v405 = vpop.f32.mrf.mxu0
    %v406 = vadd.f32 0.0, %v405
    %v407 = vpop.f32.mrf.mxu0
    %v408 = vadd.f32 0.0, %v407
    %409 = vmatmul.bf16.gmra.mxu0 %v250
    %v410 = vpop.f32.mrf.mxu0
    %v411 = vadd.f32 0.0, %v410
    %v412 = vpop.f32.mrf.mxu0
    %v413 = vadd.f32 0.0, %v412
    %414 = vmatmul.bf16.gmra.mxu0 %v253
    %v415 = vpop.f32.mrf.mxu0
    %v416 = vadd.f32 0.0, %v415
    %v417 = vpop.f32.mrf.mxu0
    %v418 = vadd.f32 0.0, %v417
    %419 = vmatmul.bf16.gmra.mxu0 %v256
    %v420 = vpop.f32.mrf.mxu0
    %v421 = vadd.f32 0.0, %v420
    %v422 = vpop.f32.mrf.mxu0
    %v423 = vadd.f32 0.0, %v422
    %424 = vmatmul.bf16.gmra.mxu0 %v259
    %v425 = vpop.f32.mrf.mxu0
    %v426 = vadd.f32 0.0, %v425
    %v427 = vpop.f32.mrf.mxu0
    %v428 = vadd.f32 0.0, %v427
    %429 = vdwg.mxu0
    %v431 = vsel %vm164, %v271, 0
    %v434 = vsel %vm164, %v273, 0
    %v437 = vsel %vm164, %v276, 0
    %v440 = vsel %vm164, %v278, 0
    %v443 = vsel %vm164, %v281, 0
    %v446 = vsel %vm164, %v283, 0
    %v449 = vsel %vm164, %v286, 0
    %v452 = vsel %vm164, %v288, 0
    %v455 = vsel %vm164, %v291, 0
    %v458 = vsel %vm164, %v293, 0
    %v461 = vsel %vm164, %v296, 0
    %v464 = vsel %vm164, %v298, 0
    %v467 = vsel %vm164, %v301, 0
    %v470 = vsel %vm164, %v303, 0
    %v473 = vsel %vm164, %v306, 0
    %v476 = vsel %vm164, %v308, 0
    %v479 = vsel %vm164, %v311, 0
    %v482 = vsel %vm164, %v313, 0
    %v485 = vsel %vm164, %v316, 0
    %v488 = vsel %vm164, %v318, 0
    %v491 = vsel %vm164, %v321, 0
    %v494 = vsel %vm164, %v323, 0
    %v497 = vsel %vm164, %v326, 0
    %v500 = vsel %vm164, %v328, 0
    %v503 = vsel %vm164, %v331, 0
    %v506 = vsel %vm164, %v333, 0
    %v509 = vsel %vm164, %v336, 0
    %v512 = vsel %vm164, %v338, 0
    %v515 = vsel %vm164, %v341, 0
    %v518 = vsel %vm164, %v343, 0
    %v521 = vsel %vm164, %v346, 0
    %v524 = vsel %vm164, %v348, 0
    %v527 = vsel %vm164, %v351, 0
    %v530 = vsel %vm164, %v353, 0
    %v533 = vsel %vm164, %v356, 0
    %v536 = vsel %vm164, %v358, 0
    %v539 = vsel %vm164, %v361, 0
    %v542 = vsel %vm164, %v363, 0
    %v545 = vsel %vm164, %v366, 0
    %v548 = vsel %vm164, %v368, 0
    %v551 = vsel %vm164, %v371, 0
    %v554 = vsel %vm164, %v373, 0
    %v557 = vsel %vm164, %v376, 0
    %v560 = vsel %vm164, %v378, 0
    %v563 = vsel %vm164, %v381, 0
    %v566 = vsel %vm164, %v383, 0
    %v569 = vsel %vm164, %v386, 0
    %v572 = vsel %vm164, %v388, 0
    %v575 = vsel %vm164, %v391, 0
    %v578 = vsel %vm164, %v393, 0
    %v581 = vsel %vm164, %v396, 0
    %v584 = vsel %vm164, %v398, 0
    %v587 = vsel %vm164, %v401, 0
    %v590 = vsel %vm164, %v403, 0
    %v593 = vsel %vm164, %v406, 0
    %v596 = vsel %vm164, %v408, 0
    %v599 = vsel %vm164, %v411, 0
    %v602 = vsel %vm164, %v413, 0
    %v605 = vsel %vm164, %v416, 0
    %v608 = vsel %vm164, %v418, 0
    %v611 = vsel %vm164, %v421, 0
    %v614 = vsel %vm164, %v423, 0
    %v617 = vsel %vm164, %v426, 0
    %v620 = vsel %vm164, %v428, 0
    %622 = vmatpush.msra.mxu0 0.0
    %623 = vmatpush.msra.mxu0 0.0
    %624 = vmatpush.msra.mxu0 0.0
    %625 = vmatpush.msra.mxu0 0.0
    %626 = vmatpush.msra.mxu0 0.0
    %627 = vmatpush.msra.mxu0 0.0
    %628 = vmatpush.msra.mxu0 0.0
    %629 = vmatpush.msra.mxu0 0.0
    %630 = vmatpush.msra.mxu0 %v128
    %631 = vmatpush.msra.mxu0 %v127
    %632 = vmatpush.msra.mxu0 %v126
    %633 = vmatpush.msra.mxu0 %v125
    %634 = vmatpush.msra.mxu0 %v124
    %635 = vmatpush.msra.mxu0 %v123
    %636 = vmatpush.msra.mxu0 %v122
    %637 = vmatpush.msra.mxu0 %v121
    %638 = vmatmul.f32.gmra.mxu0 %v431
    %v639 = vpop.f32.mrf.mxu0
    %v640 = vadd.f32 0.0, %v639
    %641 = vmatmul.f32.gmra.mxu0 %v434
    %v642 = vpop.f32.mrf.mxu0
    %v643 = vadd.f32 0.0, %v642
    %644 = vmatmul.f32.gmra.mxu0 %v437
    %v645 = vpop.f32.mrf.mxu0
    %v646 = vadd.f32 0.0, %v645
    %647 = vmatmul.f32.gmra.mxu0 %v440
    %v648 = vpop.f32.mrf.mxu0
    %v649 = vadd.f32 0.0, %v648
    %650 = vmatmul.f32.gmra.mxu0 %v443
    %v651 = vpop.f32.mrf.mxu0
    %v652 = vadd.f32 0.0, %v651
    %653 = vmatmul.f32.gmra.mxu0 %v446
    %v654 = vpop.f32.mrf.mxu0
    %v655 = vadd.f32 0.0, %v654
    %656 = vmatmul.f32.gmra.mxu0 %v449
    %v657 = vpop.f32.mrf.mxu0
    %v658 = vadd.f32 0.0, %v657
    %659 = vmatmul.f32.gmra.mxu0 %v452
    %v660 = vpop.f32.mrf.mxu0
    %v661 = vadd.f32 0.0, %v660
    %662 = vmatmul.f32.gmra.mxu0 %v455
    %v663 = vpop.f32.mrf.mxu0
    %v664 = vadd.f32 0.0, %v663
    %665 = vmatmul.f32.gmra.mxu0 %v458
    %v666 = vpop.f32.mrf.mxu0
    %v667 = vadd.f32 0.0, %v666
    %668 = vmatmul.f32.gmra.mxu0 %v461
    %v669 = vpop.f32.mrf.mxu0
    %v670 = vadd.f32 0.0, %v669
    %671 = vmatmul.f32.gmra.mxu0 %v464
    %v672 = vpop.f32.mrf.mxu0
    %v673 = vadd.f32 0.0, %v672
    %674 = vmatmul.f32.gmra.mxu0 %v467
    %v675 = vpop.f32.mrf.mxu0
    %v676 = vadd.f32 0.0, %v675
    %677 = vmatmul.f32.gmra.mxu0 %v470
    %v678 = vpop.f32.mrf.mxu0
    %v679 = vadd.f32 0.0, %v678
    %680 = vmatmul.f32.gmra.mxu0 %v473
    %v681 = vpop.f32.mrf.mxu0
    %v682 = vadd.f32 0.0, %v681
    %683 = vmatmul.f32.gmra.mxu0 %v476
    %v684 = vpop.f32.mrf.mxu0
    %v685 = vadd.f32 0.0, %v684
    %686 = vmatmul.f32.gmra.mxu0 %v479
    %v687 = vpop.f32.mrf.mxu0
    %v688 = vadd.f32 0.0, %v687
    %689 = vmatmul.f32.gmra.mxu0 %v482
    %v690 = vpop.f32.mrf.mxu0
    %v691 = vadd.f32 0.0, %v690
    %692 = vmatmul.f32.gmra.mxu0 %v485
    %v693 = vpop.f32.mrf.mxu0
    %v694 = vadd.f32 0.0, %v693
    %695 = vmatmul.f32.gmra.mxu0 %v488
    %v696 = vpop.f32.mrf.mxu0
    %v697 = vadd.f32 0.0, %v696
    %698 = vmatmul.f32.gmra.mxu0 %v491
    %v699 = vpop.f32.mrf.mxu0
    %v700 = vadd.f32 0.0, %v699
    %701 = vmatmul.f32.gmra.mxu0 %v494
    %v702 = vpop.f32.mrf.mxu0
    %v703 = vadd.f32 0.0, %v702
    %704 = vmatmul.f32.gmra.mxu0 %v497
    %v705 = vpop.f32.mrf.mxu0
    %v706 = vadd.f32 0.0, %v705
    %707 = vmatmul.f32.gmra.mxu0 %v500
    %v708 = vpop.f32.mrf.mxu0
    %v709 = vadd.f32 0.0, %v708
    %710 = vmatmul.f32.gmra.mxu0 %v503
    %v711 = vpop.f32.mrf.mxu0
    %v712 = vadd.f32 0.0, %v711
    %713 = vmatmul.f32.gmra.mxu0 %v506
    %v714 = vpop.f32.mrf.mxu0
    %v715 = vadd.f32 0.0, %v714
    %716 = vmatmul.f32.gmra.mxu0 %v509
    %v717 = vpop.f32.mrf.mxu0
    %v718 = vadd.f32 0.0, %v717
    %719 = vmatmul.f32.gmra.mxu0 %v512
    %v720 = vpop.f32.mrf.mxu0
    %v721 = vadd.f32 0.0, %v720
    %722 = vmatmul.f32.gmra.mxu0 %v515
    %v723 = vpop.f32.mrf.mxu0
    %v724 = vadd.f32 0.0, %v723
    %725 = vmatmul.f32.gmra.mxu0 %v518
    %v726 = vpop.f32.mrf.mxu0
    %v727 = vadd.f32 0.0, %v726
    %728 = vmatmul.f32.gmra.mxu0 %v521
    %v729 = vpop.f32.mrf.mxu0
    %v730 = vadd.f32 0.0, %v729
    %731 = vmatmul.f32.gmra.mxu0 %v524
    %v732 = vpop.f32.mrf.mxu0
    %v733 = vadd.f32 0.0, %v732
    %734 = vmatmul.f32.gmra.mxu0 %v527
    %v735 = vpop.f32.mrf.mxu0
    %v736 = vadd.f32 0.0, %v735
    %737 = vmatmul.f32.gmra.mxu0 %v530
    %v738 = vpop.f32.mrf.mxu0
    %v739 = vadd.f32 0.0, %v738
    %740 = vmatmul.f32.gmra.mxu0 %v533
    %v741 = vpop.f32.mrf.mxu0
    %v742 = vadd.f32 0.0, %v741
    %743 = vmatmul.f32.gmra.mxu0 %v536
    %v744 = vpop.f32.mrf.mxu0
    %v745 = vadd.f32 0.0, %v744
    %746 = vmatmul.f32.gmra.mxu0 %v539
    %v747 = vpop.f32.mrf.mxu0
    %v748 = vadd.f32 0.0, %v747
    %749 = vmatmul.f32.gmra.mxu0 %v542
    %v750 = vpop.f32.mrf.mxu0
    %v751 = vadd.f32 0.0, %v750
    %752 = vmatmul.f32.gmra.mxu0 %v545
    %v753 = vpop.f32.mrf.mxu0
    %v754 = vadd.f32 0.0, %v753
    %755 = vmatmul.f32.gmra.mxu0 %v548
    %v756 = vpop.f32.mrf.mxu0
    %v757 = vadd.f32 0.0, %v756
    %758 = vmatmul.f32.gmra.mxu0 %v551
    %v759 = vpop.f32.mrf.mxu0
    %v760 = vadd.f32 0.0, %v759
    %761 = vmatmul.f32.gmra.mxu0 %v554
    %v762 = vpop.f32.mrf.mxu0
    %v763 = vadd.f32 0.0, %v762
    %764 = vmatmul.f32.gmra.mxu0 %v557
    %v765 = vpop.f32.mrf.mxu0
    %v766 = vadd.f32 0.0, %v765
    %767 = vmatmul.f32.gmra.mxu0 %v560
    %v768 = vpop.f32.mrf.mxu0
    %v769 = vadd.f32 0.0, %v768
    %770 = vmatmul.f32.gmra.mxu0 %v563
    %v771 = vpop.f32.mrf.mxu0
    %v772 = vadd.f32 0.0, %v771
    %773 = vmatmul.f32.gmra.mxu0 %v566
    %v774 = vpop.f32.mrf.mxu0
    %v775 = vadd.f32 0.0, %v774
    %776 = vmatmul.f32.gmra.mxu0 %v569
    %v777 = vpop.f32.mrf.mxu0
    %v778 = vadd.f32 0.0, %v777
    %779 = vmatmul.f32.gmra.mxu0 %v572
    %v780 = vpop.f32.mrf.mxu0
    %v781 = vadd.f32 0.0, %v780
    %782 = vmatmul.f32.gmra.mxu0 %v575
    %v783 = vpop.f32.mrf.mxu0
    %v784 = vadd.f32 0.0, %v783
    %785 = vmatmul.f32.gmra.mxu0 %v578
    %v786 = vpop.f32.mrf.mxu0
    %v787 = vadd.f32 0.0, %v786
    %788 = vmatmul.f32.gmra.mxu0 %v581
    %v789 = vpop.f32.mrf.mxu0
    %v790 = vadd.f32 0.0, %v789
    %791 = vmatmul.f32.gmra.mxu0 %v584
    %v792 = vpop.f32.mrf.mxu0
    %v793 = vadd.f32 0.0, %v792
    %794 = vmatmul.f32.gmra.mxu0 %v587
    %v795 = vpop.f32.mrf.mxu0
    %v796 = vadd.f32 0.0, %v795
    %797 = vmatmul.f32.gmra.mxu0 %v590
    %v798 = vpop.f32.mrf.mxu0
    %v799 = vadd.f32 0.0, %v798
    %800 = vmatmul.f32.gmra.mxu0 %v593
    %v801 = vpop.f32.mrf.mxu0
    %v802 = vadd.f32 0.0, %v801
    %803 = vmatmul.f32.gmra.mxu0 %v596
    %v804 = vpop.f32.mrf.mxu0
    %v805 = vadd.f32 0.0, %v804
    %806 = vmatmul.f32.gmra.mxu0 %v599
    %v807 = vpop.f32.mrf.mxu0
    %v808 = vadd.f32 0.0, %v807
    %809 = vmatmul.f32.gmra.mxu0 %v602
    %v810 = vpop.f32.mrf.mxu0
    %v811 = vadd.f32 0.0, %v810
    %812 = vmatmul.f32.gmra.mxu0 %v605
    %v813 = vpop.f32.mrf.mxu0
    %v814 = vadd.f32 0.0, %v813
    %815 = vmatmul.f32.gmra.mxu0 %v608
    %v816 = vpop.f32.mrf.mxu0
    %v817 = vadd.f32 0.0, %v816
    %818 = vmatmul.f32.gmra.mxu0 %v611
    %v819 = vpop.f32.mrf.mxu0
    %v820 = vadd.f32 0.0, %v819
    %821 = vmatmul.f32.gmra.mxu0 %v614
    %v822 = vpop.f32.mrf.mxu0
    %v823 = vadd.f32 0.0, %v822
    %824 = vmatmul.f32.gmra.mxu0 %v617
    %v825 = vpop.f32.mrf.mxu0
    %v826 = vadd.f32 0.0, %v825
    %827 = vmatmul.f32.gmra.mxu0 %v620
    %v828 = vpop.f32.mrf.mxu0
    %v829 = vadd.f32 0.0, %v828
    %830 = vdwg.mxu0
    %v831 = vmul.f32 %v640, 0.03125
    %v832 = vmul.f32 %v643, 0.03125
    %v833 = vmul.f32 %v646, 0.03125
    %v834 = vmul.f32 %v649, 0.03125
    %v835 = vmul.f32 %v652, 0.03125
    %v836 = vmul.f32 %v655, 0.03125
    %v837 = vmul.f32 %v658, 0.03125
    %v838 = vmul.f32 %v661, 0.03125
    %v839 = vmul.f32 %v664, 0.03125
    %v840 = vmul.f32 %v667, 0.03125
    %v841 = vmul.f32 %v670, 0.03125
    %v842 = vmul.f32 %v673, 0.03125
    %v843 = vmul.f32 %v676, 0.03125
    %v844 = vmul.f32 %v679, 0.03125
    %v845 = vmul.f32 %v682, 0.03125
    %v846 = vmul.f32 %v685, 0.03125
    %v847 = vmul.f32 %v688, 0.03125
    %v848 = vmul.f32 %v691, 0.03125
    %v849 = vmul.f32 %v694, 0.03125
    %v850 = vmul.f32 %v697, 0.03125
    %v851 = vmul.f32 %v700, 0.03125
    %v852 = vmul.f32 %v703, 0.03125
    %v853 = vmul.f32 %v706, 0.03125
    %v854 = vmul.f32 %v709, 0.03125
    %v855 = vmul.f32 %v712, 0.03125
    %v856 = vmul.f32 %v715, 0.03125
    %v857 = vmul.f32 %v718, 0.03125
    %v858 = vmul.f32 %v721, 0.03125
    %v859 = vmul.f32 %v724, 0.03125
    %v860 = vmul.f32 %v727, 0.03125
    %v861 = vmul.f32 %v730, 0.03125
    %v862 = vmul.f32 %v733, 0.03125
    %v863 = vmul.f32 %v736, 0.03125
    %v864 = vmul.f32 %v739, 0.03125
    %v865 = vmul.f32 %v742, 0.03125
    %v866 = vmul.f32 %v745, 0.03125
    %v867 = vmul.f32 %v748, 0.03125
    %v868 = vmul.f32 %v751, 0.03125
    %v869 = vmul.f32 %v754, 0.03125
    %v870 = vmul.f32 %v757, 0.03125
    %v871 = vmul.f32 %v760, 0.03125
    %v872 = vmul.f32 %v763, 0.03125
    %v873 = vmul.f32 %v766, 0.03125
    %v874 = vmul.f32 %v769, 0.03125
    %v875 = vmul.f32 %v772, 0.03125
    %v876 = vmul.f32 %v775, 0.03125
    %v877 = vmul.f32 %v778, 0.03125
    %v878 = vmul.f32 %v781, 0.03125
    %v879 = vmul.f32 %v784, 0.03125
    %v880 = vmul.f32 %v787, 0.03125
    %v881 = vmul.f32 %v790, 0.03125
    %v882 = vmul.f32 %v793, 0.03125
    %v883 = vmul.f32 %v796, 0.03125
    %v884 = vmul.f32 %v799, 0.03125
    %v885 = vmul.f32 %v802, 0.03125
    %v886 = vmul.f32 %v805, 0.03125
    %v887 = vmul.f32 %v808, 0.03125
    %v888 = vmul.f32 %v811, 0.03125
    %v889 = vmul.f32 %v814, 0.03125
    %v890 = vmul.f32 %v817, 0.03125
    %v891 = vmul.f32 %v820, 0.03125
    %v892 = vmul.f32 %v823, 0.03125
    %v893 = vmul.f32 %v826, 0.03125
    %v894 = vmul.f32 %v829, 0.03125
    %v895 = vmul.f32 %v271, %v271
    %v896 = vmul.f32 %v273, %v273
    %v897 = vmul.f32 %v276, %v276
    %v898 = vmul.f32 %v278, %v278
    %v899 = vmul.f32 %v281, %v281
    %v900 = vmul.f32 %v283, %v283
    %v901 = vmul.f32 %v286, %v286
    %v902 = vmul.f32 %v288, %v288
    %v903 = vmul.f32 %v291, %v291
    %v904 = vmul.f32 %v293, %v293
    %v905 = vmul.f32 %v296, %v296
    %v906 = vmul.f32 %v298, %v298
    %v907 = vmul.f32 %v301, %v301
    %v908 = vmul.f32 %v303, %v303
    %v909 = vmul.f32 %v306, %v306
    %v910 = vmul.f32 %v308, %v308
    %v911 = vmul.f32 %v311, %v311
    %v912 = vmul.f32 %v313, %v313
    %v913 = vmul.f32 %v316, %v316
    %v914 = vmul.f32 %v318, %v318
    %v915 = vmul.f32 %v321, %v321
    %v916 = vmul.f32 %v323, %v323
    %v917 = vmul.f32 %v326, %v326
    %v918 = vmul.f32 %v328, %v328
    %v919 = vmul.f32 %v331, %v331
    %v920 = vmul.f32 %v333, %v333
    %v921 = vmul.f32 %v336, %v336
    %v922 = vmul.f32 %v338, %v338
    %v923 = vmul.f32 %v341, %v341
    %v924 = vmul.f32 %v343, %v343
    %v925 = vmul.f32 %v346, %v346
    %v926 = vmul.f32 %v348, %v348
    %v927 = vmul.f32 %v351, %v351
    %v928 = vmul.f32 %v353, %v353
    %v929 = vmul.f32 %v356, %v356
    %v930 = vmul.f32 %v358, %v358
    %v931 = vmul.f32 %v361, %v361
    %v932 = vmul.f32 %v363, %v363
    %v933 = vmul.f32 %v366, %v366
    %v934 = vmul.f32 %v368, %v368
    %v935 = vmul.f32 %v371, %v371
    %v936 = vmul.f32 %v373, %v373
    %v937 = vmul.f32 %v376, %v376
    %v938 = vmul.f32 %v378, %v378
    %v939 = vmul.f32 %v381, %v381
    %v940 = vmul.f32 %v383, %v383
    %v941 = vmul.f32 %v386, %v386
    %v942 = vmul.f32 %v388, %v388
    %v943 = vmul.f32 %v391, %v391
    %v944 = vmul.f32 %v393, %v393
    %v945 = vmul.f32 %v396, %v396
    %v946 = vmul.f32 %v398, %v398
    %v947 = vmul.f32 %v401, %v401
    %v948 = vmul.f32 %v403, %v403
    %v949 = vmul.f32 %v406, %v406
    %v950 = vmul.f32 %v408, %v408
    %v951 = vmul.f32 %v411, %v411
    %v952 = vmul.f32 %v413, %v413
    %v953 = vmul.f32 %v416, %v416
    %v954 = vmul.f32 %v418, %v418
    %v955 = vmul.f32 %v421, %v421
    %v956 = vmul.f32 %v423, %v423
    %v957 = vmul.f32 %v426, %v426
    %v958 = vmul.f32 %v428, %v428
    %v960 = vsel %vm164, %v895, 0
    %v963 = vsel %vm164, %v896, 0
    %v966 = vsel %vm164, %v897, 0
    %v969 = vsel %vm164, %v898, 0
    %v972 = vsel %vm164, %v899, 0
    %v975 = vsel %vm164, %v900, 0
    %v978 = vsel %vm164, %v901, 0
    %v981 = vsel %vm164, %v902, 0
    %v984 = vsel %vm164, %v903, 0
    %v987 = vsel %vm164, %v904, 0
    %v990 = vsel %vm164, %v905, 0
    %v993 = vsel %vm164, %v906, 0
    %v996 = vsel %vm164, %v907, 0
    %v999 = vsel %vm164, %v908, 0
    %v1002 = vsel %vm164, %v909, 0
    %v1005 = vsel %vm164, %v910, 0
    %v1008 = vsel %vm164, %v911, 0
    %v1011 = vsel %vm164, %v912, 0
    %v1014 = vsel %vm164, %v913, 0
    %v1017 = vsel %vm164, %v914, 0
    %v1020 = vsel %vm164, %v915, 0
    %v1023 = vsel %vm164, %v916, 0
    %v1026 = vsel %vm164, %v917, 0
    %v1029 = vsel %vm164, %v918, 0
    %v1032 = vsel %vm164, %v919, 0
    %v1035 = vsel %vm164, %v920, 0
    %v1038 = vsel %vm164, %v921, 0
    %v1041 = vsel %vm164, %v922, 0
    %v1044 = vsel %vm164, %v923, 0
    %v1047 = vsel %vm164, %v924, 0
    %v1050 = vsel %vm164, %v925, 0
    %v1053 = vsel %vm164, %v926, 0
    %v1056 = vsel %vm164, %v927, 0
    %v1059 = vsel %vm164, %v928, 0
    %v1062 = vsel %vm164, %v929, 0
    %v1065 = vsel %vm164, %v930, 0
    %v1068 = vsel %vm164, %v931, 0
    %v1071 = vsel %vm164, %v932, 0
    %v1074 = vsel %vm164, %v933, 0
    %v1077 = vsel %vm164, %v934, 0
    %v1080 = vsel %vm164, %v935, 0
    %v1083 = vsel %vm164, %v936, 0
    %v1086 = vsel %vm164, %v937, 0
    %v1089 = vsel %vm164, %v938, 0
    %v1092 = vsel %vm164, %v939, 0
    %v1095 = vsel %vm164, %v940, 0
    %v1098 = vsel %vm164, %v941, 0
    %v1101 = vsel %vm164, %v942, 0
    %v1104 = vsel %vm164, %v943, 0
    %v1107 = vsel %vm164, %v944, 0
    %v1110 = vsel %vm164, %v945, 0
    %v1113 = vsel %vm164, %v946, 0
    %v1116 = vsel %vm164, %v947, 0
    %v1119 = vsel %vm164, %v948, 0
    %v1122 = vsel %vm164, %v949, 0
    %v1125 = vsel %vm164, %v950, 0
    %v1128 = vsel %vm164, %v951, 0
    %v1131 = vsel %vm164, %v952, 0
    %v1134 = vsel %vm164, %v953, 0
    %v1137 = vsel %vm164, %v954, 0
    %v1140 = vsel %vm164, %v955, 0
    %v1143 = vsel %vm164, %v956, 0
    %v1146 = vsel %vm164, %v957, 0
    %v1149 = vsel %vm164, %v958, 0
    %1151 = vmatpush.msra.mxu0 0.0
    %1152 = vmatpush.msra.mxu0 0.0
    %1153 = vmatpush.msra.mxu0 0.0
    %1154 = vmatpush.msra.mxu0 0.0
    %1155 = vmatpush.msra.mxu0 0.0
    %1156 = vmatpush.msra.mxu0 0.0
    %1157 = vmatpush.msra.mxu0 0.0
    %1158 = vmatpush.msra.mxu0 0.0
    %1159 = vmatpush.msra.mxu0 %v128
    %1160 = vmatpush.msra.mxu0 %v127
    %1161 = vmatpush.msra.mxu0 %v126
    %1162 = vmatpush.msra.mxu0 %v125
    %1163 = vmatpush.msra.mxu0 %v124
    %1164 = vmatpush.msra.mxu0 %v123
    %1165 = vmatpush.msra.mxu0 %v122
    %1166 = vmatpush.msra.mxu0 %v121
    %1167 = vmatmul.f32.gmra.mxu0 %v960
    %v1168 = vpop.f32.mrf.mxu0
    %v1169 = vadd.f32 0.0, %v1168
    %1170 = vmatmul.f32.gmra.mxu0 %v963
    %v1171 = vpop.f32.mrf.mxu0
    %v1172 = vadd.f32 0.0, %v1171
    %1173 = vmatmul.f32.gmra.mxu0 %v966
    %v1174 = vpop.f32.mrf.mxu0
    %v1175 = vadd.f32 0.0, %v1174
    %1176 = vmatmul.f32.gmra.mxu0 %v969
    %v1177 = vpop.f32.mrf.mxu0
    %v1178 = vadd.f32 0.0, %v1177
    %1179 = vmatmul.f32.gmra.mxu0 %v972
    %v1180 = vpop.f32.mrf.mxu0
    %v1181 = vadd.f32 0.0, %v1180
    %1182 = vmatmul.f32.gmra.mxu0 %v975
    %v1183 = vpop.f32.mrf.mxu0
    %v1184 = vadd.f32 0.0, %v1183
    %1185 = vmatmul.f32.gmra.mxu0 %v978
    %v1186 = vpop.f32.mrf.mxu0
    %v1187 = vadd.f32 0.0, %v1186
    %1188 = vmatmul.f32.gmra.mxu0 %v981
    %v1189 = vpop.f32.mrf.mxu0
    %v1190 = vadd.f32 0.0, %v1189
    %1191 = vmatmul.f32.gmra.mxu0 %v984
    %v1192 = vpop.f32.mrf.mxu0
    %v1193 = vadd.f32 0.0, %v1192
    %1194 = vmatmul.f32.gmra.mxu0 %v987
    %v1195 = vpop.f32.mrf.mxu0
    %v1196 = vadd.f32 0.0, %v1195
    %1197 = vmatmul.f32.gmra.mxu0 %v990
    %v1198 = vpop.f32.mrf.mxu0
    %v1199 = vadd.f32 0.0, %v1198
    %1200 = vmatmul.f32.gmra.mxu0 %v993
    %v1201 = vpop.f32.mrf.mxu0
    %v1202 = vadd.f32 0.0, %v1201
    %1203 = vmatmul.f32.gmra.mxu0 %v996
    %v1204 = vpop.f32.mrf.mxu0
    %v1205 = vadd.f32 0.0, %v1204
    %1206 = vmatmul.f32.gmra.mxu0 %v999
    %v1207 = vpop.f32.mrf.mxu0
    %v1208 = vadd.f32 0.0, %v1207
    %1209 = vmatmul.f32.gmra.mxu0 %v1002
    %v1210 = vpop.f32.mrf.mxu0
    %v1211 = vadd.f32 0.0, %v1210
    %1212 = vmatmul.f32.gmra.mxu0 %v1005
    %v1213 = vpop.f32.mrf.mxu0
    %v1214 = vadd.f32 0.0, %v1213
    %1215 = vmatmul.f32.gmra.mxu0 %v1008
    %v1216 = vpop.f32.mrf.mxu0
    %v1217 = vadd.f32 0.0, %v1216
    %1218 = vmatmul.f32.gmra.mxu0 %v1011
    %v1219 = vpop.f32.mrf.mxu0
    %v1220 = vadd.f32 0.0, %v1219
    %1221 = vmatmul.f32.gmra.mxu0 %v1014
    %v1222 = vpop.f32.mrf.mxu0
    %v1223 = vadd.f32 0.0, %v1222
    %1224 = vmatmul.f32.gmra.mxu0 %v1017
    %v1225 = vpop.f32.mrf.mxu0
    %v1226 = vadd.f32 0.0, %v1225
    %1227 = vmatmul.f32.gmra.mxu0 %v1020
    %v1228 = vpop.f32.mrf.mxu0
    %v1229 = vadd.f32 0.0, %v1228
    %1230 = vmatmul.f32.gmra.mxu0 %v1023
    %v1231 = vpop.f32.mrf.mxu0
    %v1232 = vadd.f32 0.0, %v1231
    %1233 = vmatmul.f32.gmra.mxu0 %v1026
    %v1234 = vpop.f32.mrf.mxu0
    %v1235 = vadd.f32 0.0, %v1234
    %1236 = vmatmul.f32.gmra.mxu0 %v1029
    %v1237 = vpop.f32.mrf.mxu0
    %v1238 = vadd.f32 0.0, %v1237
    %1239 = vmatmul.f32.gmra.mxu0 %v1032
    %v1240 = vpop.f32.mrf.mxu0
    %v1241 = vadd.f32 0.0, %v1240
    %1242 = vmatmul.f32.gmra.mxu0 %v1035
    %v1243 = vpop.f32.mrf.mxu0
    %v1244 = vadd.f32 0.0, %v1243
    %1245 = vmatmul.f32.gmra.mxu0 %v1038
    %v1246 = vpop.f32.mrf.mxu0
    %v1247 = vadd.f32 0.0, %v1246
    %1248 = vmatmul.f32.gmra.mxu0 %v1041
    %v1249 = vpop.f32.mrf.mxu0
    %v1250 = vadd.f32 0.0, %v1249
    %1251 = vmatmul.f32.gmra.mxu0 %v1044
    %v1252 = vpop.f32.mrf.mxu0
    %v1253 = vadd.f32 0.0, %v1252
    %1254 = vmatmul.f32.gmra.mxu0 %v1047
    %v1255 = vpop.f32.mrf.mxu0
    %v1256 = vadd.f32 0.0, %v1255
    %1257 = vmatmul.f32.gmra.mxu0 %v1050
    %v1258 = vpop.f32.mrf.mxu0
    %v1259 = vadd.f32 0.0, %v1258
    %1260 = vmatmul.f32.gmra.mxu0 %v1053
    %v1261 = vpop.f32.mrf.mxu0
    %v1262 = vadd.f32 0.0, %v1261
    %1263 = vmatmul.f32.gmra.mxu0 %v1056
    %v1264 = vpop.f32.mrf.mxu0
    %v1265 = vadd.f32 0.0, %v1264
    %1266 = vmatmul.f32.gmra.mxu0 %v1059
    %v1267 = vpop.f32.mrf.mxu0
    %v1268 = vadd.f32 0.0, %v1267
    %1269 = vmatmul.f32.gmra.mxu0 %v1062
    %v1270 = vpop.f32.mrf.mxu0
    %v1271 = vadd.f32 0.0, %v1270
    %1272 = vmatmul.f32.gmra.mxu0 %v1065
    %v1273 = vpop.f32.mrf.mxu0
    %v1274 = vadd.f32 0.0, %v1273
    %1275 = vmatmul.f32.gmra.mxu0 %v1068
    %v1276 = vpop.f32.mrf.mxu0
    %v1277 = vadd.f32 0.0, %v1276
    %1278 = vmatmul.f32.gmra.mxu0 %v1071
    %v1279 = vpop.f32.mrf.mxu0
    %v1280 = vadd.f32 0.0, %v1279
    %1281 = vmatmul.f32.gmra.mxu0 %v1074
    %v1282 = vpop.f32.mrf.mxu0
    %v1283 = vadd.f32 0.0, %v1282
    %1284 = vmatmul.f32.gmra.mxu0 %v1077
    %v1285 = vpop.f32.mrf.mxu0
    %v1286 = vadd.f32 0.0, %v1285
    %1287 = vmatmul.f32.gmra.mxu0 %v1080
    %v1288 = vpop.f32.mrf.mxu0
    %v1289 = vadd.f32 0.0, %v1288
    %1290 = vmatmul.f32.gmra.mxu0 %v1083
    %v1291 = vpop.f32.mrf.mxu0
    %v1292 = vadd.f32 0.0, %v1291
    %1293 = vmatmul.f32.gmra.mxu0 %v1086
    %v1294 = vpop.f32.mrf.mxu0
    %v1295 = vadd.f32 0.0, %v1294
    %1296 = vmatmul.f32.gmra.mxu0 %v1089
    %v1297 = vpop.f32.mrf.mxu0
    %v1298 = vadd.f32 0.0, %v1297
    %1299 = vmatmul.f32.gmra.mxu0 %v1092
    %v1300 = vpop.f32.mrf.mxu0
    %v1301 = vadd.f32 0.0, %v1300
    %1302 = vmatmul.f32.gmra.mxu0 %v1095
    %v1303 = vpop.f32.mrf.mxu0
    %v1304 = vadd.f32 0.0, %v1303
    %1305 = vmatmul.f32.gmra.mxu0 %v1098
    %v1306 = vpop.f32.mrf.mxu0
    %v1307 = vadd.f32 0.0, %v1306
    %1308 = vmatmul.f32.gmra.mxu0 %v1101
    %v1309 = vpop.f32.mrf.mxu0
    %v1310 = vadd.f32 0.0, %v1309
    %1311 = vmatmul.f32.gmra.mxu0 %v1104
    %v1312 = vpop.f32.mrf.mxu0
    %v1313 = vadd.f32 0.0, %v1312
    %1314 = vmatmul.f32.gmra.mxu0 %v1107
    %v1315 = vpop.f32.mrf.mxu0
    %v1316 = vadd.f32 0.0, %v1315
    %1317 = vmatmul.f32.gmra.mxu0 %v1110
    %v1318 = vpop.f32.mrf.mxu0
    %v1319 = vadd.f32 0.0, %v1318
    %1320 = vmatmul.f32.gmra.mxu0 %v1113
    %v1321 = vpop.f32.mrf.mxu0
    %v1322 = vadd.f32 0.0, %v1321
    %1323 = vmatmul.f32.gmra.mxu0 %v1116
    %v1324 = vpop.f32.mrf.mxu0
    %v1325 = vadd.f32 0.0, %v1324
    %1326 = vmatmul.f32.gmra.mxu0 %v1119
    %v1327 = vpop.f32.mrf.mxu0
    %v1328 = vadd.f32 0.0, %v1327
    %1329 = vmatmul.f32.gmra.mxu0 %v1122
    %v1330 = vpop.f32.mrf.mxu0
    %v1331 = vadd.f32 0.0, %v1330
    %1332 = vmatmul.f32.gmra.mxu0 %v1125
    %v1333 = vpop.f32.mrf.mxu0
    %v1334 = vadd.f32 0.0, %v1333
    %1335 = vmatmul.f32.gmra.mxu0 %v1128
    %v1336 = vpop.f32.mrf.mxu0
    %v1337 = vadd.f32 0.0, %v1336
    %1338 = vmatmul.f32.gmra.mxu0 %v1131
    %v1339 = vpop.f32.mrf.mxu0
    %v1340 = vadd.f32 0.0, %v1339
    %1341 = vmatmul.f32.gmra.mxu0 %v1134
    %v1342 = vpop.f32.mrf.mxu0
    %v1343 = vadd.f32 0.0, %v1342
    %1344 = vmatmul.f32.gmra.mxu0 %v1137
    %v1345 = vpop.f32.mrf.mxu0
    %v1346 = vadd.f32 0.0, %v1345
    %1347 = vmatmul.f32.gmra.mxu0 %v1140
    %v1348 = vpop.f32.mrf.mxu0
    %v1349 = vadd.f32 0.0, %v1348
    %1350 = vmatmul.f32.gmra.mxu0 %v1143
    %v1351 = vpop.f32.mrf.mxu0
    %v1352 = vadd.f32 0.0, %v1351
    %1353 = vmatmul.f32.gmra.mxu0 %v1146
    %v1354 = vpop.f32.mrf.mxu0
    %v1355 = vadd.f32 0.0, %v1354
    %1356 = vmatmul.f32.gmra.mxu0 %v1149
    %v1357 = vpop.f32.mrf.mxu0
    %v1358 = vadd.f32 0.0, %v1357
    %1359 = vdwg.mxu0
    %v1360 = vmul.f32 %v1169, 0.03125
    %v1361 = vmul.f32 %v1172, 0.03125
    %v1362 = vmul.f32 %v1175, 0.03125
    %v1363 = vmul.f32 %v1178, 0.03125
    %v1364 = vmul.f32 %v1181, 0.03125
    %v1365 = vmul.f32 %v1184, 0.03125
    %v1366 = vmul.f32 %v1187, 0.03125
    %v1367 = vmul.f32 %v1190, 0.03125
    %v1368 = vmul.f32 %v1193, 0.03125
    %v1369 = vmul.f32 %v1196, 0.03125
    %v1370 = vmul.f32 %v1199, 0.03125
    %v1371 = vmul.f32 %v1202, 0.03125
    %v1372 = vmul.f32 %v1205, 0.03125
    %v1373 = vmul.f32 %v1208, 0.03125
    %v1374 = vmul.f32 %v1211, 0.03125
    %v1375 = vmul.f32 %v1214, 0.03125
    %v1376 = vmul.f32 %v1217, 0.03125
    %v1377 = vmul.f32 %v1220, 0.03125
    %v1378 = vmul.f32 %v1223, 0.03125
    %v1379 = vmul.f32 %v1226, 0.03125
    %v1380 = vmul.f32 %v1229, 0.03125
    %v1381 = vmul.f32 %v1232, 0.03125
    %v1382 = vmul.f32 %v1235, 0.03125
    %v1383 = vmul.f32 %v1238, 0.03125
    %v1384 = vmul.f32 %v1241, 0.03125
    %v1385 = vmul.f32 %v1244, 0.03125
    %v1386 = vmul.f32 %v1247, 0.03125
    %v1387 = vmul.f32 %v1250, 0.03125
    %v1388 = vmul.f32 %v1253, 0.03125
    %v1389 = vmul.f32 %v1256, 0.03125
    %v1390 = vmul.f32 %v1259, 0.03125
    %v1391 = vmul.f32 %v1262, 0.03125
    %v1392 = vmul.f32 %v1265, 0.03125
    %v1393 = vmul.f32 %v1268, 0.03125
    %v1394 = vmul.f32 %v1271, 0.03125
    %v1395 = vmul.f32 %v1274, 0.03125
    %v1396 = vmul.f32 %v1277, 0.03125
    %v1397 = vmul.f32 %v1280, 0.03125
    %v1398 = vmul.f32 %v1283, 0.03125
    %v1399 = vmul.f32 %v1286, 0.03125
    %v1400 = vmul.f32 %v1289, 0.03125
    %v1401 = vmul.f32 %v1292, 0.03125
    %v1402 = vmul.f32 %v1295, 0.03125
    %v1403 = vmul.f32 %v1298, 0.03125
    %v1404 = vmul.f32 %v1301, 0.03125
    %v1405 = vmul.f32 %v1304, 0.03125
    %v1406 = vmul.f32 %v1307, 0.03125
    %v1407 = vmul.f32 %v1310, 0.03125
    %v1408 = vmul.f32 %v1313, 0.03125
    %v1409 = vmul.f32 %v1316, 0.03125
    %v1410 = vmul.f32 %v1319, 0.03125
    %v1411 = vmul.f32 %v1322, 0.03125
    %v1412 = vmul.f32 %v1325, 0.03125
    %v1413 = vmul.f32 %v1328, 0.03125
    %v1414 = vmul.f32 %v1331, 0.03125
    %v1415 = vmul.f32 %v1334, 0.03125
    %v1416 = vmul.f32 %v1337, 0.03125
    %v1417 = vmul.f32 %v1340, 0.03125
    %v1418 = vmul.f32 %v1343, 0.03125
    %v1419 = vmul.f32 %v1346, 0.03125
    %v1420 = vmul.f32 %v1349, 0.03125
    %v1421 = vmul.f32 %v1352, 0.03125
    %v1422 = vmul.f32 %v1355, 0.03125
    %v1423 = vmul.f32 %v1358, 0.03125
    %v1424 = vmul.f32 %v831, %v831
    %v1425 = vmul.f32 %v832, %v832
    %v1426 = vmul.f32 %v833, %v833
    %v1427 = vmul.f32 %v834, %v834
    %v1428 = vmul.f32 %v835, %v835
    %v1429 = vmul.f32 %v836, %v836
    %v1430 = vmul.f32 %v837, %v837
    %v1431 = vmul.f32 %v838, %v838
    %v1432 = vmul.f32 %v839, %v839
    %v1433 = vmul.f32 %v840, %v840
    %v1434 = vmul.f32 %v841, %v841
    %v1435 = vmul.f32 %v842, %v842
    %v1436 = vmul.f32 %v843, %v843
    %v1437 = vmul.f32 %v844, %v844
    %v1438 = vmul.f32 %v845, %v845
    %v1439 = vmul.f32 %v846, %v846
    %v1440 = vmul.f32 %v847, %v847
    %v1441 = vmul.f32 %v848, %v848
    %v1442 = vmul.f32 %v849, %v849
    %v1443 = vmul.f32 %v850, %v850
    %v1444 = vmul.f32 %v851, %v851
    %v1445 = vmul.f32 %v852, %v852
    %v1446 = vmul.f32 %v853, %v853
    %v1447 = vmul.f32 %v854, %v854
    %v1448 = vmul.f32 %v855, %v855
    %v1449 = vmul.f32 %v856, %v856
    %v1450 = vmul.f32 %v857, %v857
    %v1451 = vmul.f32 %v858, %v858
    %v1452 = vmul.f32 %v859, %v859
    %v1453 = vmul.f32 %v860, %v860
    %v1454 = vmul.f32 %v861, %v861
    %v1455 = vmul.f32 %v862, %v862
    %v1456 = vmul.f32 %v863, %v863
    %v1457 = vmul.f32 %v864, %v864
    %v1458 = vmul.f32 %v865, %v865
    %v1459 = vmul.f32 %v866, %v866
    %v1460 = vmul.f32 %v867, %v867
    %v1461 = vmul.f32 %v868, %v868
    %v1462 = vmul.f32 %v869, %v869
    %v1463 = vmul.f32 %v870, %v870
    %v1464 = vmul.f32 %v871, %v871
    %v1465 = vmul.f32 %v872, %v872
    %v1466 = vmul.f32 %v873, %v873
    %v1467 = vmul.f32 %v874, %v874
    %v1468 = vmul.f32 %v875, %v875
    %v1469 = vmul.f32 %v876, %v876
    %v1470 = vmul.f32 %v877, %v877
    %v1471 = vmul.f32 %v878, %v878
    %v1472 = vmul.f32 %v879, %v879
    %v1473 = vmul.f32 %v880, %v880
    %v1474 = vmul.f32 %v881, %v881
    %v1475 = vmul.f32 %v882, %v882
    %v1476 = vmul.f32 %v883, %v883
    %v1477 = vmul.f32 %v884, %v884
    %v1478 = vmul.f32 %v885, %v885
    %v1479 = vmul.f32 %v886, %v886
    %v1480 = vmul.f32 %v887, %v887
    %v1481 = vmul.f32 %v888, %v888
    %v1482 = vmul.f32 %v889, %v889
    %v1483 = vmul.f32 %v890, %v890
    %v1484 = vmul.f32 %v891, %v891
    %v1485 = vmul.f32 %v892, %v892
    %v1486 = vmul.f32 %v893, %v893
    %v1487 = vmul.f32 %v894, %v894
    %v1488 = vsub.f32 %v1360, %v1424
    %v1489 = vsub.f32 %v1361, %v1425
    %v1490 = vsub.f32 %v1362, %v1426
    %v1491 = vsub.f32 %v1363, %v1427
    %v1492 = vsub.f32 %v1364, %v1428
    %v1493 = vsub.f32 %v1365, %v1429
    %v1494 = vsub.f32 %v1366, %v1430
    %v1495 = vsub.f32 %v1367, %v1431
    %v1496 = vsub.f32 %v1368, %v1432
    %v1497 = vsub.f32 %v1369, %v1433
    %v1498 = vsub.f32 %v1370, %v1434
    %v1499 = vsub.f32 %v1371, %v1435
    %v1500 = vsub.f32 %v1372, %v1436
    %v1501 = vsub.f32 %v1373, %v1437
    %v1502 = vsub.f32 %v1374, %v1438
    %v1503 = vsub.f32 %v1375, %v1439
    %v1504 = vsub.f32 %v1376, %v1440
    %v1505 = vsub.f32 %v1377, %v1441
    %v1506 = vsub.f32 %v1378, %v1442
    %v1507 = vsub.f32 %v1379, %v1443
    %v1508 = vsub.f32 %v1380, %v1444
    %v1509 = vsub.f32 %v1381, %v1445
    %v1510 = vsub.f32 %v1382, %v1446
    %v1511 = vsub.f32 %v1383, %v1447
    %v1512 = vsub.f32 %v1384, %v1448
    %v1513 = vsub.f32 %v1385, %v1449
    %v1514 = vsub.f32 %v1386, %v1450
    %v1515 = vsub.f32 %v1387, %v1451
    %v1516 = vsub.f32 %v1388, %v1452
    %v1517 = vsub.f32 %v1389, %v1453
    %v1518 = vsub.f32 %v1390, %v1454
    %v1519 = vsub.f32 %v1391, %v1455
    %v1520 = vsub.f32 %v1392, %v1456
    %v1521 = vsub.f32 %v1393, %v1457
    %v1522 = vsub.f32 %v1394, %v1458
    %v1523 = vsub.f32 %v1395, %v1459
    %v1524 = vsub.f32 %v1396, %v1460
    %v1525 = vsub.f32 %v1397, %v1461
    %v1526 = vsub.f32 %v1398, %v1462
    %v1527 = vsub.f32 %v1399, %v1463
    %v1528 = vsub.f32 %v1400, %v1464
    %v1529 = vsub.f32 %v1401, %v1465
    %v1530 = vsub.f32 %v1402, %v1466
    %v1531 = vsub.f32 %v1403, %v1467
    %v1532 = vsub.f32 %v1404, %v1468
    %v1533 = vsub.f32 %v1405, %v1469
    %v1534 = vsub.f32 %v1406, %v1470
    %v1535 = vsub.f32 %v1407, %v1471
    %v1536 = vsub.f32 %v1408, %v1472
    %v1537 = vsub.f32 %v1409, %v1473
    %v1538 = vsub.f32 %v1410, %v1474
    %v1539 = vsub.f32 %v1411, %v1475
    %v1540 = vsub.f32 %v1412, %v1476
    %v1541 = vsub.f32 %v1413, %v1477
    %v1542 = vsub.f32 %v1414, %v1478
    %v1543 = vsub.f32 %v1415, %v1479
    %v1544 = vsub.f32 %v1416, %v1480
    %v1545 = vsub.f32 %v1417, %v1481
    %v1546 = vsub.f32 %v1418, %v1482
    %v1547 = vsub.f32 %v1419, %v1483
    %v1548 = vsub.f32 %v1420, %v1484
    %v1549 = vsub.f32 %v1421, %v1485
    %v1550 = vsub.f32 %v1422, %v1486
    %v1551 = vsub.f32 %v1423, %v1487
    %v1552 = vadd.f32 %v1488, 1e-05
    %v1553 = vadd.f32 %v1489, 1e-05
    %v1554 = vadd.f32 %v1490, 1e-05
    %v1555 = vadd.f32 %v1491, 1e-05
    %v1556 = vadd.f32 %v1492, 1e-05
    %v1557 = vadd.f32 %v1493, 1e-05
    %v1558 = vadd.f32 %v1494, 1e-05
    %v1559 = vadd.f32 %v1495, 1e-05
    %v1560 = vadd.f32 %v1496, 1e-05
    %v1561 = vadd.f32 %v1497, 1e-05
    %v1562 = vadd.f32 %v1498, 1e-05
    %v1563 = vadd.f32 %v1499, 1e-05
    %v1564 = vadd.f32 %v1500, 1e-05
    %v1565 = vadd.f32 %v1501, 1e-05
    %v1566 = vadd.f32 %v1502, 1e-05
    %v1567 = vadd.f32 %v1503, 1e-05
    %v1568 = vadd.f32 %v1504, 1e-05
    %v1569 = vadd.f32 %v1505, 1e-05
    %v1570 = vadd.f32 %v1506, 1e-05
    %v1571 = vadd.f32 %v1507, 1e-05
    %v1572 = vadd.f32 %v1508, 1e-05
    %v1573 = vadd.f32 %v1509, 1e-05
    %v1574 = vadd.f32 %v1510, 1e-05
    %v1575 = vadd.f32 %v1511, 1e-05
    %v1576 = vadd.f32 %v1512, 1e-05
    %v1577 = vadd.f32 %v1513, 1e-05
    %v1578 = vadd.f32 %v1514, 1e-05
    %v1579 = vadd.f32 %v1515, 1e-05
    %v1580 = vadd.f32 %v1516, 1e-05
    %v1581 = vadd.f32 %v1517, 1e-05
    %v1582 = vadd.f32 %v1518, 1e-05
    %v1583 = vadd.f32 %v1519, 1e-05
    %v1584 = vadd.f32 %v1520, 1e-05
    %v1585 = vadd.f32 %v1521, 1e-05
    %v1586 = vadd.f32 %v1522, 1e-05
    %v1587 = vadd.f32 %v1523, 1e-05
    %v1588 = vadd.f32 %v1524, 1e-05
    %v1589 = vadd.f32 %v1525, 1e-05
    %v1590 = vadd.f32 %v1526, 1e-05
    %v1591 = vadd.f32 %v1527, 1e-05
    %v1592 = vadd.f32 %v1528, 1e-05
    %v1593 = vadd.f32 %v1529, 1e-05
    %v1594 = vadd.f32 %v1530, 1e-05
    %v1595 = vadd.f32 %v1531, 1e-05
    %v1596 = vadd.f32 %v1532, 1e-05
    %v1597 = vadd.f32 %v1533, 1e-05
    %v1598 = vadd.f32 %v1534, 1e-05
    %v1599 = vadd.f32 %v1535, 1e-05
    %v1600 = vadd.f32 %v1536, 1e-05
    %v1601 = vadd.f32 %v1537, 1e-05
    %v1602 = vadd.f32 %v1538, 1e-05
    %v1603 = vadd.f32 %v1539, 1e-05
    %v1604 = vadd.f32 %v1540, 1e-05
    %v1605 = vadd.f32 %v1541, 1e-05
    %v1606 = vadd.f32 %v1542, 1e-05
    %v1607 = vadd.f32 %v1543, 1e-05
    %v1608 = vadd.f32 %v1544, 1e-05
    %v1609 = vadd.f32 %v1545, 1e-05
    %v1610 = vadd.f32 %v1546, 1e-05
    %v1611 = vadd.f32 %v1547, 1e-05
    %v1612 = vadd.f32 %v1548, 1e-05
    %v1613 = vadd.f32 %v1549, 1e-05
    %v1614 = vadd.f32 %v1550, 1e-05
    %v1615 = vadd.f32 %v1551, 1e-05
    %v1616 = vrsqrt.pop %v1552
    %v1617 = vmul.f32 %v1616, %v1552
    %v1618 = vmul.f32 %v1617, %v1616
    %v1619 = vmul.f32 0.5, %v1618
    %v1620 = vsub.f32 1.5, %v1619
    %v1621 = vmul.f32 %v1616, %v1620
    %vm1622 = vweird.f32 %v1552
    %vm1623 = vweird.f32 %v1616
    %vm1624 = vmor %vm1622, %vm1623
    %v1625 = vsel %vm1624, %v1616, %v1621
    %v1626 = vrsqrt.pop %v1553
    %v1627 = vmul.f32 %v1626, %v1553
    %v1628 = vmul.f32 %v1627, %v1626
    %v1629 = vmul.f32 0.5, %v1628
    %v1630 = vsub.f32 1.5, %v1629
    %v1631 = vmul.f32 %v1626, %v1630
    %vm1632 = vweird.f32 %v1553
    %vm1633 = vweird.f32 %v1626
    %vm1634 = vmor %vm1632, %vm1633
    %v1635 = vsel %vm1634, %v1626, %v1631
    %v1636 = vrsqrt.pop %v1554
    %v1637 = vmul.f32 %v1636, %v1554
    %v1638 = vmul.f32 %v1637, %v1636
    %v1639 = vmul.f32 0.5, %v1638
    %v1640 = vsub.f32 1.5, %v1639
    %v1641 = vmul.f32 %v1636, %v1640
    %vm1642 = vweird.f32 %v1554
    %vm1643 = vweird.f32 %v1636
    %vm1644 = vmor %vm1642, %vm1643
    %v1645 = vsel %vm1644, %v1636, %v1641
    %v1646 = vrsqrt.pop %v1555
    %v1647 = vmul.f32 %v1646, %v1555
    %v1648 = vmul.f32 %v1647, %v1646
    %v1649 = vmul.f32 0.5, %v1648
    %v1650 = vsub.f32 1.5, %v1649
    %v1651 = vmul.f32 %v1646, %v1650
    %vm1652 = vweird.f32 %v1555
    %vm1653 = vweird.f32 %v1646
    %vm1654 = vmor %vm1652, %vm1653
    %v1655 = vsel %vm1654, %v1646, %v1651
    %v1656 = vrsqrt.pop %v1556
    %v1657 = vmul.f32 %v1656, %v1556
    %v1658 = vmul.f32 %v1657, %v1656
    %v1659 = vmul.f32 0.5, %v1658
    %v1660 = vsub.f32 1.5, %v1659
    %v1661 = vmul.f32 %v1656, %v1660
    %vm1662 = vweird.f32 %v1556
    %vm1663 = vweird.f32 %v1656
    %vm1664 = vmor %vm1662, %vm1663
    %v1665 = vsel %vm1664, %v1656, %v1661
    %v1666 = vrsqrt.pop %v1557
    %v1667 = vmul.f32 %v1666, %v1557
    %v1668 = vmul.f32 %v1667, %v1666
    %v1669 = vmul.f32 0.5, %v1668
    %v1670 = vsub.f32 1.5, %v1669
    %v1671 = vmul.f32 %v1666, %v1670
    %vm1672 = vweird.f32 %v1557
    %vm1673 = vweird.f32 %v1666
    %vm1674 = vmor %vm1672, %vm1673
    %v1675 = vsel %vm1674, %v1666, %v1671
    %v1676 = vrsqrt.pop %v1558
    %v1677 = vmul.f32 %v1676, %v1558
    %v1678 = vmul.f32 %v1677, %v1676
    %v1679 = vmul.f32 0.5, %v1678
    %v1680 = vsub.f32 1.5, %v1679
    %v1681 = vmul.f32 %v1676, %v1680
    %vm1682 = vweird.f32 %v1558
    %vm1683 = vweird.f32 %v1676
    %vm1684 = vmor %vm1682, %vm1683
    %v1685 = vsel %vm1684, %v1676, %v1681
    %v1686 = vrsqrt.pop %v1559
    %v1687 = vmul.f32 %v1686, %v1559
    %v1688 = vmul.f32 %v1687, %v1686
    %v1689 = vmul.f32 0.5, %v1688
    %v1690 = vsub.f32 1.5, %v1689
    %v1691 = vmul.f32 %v1686, %v1690
    %vm1692 = vweird.f32 %v1559
    %vm1693 = vweird.f32 %v1686
    %vm1694 = vmor %vm1692, %vm1693
    %v1695 = vsel %vm1694, %v1686, %v1691
    %v1696 = vrsqrt.pop %v1560
    %v1697 = vmul.f32 %v1696, %v1560
    %v1698 = vmul.f32 %v1697, %v1696
    %v1699 = vmul.f32 0.5, %v1698
    %v1700 = vsub.f32 1.5, %v1699
    %v1701 = vmul.f32 %v1696, %v1700
    %vm1702 = vweird.f32 %v1560
    %vm1703 = vweird.f32 %v1696
    %vm1704 = vmor %vm1702, %vm1703
    %v1705 = vsel %vm1704, %v1696, %v1701
    %v1706 = vrsqrt.pop %v1561
    %v1707 = vmul.f32 %v1706, %v1561
    %v1708 = vmul.f32 %v1707, %v1706
    %v1709 = vmul.f32 0.5, %v1708
    %v1710 = vsub.f32 1.5, %v1709
    %v1711 = vmul.f32 %v1706, %v1710
    %vm1712 = vweird.f32 %v1561
    %vm1713 = vweird.f32 %v1706
    %vm1714 = vmor %vm1712, %vm1713
    %v1715 = vsel %vm1714, %v1706, %v1711
    %v1716 = vrsqrt.pop %v1562
    %v1717 = vmul.f32 %v1716, %v1562
    %v1718 = vmul.f32 %v1717, %v1716
    %v1719 = vmul.f32 0.5, %v1718
    %v1720 = vsub.f32 1.5, %v1719
    %v1721 = vmul.f32 %v1716, %v1720
    %vm1722 = vweird.f32 %v1562
    %vm1723 = vweird.f32 %v1716
    %vm1724 = vmor %vm1722, %vm1723
    %v1725 = vsel %vm1724, %v1716, %v1721
    %v1726 = vrsqrt.pop %v1563
    %v1727 = vmul.f32 %v1726, %v1563
    %v1728 = vmul.f32 %v1727, %v1726
    %v1729 = vmul.f32 0.5, %v1728
    %v1730 = vsub.f32 1.5, %v1729
    %v1731 = vmul.f32 %v1726, %v1730
    %vm1732 = vweird.f32 %v1563
    %vm1733 = vweird.f32 %v1726
    %vm1734 = vmor %vm1732, %vm1733
    %v1735 = vsel %vm1734, %v1726, %v1731
    %v1736 = vrsqrt.pop %v1564
    %v1737 = vmul.f32 %v1736, %v1564
    %v1738 = vmul.f32 %v1737, %v1736
    %v1739 = vmul.f32 0.5, %v1738
    %v1740 = vsub.f32 1.5, %v1739
    %v1741 = vmul.f32 %v1736, %v1740
    %vm1742 = vweird.f32 %v1564
    %vm1743 = vweird.f32 %v1736
    %vm1744 = vmor %vm1742, %vm1743
    %v1745 = vsel %vm1744, %v1736, %v1741
    %v1746 = vrsqrt.pop %v1565
    %v1747 = vmul.f32 %v1746, %v1565
    %v1748 = vmul.f32 %v1747, %v1746
    %v1749 = vmul.f32 0.5, %v1748
    %v1750 = vsub.f32 1.5, %v1749
    %v1751 = vmul.f32 %v1746, %v1750
    %vm1752 = vweird.f32 %v1565
    %vm1753 = vweird.f32 %v1746
    %vm1754 = vmor %vm1752, %vm1753
    %v1755 = vsel %vm1754, %v1746, %v1751
    %v1756 = vrsqrt.pop %v1566
    %v1757 = vmul.f32 %v1756, %v1566
    %v1758 = vmul.f32 %v1757, %v1756
    %v1759 = vmul.f32 0.5, %v1758
    %v1760 = vsub.f32 1.5, %v1759
    %v1761 = vmul.f32 %v1756, %v1760
    %vm1762 = vweird.f32 %v1566
    %vm1763 = vweird.f32 %v1756
    %vm1764 = vmor %vm1762, %vm1763
    %v1765 = vsel %vm1764, %v1756, %v1761
    %v1766 = vrsqrt.pop %v1567
    %v1767 = vmul.f32 %v1766, %v1567
    %v1768 = vmul.f32 %v1767, %v1766
    %v1769 = vmul.f32 0.5, %v1768
    %v1770 = vsub.f32 1.5, %v1769
    %v1771 = vmul.f32 %v1766, %v1770
    %vm1772 = vweird.f32 %v1567
    %vm1773 = vweird.f32 %v1766
    %vm1774 = vmor %vm1772, %vm1773
    %v1775 = vsel %vm1774, %v1766, %v1771
    %v1776 = vrsqrt.pop %v1568
    %v1777 = vmul.f32 %v1776, %v1568
    %v1778 = vmul.f32 %v1777, %v1776
    %v1779 = vmul.f32 0.5, %v1778
    %v1780 = vsub.f32 1.5, %v1779
    %v1781 = vmul.f32 %v1776, %v1780
    %vm1782 = vweird.f32 %v1568
    %vm1783 = vweird.f32 %v1776
    %vm1784 = vmor %vm1782, %vm1783
    %v1785 = vsel %vm1784, %v1776, %v1781
    %v1786 = vrsqrt.pop %v1569
    %v1787 = vmul.f32 %v1786, %v1569
    %v1788 = vmul.f32 %v1787, %v1786
    %v1789 = vmul.f32 0.5, %v1788
    %v1790 = vsub.f32 1.5, %v1789
    %v1791 = vmul.f32 %v1786, %v1790
    %vm1792 = vweird.f32 %v1569
    %vm1793 = vweird.f32 %v1786
    %vm1794 = vmor %vm1792, %vm1793
    %v1795 = vsel %vm1794, %v1786, %v1791
    %v1796 = vrsqrt.pop %v1570
    %v1797 = vmul.f32 %v1796, %v1570
    %v1798 = vmul.f32 %v1797, %v1796
    %v1799 = vmul.f32 0.5, %v1798
    %v1800 = vsub.f32 1.5, %v1799
    %v1801 = vmul.f32 %v1796, %v1800
    %vm1802 = vweird.f32 %v1570
    %vm1803 = vweird.f32 %v1796
    %vm1804 = vmor %vm1802, %vm1803
    %v1805 = vsel %vm1804, %v1796, %v1801
    %v1806 = vrsqrt.pop %v1571
    %v1807 = vmul.f32 %v1806, %v1571
    %v1808 = vmul.f32 %v1807, %v1806
    %v1809 = vmul.f32 0.5, %v1808
    %v1810 = vsub.f32 1.5, %v1809
    %v1811 = vmul.f32 %v1806, %v1810
    %vm1812 = vweird.f32 %v1571
    %vm1813 = vweird.f32 %v1806
    %vm1814 = vmor %vm1812, %vm1813
    %v1815 = vsel %vm1814, %v1806, %v1811
    %v1816 = vrsqrt.pop %v1572
    %v1817 = vmul.f32 %v1816, %v1572
    %v1818 = vmul.f32 %v1817, %v1816
    %v1819 = vmul.f32 0.5, %v1818
    %v1820 = vsub.f32 1.5, %v1819
    %v1821 = vmul.f32 %v1816, %v1820
    %vm1822 = vweird.f32 %v1572
    %vm1823 = vweird.f32 %v1816
    %vm1824 = vmor %vm1822, %vm1823
    %v1825 = vsel %vm1824, %v1816, %v1821
    %v1826 = vrsqrt.pop %v1573
    %v1827 = vmul.f32 %v1826, %v1573
    %v1828 = vmul.f32 %v1827, %v1826
    %v1829 = vmul.f32 0.5, %v1828
    %v1830 = vsub.f32 1.5, %v1829
    %v1831 = vmul.f32 %v1826, %v1830
    %vm1832 = vweird.f32 %v1573
    %vm1833 = vweird.f32 %v1826
    %vm1834 = vmor %vm1832, %vm1833
    %v1835 = vsel %vm1834, %v1826, %v1831
    %v1836 = vrsqrt.pop %v1574
    %v1837 = vmul.f32 %v1836, %v1574
    %v1838 = vmul.f32 %v1837, %v1836
    %v1839 = vmul.f32 0.5, %v1838
    %v1840 = vsub.f32 1.5, %v1839
    %v1841 = vmul.f32 %v1836, %v1840
    %vm1842 = vweird.f32 %v1574
    %vm1843 = vweird.f32 %v1836
    %vm1844 = vmor %vm1842, %vm1843
    %v1845 = vsel %vm1844, %v1836, %v1841
    %v1846 = vrsqrt.pop %v1575
    %v1847 = vmul.f32 %v1846, %v1575
    %v1848 = vmul.f32 %v1847, %v1846
    %v1849 = vmul.f32 0.5, %v1848
    %v1850 = vsub.f32 1.5, %v1849
    %v1851 = vmul.f32 %v1846, %v1850
    %vm1852 = vweird.f32 %v1575
    %vm1853 = vweird.f32 %v1846
    %vm1854 = vmor %vm1852, %vm1853
    %v1855 = vsel %vm1854, %v1846, %v1851
    %v1856 = vrsqrt.pop %v1576
    %v1857 = vmul.f32 %v1856, %v1576
    %v1858 = vmul.f32 %v1857, %v1856
    %v1859 = vmul.f32 0.5, %v1858
    %v1860 = vsub.f32 1.5, %v1859
    %v1861 = vmul.f32 %v1856, %v1860
    %vm1862 = vweird.f32 %v1576
    %vm1863 = vweird.f32 %v1856
    %vm1864 = vmor %vm1862, %vm1863
    %v1865 = vsel %vm1864, %v1856, %v1861
    %v1866 = vrsqrt.pop %v1577
    %v1867 = vmul.f32 %v1866, %v1577
    %v1868 = vmul.f32 %v1867, %v1866
    %v1869 = vmul.f32 0.5, %v1868
    %v1870 = vsub.f32 1.5, %v1869
    %v1871 = vmul.f32 %v1866, %v1870
    %vm1872 = vweird.f32 %v1577
    %vm1873 = vweird.f32 %v1866
    %vm1874 = vmor %vm1872, %vm1873
    %v1875 = vsel %vm1874, %v1866, %v1871
    %v1876 = vrsqrt.pop %v1578
    %v1877 = vmul.f32 %v1876, %v1578
    %v1878 = vmul.f32 %v1877, %v1876
    %v1879 = vmul.f32 0.5, %v1878
    %v1880 = vsub.f32 1.5, %v1879
    %v1881 = vmul.f32 %v1876, %v1880
    %vm1882 = vweird.f32 %v1578
    %vm1883 = vweird.f32 %v1876
    %vm1884 = vmor %vm1882, %vm1883
    %v1885 = vsel %vm1884, %v1876, %v1881
    %v1886 = vrsqrt.pop %v1579
    %v1887 = vmul.f32 %v1886, %v1579
    %v1888 = vmul.f32 %v1887, %v1886
    %v1889 = vmul.f32 0.5, %v1888
    %v1890 = vsub.f32 1.5, %v1889
    %v1891 = vmul.f32 %v1886, %v1890
    %vm1892 = vweird.f32 %v1579
    %vm1893 = vweird.f32 %v1886
    %vm1894 = vmor %vm1892, %vm1893
    %v1895 = vsel %vm1894, %v1886, %v1891
    %v1896 = vrsqrt.pop %v1580
    %v1897 = vmul.f32 %v1896, %v1580
    %v1898 = vmul.f32 %v1897, %v1896
    %v1899 = vmul.f32 0.5, %v1898
    %v1900 = vsub.f32 1.5, %v1899
    %v1901 = vmul.f32 %v1896, %v1900
    %vm1902 = vweird.f32 %v1580
    %vm1903 = vweird.f32 %v1896
    %vm1904 = vmor %vm1902, %vm1903
    %v1905 = vsel %vm1904, %v1896, %v1901
    %v1906 = vrsqrt.pop %v1581
    %v1907 = vmul.f32 %v1906, %v1581
    %v1908 = vmul.f32 %v1907, %v1906
    %v1909 = vmul.f32 0.5, %v1908
    %v1910 = vsub.f32 1.5, %v1909
    %v1911 = vmul.f32 %v1906, %v1910
    %vm1912 = vweird.f32 %v1581
    %vm1913 = vweird.f32 %v1906
    %vm1914 = vmor %vm1912, %vm1913
    %v1915 = vsel %vm1914, %v1906, %v1911
    %v1916 = vrsqrt.pop %v1582
    %v1917 = vmul.f32 %v1916, %v1582
    %v1918 = vmul.f32 %v1917, %v1916
    %v1919 = vmul.f32 0.5, %v1918
    %v1920 = vsub.f32 1.5, %v1919
    %v1921 = vmul.f32 %v1916, %v1920
    %vm1922 = vweird.f32 %v1582
    %vm1923 = vweird.f32 %v1916
    %vm1924 = vmor %vm1922, %vm1923
    %v1925 = vsel %vm1924, %v1916, %v1921
    %v1926 = vrsqrt.pop %v1583
    %v1927 = vmul.f32 %v1926, %v1583
    %v1928 = vmul.f32 %v1927, %v1926
    %v1929 = vmul.f32 0.5, %v1928
    %v1930 = vsub.f32 1.5, %v1929
    %v1931 = vmul.f32 %v1926, %v1930
    %vm1932 = vweird.f32 %v1583
    %vm1933 = vweird.f32 %v1926
    %vm1934 = vmor %vm1932, %vm1933
    %v1935 = vsel %vm1934, %v1926, %v1931
    %v1936 = vrsqrt.pop %v1584
    %v1937 = vmul.f32 %v1936, %v1584
    %v1938 = vmul.f32 %v1937, %v1936
    %v1939 = vmul.f32 0.5, %v1938
    %v1940 = vsub.f32 1.5, %v1939
    %v1941 = vmul.f32 %v1936, %v1940
    %vm1942 = vweird.f32 %v1584
    %vm1943 = vweird.f32 %v1936
    %vm1944 = vmor %vm1942, %vm1943
    %v1945 = vsel %vm1944, %v1936, %v1941
    %v1946 = vrsqrt.pop %v1585
    %v1947 = vmul.f32 %v1946, %v1585
    %v1948 = vmul.f32 %v1947, %v1946
    %v1949 = vmul.f32 0.5, %v1948
    %v1950 = vsub.f32 1.5, %v1949
    %v1951 = vmul.f32 %v1946, %v1950
    %vm1952 = vweird.f32 %v1585
    %vm1953 = vweird.f32 %v1946
    %vm1954 = vmor %vm1952, %vm1953
    %v1955 = vsel %vm1954, %v1946, %v1951
    %v1956 = vrsqrt.pop %v1586
    %v1957 = vmul.f32 %v1956, %v1586
    %v1958 = vmul.f32 %v1957, %v1956
    %v1959 = vmul.f32 0.5, %v1958
    %v1960 = vsub.f32 1.5, %v1959
    %v1961 = vmul.f32 %v1956, %v1960
    %vm1962 = vweird.f32 %v1586
    %vm1963 = vweird.f32 %v1956
    %vm1964 = vmor %vm1962, %vm1963
    %v1965 = vsel %vm1964, %v1956, %v1961
    %v1966 = vrsqrt.pop %v1587
    %v1967 = vmul.f32 %v1966, %v1587
    %v1968 = vmul.f32 %v1967, %v1966
    %v1969 = vmul.f32 0.5, %v1968
    %v1970 = vsub.f32 1.5, %v1969
    %v1971 = vmul.f32 %v1966, %v1970
    %vm1972 = vweird.f32 %v1587
    %vm1973 = vweird.f32 %v1966
    %vm1974 = vmor %vm1972, %vm1973
    %v1975 = vsel %vm1974, %v1966, %v1971
    %v1976 = vrsqrt.pop %v1588
    %v1977 = vmul.f32 %v1976, %v1588
    %v1978 = vmul.f32 %v1977, %v1976
    %v1979 = vmul.f32 0.5, %v1978
    %v1980 = vsub.f32 1.5, %v1979
    %v1981 = vmul.f32 %v1976, %v1980
    %vm1982 = vweird.f32 %v1588
    %vm1983 = vweird.f32 %v1976
    %vm1984 = vmor %vm1982, %vm1983
    %v1985 = vsel %vm1984, %v1976, %v1981
    %v1986 = vrsqrt.pop %v1589
    %v1987 = vmul.f32 %v1986, %v1589
    %v1988 = vmul.f32 %v1987, %v1986
    %v1989 = vmul.f32 0.5, %v1988
    %v1990 = vsub.f32 1.5, %v1989
    %v1991 = vmul.f32 %v1986, %v1990
    %vm1992 = vweird.f32 %v1589
    %vm1993 = vweird.f32 %v1986
    %vm1994 = vmor %vm1992, %vm1993
    %v1995 = vsel %vm1994, %v1986, %v1991
    %v1996 = vrsqrt.pop %v1590
    %v1997 = vmul.f32 %v1996, %v1590
    %v1998 = vmul.f32 %v1997, %v1996
    %v1999 = vmul.f32 0.5, %v1998
    %v2000 = vsub.f32 1.5, %v1999
    %v2001 = vmul.f32 %v1996, %v2000
    %vm2002 = vweird.f32 %v1590
    %vm2003 = vweird.f32 %v1996
    %vm2004 = vmor %vm2002, %vm2003
    %v2005 = vsel %vm2004, %v1996, %v2001
    %v2006 = vrsqrt.pop %v1591
    %v2007 = vmul.f32 %v2006, %v1591
    %v2008 = vmul.f32 %v2007, %v2006
    %v2009 = vmul.f32 0.5, %v2008
    %v2010 = vsub.f32 1.5, %v2009
    %v2011 = vmul.f32 %v2006, %v2010
    %vm2012 = vweird.f32 %v1591
    %vm2013 = vweird.f32 %v2006
    %vm2014 = vmor %vm2012, %vm2013
    %v2015 = vsel %vm2014, %v2006, %v2011
    %v2016 = vrsqrt.pop %v1592
    %v2017 = vmul.f32 %v2016, %v1592
    %v2018 = vmul.f32 %v2017, %v2016
    %v2019 = vmul.f32 0.5, %v2018
    %v2020 = vsub.f32 1.5, %v2019
    %v2021 = vmul.f32 %v2016, %v2020
    %vm2022 = vweird.f32 %v1592
    %vm2023 = vweird.f32 %v2016
    %vm2024 = vmor %vm2022, %vm2023
    %v2025 = vsel %vm2024, %v2016, %v2021
    %v2026 = vrsqrt.pop %v1593
    %v2027 = vmul.f32 %v2026, %v1593
    %v2028 = vmul.f32 %v2027, %v2026
    %v2029 = vmul.f32 0.5, %v2028
    %v2030 = vsub.f32 1.5, %v2029
    %v2031 = vmul.f32 %v2026, %v2030
    %vm2032 = vweird.f32 %v1593
    %vm2033 = vweird.f32 %v2026
    %vm2034 = vmor %vm2032, %vm2033
    %v2035 = vsel %vm2034, %v2026, %v2031
    %v2036 = vrsqrt.pop %v1594
    %v2037 = vmul.f32 %v2036, %v1594
    %v2038 = vmul.f32 %v2037, %v2036
    %v2039 = vmul.f32 0.5, %v2038
    %v2040 = vsub.f32 1.5, %v2039
    %v2041 = vmul.f32 %v2036, %v2040
    %vm2042 = vweird.f32 %v1594
    %vm2043 = vweird.f32 %v2036
    %vm2044 = vmor %vm2042, %vm2043
    %v2045 = vsel %vm2044, %v2036, %v2041
    %v2046 = vrsqrt.pop %v1595
    %v2047 = vmul.f32 %v2046, %v1595
    %v2048 = vmul.f32 %v2047, %v2046
    %v2049 = vmul.f32 0.5, %v2048
    %v2050 = vsub.f32 1.5, %v2049
    %v2051 = vmul.f32 %v2046, %v2050
    %vm2052 = vweird.f32 %v1595
    %vm2053 = vweird.f32 %v2046
    %vm2054 = vmor %vm2052, %vm2053
    %v2055 = vsel %vm2054, %v2046, %v2051
    %v2056 = vrsqrt.pop %v1596
    %v2057 = vmul.f32 %v2056, %v1596
    %v2058 = vmul.f32 %v2057, %v2056
    %v2059 = vmul.f32 0.5, %v2058
    %v2060 = vsub.f32 1.5, %v2059
    %v2061 = vmul.f32 %v2056, %v2060
    %vm2062 = vweird.f32 %v1596
    %vm2063 = vweird.f32 %v2056
    %vm2064 = vmor %vm2062, %vm2063
    %v2065 = vsel %vm2064, %v2056, %v2061
    %v2066 = vrsqrt.pop %v1597
    %v2067 = vmul.f32 %v2066, %v1597
    %v2068 = vmul.f32 %v2067, %v2066
    %v2069 = vmul.f32 0.5, %v2068
    %v2070 = vsub.f32 1.5, %v2069
    %v2071 = vmul.f32 %v2066, %v2070
    %vm2072 = vweird.f32 %v1597
    %vm2073 = vweird.f32 %v2066
    %vm2074 = vmor %vm2072, %vm2073
    %v2075 = vsel %vm2074, %v2066, %v2071
    %v2076 = vrsqrt.pop %v1598
    %v2077 = vmul.f32 %v2076, %v1598
    %v2078 = vmul.f32 %v2077, %v2076
    %v2079 = vmul.f32 0.5, %v2078
    %v2080 = vsub.f32 1.5, %v2079
    %v2081 = vmul.f32 %v2076, %v2080
    %vm2082 = vweird.f32 %v1598
    %vm2083 = vweird.f32 %v2076
    %vm2084 = vmor %vm2082, %vm2083
    %v2085 = vsel %vm2084, %v2076, %v2081
    %v2086 = vrsqrt.pop %v1599
    %v2087 = vmul.f32 %v2086, %v1599
    %v2088 = vmul.f32 %v2087, %v2086
    %v2089 = vmul.f32 0.5, %v2088
    %v2090 = vsub.f32 1.5, %v2089
    %v2091 = vmul.f32 %v2086, %v2090
    %vm2092 = vweird.f32 %v1599
    %vm2093 = vweird.f32 %v2086
    %vm2094 = vmor %vm2092, %vm2093
    %v2095 = vsel %vm2094, %v2086, %v2091
    %v2096 = vrsqrt.pop %v1600
    %v2097 = vmul.f32 %v2096, %v1600
    %v2098 = vmul.f32 %v2097, %v2096
    %v2099 = vmul.f32 0.5, %v2098
    %v2100 = vsub.f32 1.5, %v2099
    %v2101 = vmul.f32 %v2096, %v2100
    %vm2102 = vweird.f32 %v1600
    %vm2103 = vweird.f32 %v2096
    %vm2104 = vmor %vm2102, %vm2103
    %v2105 = vsel %vm2104, %v2096, %v2101
    %v2106 = vrsqrt.pop %v1601
    %v2107 = vmul.f32 %v2106, %v1601
    %v2108 = vmul.f32 %v2107, %v2106
    %v2109 = vmul.f32 0.5, %v2108
    %v2110 = vsub.f32 1.5, %v2109
    %v2111 = vmul.f32 %v2106, %v2110
    %vm2112 = vweird.f32 %v1601
    %vm2113 = vweird.f32 %v2106
    %vm2114 = vmor %vm2112, %vm2113
    %v2115 = vsel %vm2114, %v2106, %v2111
    %v2116 = vrsqrt.pop %v1602
    %v2117 = vmul.f32 %v2116, %v1602
    %v2118 = vmul.f32 %v2117, %v2116
    %v2119 = vmul.f32 0.5, %v2118
    %v2120 = vsub.f32 1.5, %v2119
    %v2121 = vmul.f32 %v2116, %v2120
    %vm2122 = vweird.f32 %v1602
    %vm2123 = vweird.f32 %v2116
    %vm2124 = vmor %vm2122, %vm2123
    %v2125 = vsel %vm2124, %v2116, %v2121
    %v2126 = vrsqrt.pop %v1603
    %v2127 = vmul.f32 %v2126, %v1603
    %v2128 = vmul.f32 %v2127, %v2126
    %v2129 = vmul.f32 0.5, %v2128
    %v2130 = vsub.f32 1.5, %v2129
    %v2131 = vmul.f32 %v2126, %v2130
    %vm2132 = vweird.f32 %v1603
    %vm2133 = vweird.f32 %v2126
    %vm2134 = vmor %vm2132, %vm2133
    %v2135 = vsel %vm2134, %v2126, %v2131
    %v2136 = vrsqrt.pop %v1604
    %v2137 = vmul.f32 %v2136, %v1604
    %v2138 = vmul.f32 %v2137, %v2136
    %v2139 = vmul.f32 0.5, %v2138
    %v2140 = vsub.f32 1.5, %v2139
    %v2141 = vmul.f32 %v2136, %v2140
    %vm2142 = vweird.f32 %v1604
    %vm2143 = vweird.f32 %v2136
    %vm2144 = vmor %vm2142, %vm2143
    %v2145 = vsel %vm2144, %v2136, %v2141
    %v2146 = vrsqrt.pop %v1605
    %v2147 = vmul.f32 %v2146, %v1605
    %v2148 = vmul.f32 %v2147, %v2146
    %v2149 = vmul.f32 0.5, %v2148
    %v2150 = vsub.f32 1.5, %v2149
    %v2151 = vmul.f32 %v2146, %v2150
    %vm2152 = vweird.f32 %v1605
    %vm2153 = vweird.f32 %v2146
    %vm2154 = vmor %vm2152, %vm2153
    %v2155 = vsel %vm2154, %v2146, %v2151
    %v2156 = vrsqrt.pop %v1606
    %v2157 = vmul.f32 %v2156, %v1606
    %v2158 = vmul.f32 %v2157, %v2156
    %v2159 = vmul.f32 0.5, %v2158
    %v2160 = vsub.f32 1.5, %v2159
    %v2161 = vmul.f32 %v2156, %v2160
    %vm2162 = vweird.f32 %v1606
    %vm2163 = vweird.f32 %v2156
    %vm2164 = vmor %vm2162, %vm2163
    %v2165 = vsel %vm2164, %v2156, %v2161
    %v2166 = vrsqrt.pop %v1607
    %v2167 = vmul.f32 %v2166, %v1607
    %v2168 = vmul.f32 %v2167, %v2166
    %v2169 = vmul.f32 0.5, %v2168
    %v2170 = vsub.f32 1.5, %v2169
    %v2171 = vmul.f32 %v2166, %v2170
    %vm2172 = vweird.f32 %v1607
    %vm2173 = vweird.f32 %v2166
    %vm2174 = vmor %vm2172, %vm2173
    %v2175 = vsel %vm2174, %v2166, %v2171
    %v2176 = vrsqrt.pop %v1608
    %v2177 = vmul.f32 %v2176, %v1608
    %v2178 = vmul.f32 %v2177, %v2176
    %v2179 = vmul.f32 0.5, %v2178
    %v2180 = vsub.f32 1.5, %v2179
    %v2181 = vmul.f32 %v2176, %v2180
    %vm2182 = vweird.f32 %v1608
    %vm2183 = vweird.f32 %v2176
    %vm2184 = vmor %vm2182, %vm2183
    %v2185 = vsel %vm2184, %v2176, %v2181
    %v2186 = vrsqrt.pop %v1609
    %v2187 = vmul.f32 %v2186, %v1609
    %v2188 = vmul.f32 %v2187, %v2186
    %v2189 = vmul.f32 0.5, %v2188
    %v2190 = vsub.f32 1.5, %v2189
    %v2191 = vmul.f32 %v2186, %v2190
    %vm2192 = vweird.f32 %v1609
    %vm2193 = vweird.f32 %v2186
    %vm2194 = vmor %vm2192, %vm2193
    %v2195 = vsel %vm2194, %v2186, %v2191
    %v2196 = vrsqrt.pop %v1610
    %v2197 = vmul.f32 %v2196, %v1610
    %v2198 = vmul.f32 %v2197, %v2196
    %v2199 = vmul.f32 0.5, %v2198
    %v2200 = vsub.f32 1.5, %v2199
    %v2201 = vmul.f32 %v2196, %v2200
    %vm2202 = vweird.f32 %v1610
    %vm2203 = vweird.f32 %v2196
    %vm2204 = vmor %vm2202, %vm2203
    %v2205 = vsel %vm2204, %v2196, %v2201
    %v2206 = vrsqrt.pop %v1611
    %v2207 = vmul.f32 %v2206, %v1611
    %v2208 = vmul.f32 %v2207, %v2206
    %v2209 = vmul.f32 0.5, %v2208
    %v2210 = vsub.f32 1.5, %v2209
    %v2211 = vmul.f32 %v2206, %v2210
    %vm2212 = vweird.f32 %v1611
    %vm2213 = vweird.f32 %v2206
    %vm2214 = vmor %vm2212, %vm2213
    %v2215 = vsel %vm2214, %v2206, %v2211
    %v2216 = vrsqrt.pop %v1612
    %v2217 = vmul.f32 %v2216, %v1612
    %v2218 = vmul.f32 %v2217, %v2216
    %v2219 = vmul.f32 0.5, %v2218
    %v2220 = vsub.f32 1.5, %v2219
    %v2221 = vmul.f32 %v2216, %v2220
    %vm2222 = vweird.f32 %v1612
    %vm2223 = vweird.f32 %v2216
    %vm2224 = vmor %vm2222, %vm2223
    %v2225 = vsel %vm2224, %v2216, %v2221
    %v2226 = vrsqrt.pop %v1613
    %v2227 = vmul.f32 %v2226, %v1613
    %v2228 = vmul.f32 %v2227, %v2226
    %v2229 = vmul.f32 0.5, %v2228
    %v2230 = vsub.f32 1.5, %v2229
    %v2231 = vmul.f32 %v2226, %v2230
    %vm2232 = vweird.f32 %v1613
    %vm2233 = vweird.f32 %v2226
    %vm2234 = vmor %vm2232, %vm2233
    %v2235 = vsel %vm2234, %v2226, %v2231
    %v2236 = vrsqrt.pop %v1614
    %v2237 = vmul.f32 %v2236, %v1614
    %v2238 = vmul.f32 %v2237, %v2236
    %v2239 = vmul.f32 0.5, %v2238
    %v2240 = vsub.f32 1.5, %v2239
    %v2241 = vmul.f32 %v2236, %v2240
    %vm2242 = vweird.f32 %v1614
    %vm2243 = vweird.f32 %v2236
    %vm2244 = vmor %vm2242, %vm2243
    %v2245 = vsel %vm2244, %v2236, %v2241
    %v2246 = vrsqrt.pop %v1615
    %v2247 = vmul.f32 %v2246, %v1615
    %v2248 = vmul.f32 %v2247, %v2246
    %v2249 = vmul.f32 0.5, %v2248
    %v2250 = vsub.f32 1.5, %v2249
    %v2251 = vmul.f32 %v2246, %v2250
    %vm2252 = vweird.f32 %v1615
    %vm2253 = vweird.f32 %v2246
    %vm2254 = vmor %vm2252, %vm2253
    %v2255 = vsel %vm2254, %v2246, %v2251
    %vm2256 = vcmask 15360
    %v2258 = vsel %vm2256, %v831, 0
    %v2261 = vsel %vm2256, %v832, 0
    %v2264 = vsel %vm2256, %v833, 0
    %v2267 = vsel %vm2256, %v834, 0
    %v2270 = vsel %vm2256, %v835, 0
    %v2273 = vsel %vm2256, %v836, 0
    %v2276 = vsel %vm2256, %v837, 0
    %v2279 = vsel %vm2256, %v838, 0
    %v2282 = vsel %vm2256, %v839, 0
    %v2285 = vsel %vm2256, %v840, 0
    %v2288 = vsel %vm2256, %v841, 0
    %v2291 = vsel %vm2256, %v842, 0
    %v2294 = vsel %vm2256, %v843, 0
    %v2297 = vsel %vm2256, %v844, 0
    %v2300 = vsel %vm2256, %v845, 0
    %v2303 = vsel %vm2256, %v846, 0
    %v2306 = vsel %vm2256, %v847, 0
    %v2309 = vsel %vm2256, %v848, 0
    %v2312 = vsel %vm2256, %v849, 0
    %v2315 = vsel %vm2256, %v850, 0
    %v2318 = vsel %vm2256, %v851, 0
    %v2321 = vsel %vm2256, %v852, 0
    %v2324 = vsel %vm2256, %v853, 0
    %v2327 = vsel %vm2256, %v854, 0
    %v2330 = vsel %vm2256, %v855, 0
    %v2333 = vsel %vm2256, %v856, 0
    %v2336 = vsel %vm2256, %v857, 0
    %v2339 = vsel %vm2256, %v858, 0
    %v2342 = vsel %vm2256, %v859, 0
    %v2345 = vsel %vm2256, %v860, 0
    %v2348 = vsel %vm2256, %v861, 0
    %v2351 = vsel %vm2256, %v862, 0
    %v2354 = vsel %vm2256, %v863, 0
    %v2357 = vsel %vm2256, %v864, 0
    %v2360 = vsel %vm2256, %v865, 0
    %v2363 = vsel %vm2256, %v866, 0
    %v2366 = vsel %vm2256, %v867, 0
    %v2369 = vsel %vm2256, %v868, 0
    %v2372 = vsel %vm2256, %v869, 0
    %v2375 = vsel %vm2256, %v870, 0
    %v2378 = vsel %vm2256, %v871, 0
    %v2381 = vsel %vm2256, %v872, 0
    %v2384 = vsel %vm2256, %v873, 0
    %v2387 = vsel %vm2256, %v874, 0
    %v2390 = vsel %vm2256, %v875, 0
    %v2393 = vsel %vm2256, %v876, 0
    %v2396 = vsel %vm2256, %v877, 0
    %v2399 = vsel %vm2256, %v878, 0
    %v2402 = vsel %vm2256, %v879, 0
    %v2405 = vsel %vm2256, %v880, 0
    %v2408 = vsel %vm2256, %v881, 0
    %v2411 = vsel %vm2256, %v882, 0
    %v2414 = vsel %vm2256, %v883, 0
    %v2417 = vsel %vm2256, %v884, 0
    %v2420 = vsel %vm2256, %v885, 0
    %v2423 = vsel %vm2256, %v886, 0
    %v2426 = vsel %vm2256, %v887, 0
    %v2429 = vsel %vm2256, %v888, 0
    %v2432 = vsel %vm2256, %v889, 0
    %v2435 = vsel %vm2256, %v890, 0
    %v2438 = vsel %vm2256, %v891, 0
    %v2441 = vsel %vm2256, %v892, 0
    %v2444 = vsel %vm2256, %v893, 0
    %v2447 = vsel %vm2256, %v894, 0
    %vm2449 = vcmask 1041408
    %v2451 = vsel %vm2449, %v129, 0
    %2453 = vmatpush.msra.mxu0 0.0
    %2454 = vmatpush.msra.mxu0 0.0
    %2455 = vmatpush.msra.mxu0 0.0
    %2456 = vmatpush.msra.mxu0 0.0
    %2457 = vmatpush.msra.mxu0 0.0
    %2458 = vmatpush.msra.mxu0 0.0
    %2459 = vmatpush.msra.mxu0 0.0
    %2460 = vmatpush.msra.mxu0 0.0
    %2461 = vmatpush.msra.mxu0 0.0
    %2462 = vmatpush.msra.mxu0 0.0
    %2463 = vmatpush.msra.mxu0 0.0
    %2464 = vmatpush.msra.mxu0 0.0
    %2465 = vmatpush.msra.mxu0 0.0
    %2466 = vmatpush.msra.mxu0 0.0
    %2467 = vmatpush.msra.mxu0 0.0
    %2468 = vmatpush.msra.mxu0 %v2451
    %2469 = vmatmul.f32.gmra.mxu0 %v2258
    %v2470 = vpop.f32.mrf.mxu0
    %v2471 = vadd.f32 0.0, %v2470
    %2472 = vmatmul.f32.gmra.mxu0 %v2261
    %v2473 = vpop.f32.mrf.mxu0
    %v2474 = vadd.f32 0.0, %v2473
    %2475 = vmatmul.f32.gmra.mxu0 %v2264
    %v2476 = vpop.f32.mrf.mxu0
    %v2477 = vadd.f32 0.0, %v2476
    %2478 = vmatmul.f32.gmra.mxu0 %v2267
    %v2479 = vpop.f32.mrf.mxu0
    %v2480 = vadd.f32 0.0, %v2479
    %2481 = vmatmul.f32.gmra.mxu0 %v2270
    %v2482 = vpop.f32.mrf.mxu0
    %v2483 = vadd.f32 0.0, %v2482
    %2484 = vmatmul.f32.gmra.mxu0 %v2273
    %v2485 = vpop.f32.mrf.mxu0
    %v2486 = vadd.f32 0.0, %v2485
    %2487 = vmatmul.f32.gmra.mxu0 %v2276
    %v2488 = vpop.f32.mrf.mxu0
    %v2489 = vadd.f32 0.0, %v2488
    %2490 = vmatmul.f32.gmra.mxu0 %v2279
    %v2491 = vpop.f32.mrf.mxu0
    %v2492 = vadd.f32 0.0, %v2491
    %2493 = vmatmul.f32.gmra.mxu0 %v2282
    %v2494 = vpop.f32.mrf.mxu0
    %v2495 = vadd.f32 0.0, %v2494
    %2496 = vmatmul.f32.gmra.mxu0 %v2285
    %v2497 = vpop.f32.mrf.mxu0
    %v2498 = vadd.f32 0.0, %v2497
    %2499 = vmatmul.f32.gmra.mxu0 %v2288
    %v2500 = vpop.f32.mrf.mxu0
    %v2501 = vadd.f32 0.0, %v2500
    %2502 = vmatmul.f32.gmra.mxu0 %v2291
    %v2503 = vpop.f32.mrf.mxu0
    %v2504 = vadd.f32 0.0, %v2503
    %2505 = vmatmul.f32.gmra.mxu0 %v2294
    %v2506 = vpop.f32.mrf.mxu0
    %v2507 = vadd.f32 0.0, %v2506
    %2508 = vmatmul.f32.gmra.mxu0 %v2297
    %v2509 = vpop.f32.mrf.mxu0
    %v2510 = vadd.f32 0.0, %v2509
    %2511 = vmatmul.f32.gmra.mxu0 %v2300
    %v2512 = vpop.f32.mrf.mxu0
    %v2513 = vadd.f32 0.0, %v2512
    %2514 = vmatmul.f32.gmra.mxu0 %v2303
    %v2515 = vpop.f32.mrf.mxu0
    %v2516 = vadd.f32 0.0, %v2515
    %2517 = vmatmul.f32.gmra.mxu0 %v2306
    %v2518 = vpop.f32.mrf.mxu0
    %v2519 = vadd.f32 0.0, %v2518
    %2520 = vmatmul.f32.gmra.mxu0 %v2309
    %v2521 = vpop.f32.mrf.mxu0
    %v2522 = vadd.f32 0.0, %v2521
    %2523 = vmatmul.f32.gmra.mxu0 %v2312
    %v2524 = vpop.f32.mrf.mxu0
    %v2525 = vadd.f32 0.0, %v2524
    %2526 = vmatmul.f32.gmra.mxu0 %v2315
    %v2527 = vpop.f32.mrf.mxu0
    %v2528 = vadd.f32 0.0, %v2527
    %2529 = vmatmul.f32.gmra.mxu0 %v2318
    %v2530 = vpop.f32.mrf.mxu0
    %v2531 = vadd.f32 0.0, %v2530
    %2532 = vmatmul.f32.gmra.mxu0 %v2321
    %v2533 = vpop.f32.mrf.mxu0
    %v2534 = vadd.f32 0.0, %v2533
    %2535 = vmatmul.f32.gmra.mxu0 %v2324
    %v2536 = vpop.f32.mrf.mxu0
    %v2537 = vadd.f32 0.0, %v2536
    %2538 = vmatmul.f32.gmra.mxu0 %v2327
    %v2539 = vpop.f32.mrf.mxu0
    %v2540 = vadd.f32 0.0, %v2539
    %2541 = vmatmul.f32.gmra.mxu0 %v2330
    %v2542 = vpop.f32.mrf.mxu0
    %v2543 = vadd.f32 0.0, %v2542
    %2544 = vmatmul.f32.gmra.mxu0 %v2333
    %v2545 = vpop.f32.mrf.mxu0
    %v2546 = vadd.f32 0.0, %v2545
    %2547 = vmatmul.f32.gmra.mxu0 %v2336
    %v2548 = vpop.f32.mrf.mxu0
    %v2549 = vadd.f32 0.0, %v2548
    %2550 = vmatmul.f32.gmra.mxu0 %v2339
    %v2551 = vpop.f32.mrf.mxu0
    %v2552 = vadd.f32 0.0, %v2551
    %2553 = vmatmul.f32.gmra.mxu0 %v2342
    %v2554 = vpop.f32.mrf.mxu0
    %v2555 = vadd.f32 0.0, %v2554
    %2556 = vmatmul.f32.gmra.mxu0 %v2345
    %v2557 = vpop.f32.mrf.mxu0
    %v2558 = vadd.f32 0.0, %v2557
    %2559 = vmatmul.f32.gmra.mxu0 %v2348
    %v2560 = vpop.f32.mrf.mxu0
    %v2561 = vadd.f32 0.0, %v2560
    %2562 = vmatmul.f32.gmra.mxu0 %v2351
    %v2563 = vpop.f32.mrf.mxu0
    %v2564 = vadd.f32 0.0, %v2563
    %2565 = vmatmul.f32.gmra.mxu0 %v2354
    %v2566 = vpop.f32.mrf.mxu0
    %v2567 = vadd.f32 0.0, %v2566
    %2568 = vmatmul.f32.gmra.mxu0 %v2357
    %v2569 = vpop.f32.mrf.mxu0
    %v2570 = vadd.f32 0.0, %v2569
    %2571 = vmatmul.f32.gmra.mxu0 %v2360
    %v2572 = vpop.f32.mrf.mxu0
    %v2573 = vadd.f32 0.0, %v2572
    %2574 = vmatmul.f32.gmra.mxu0 %v2363
    %v2575 = vpop.f32.mrf.mxu0
    %v2576 = vadd.f32 0.0, %v2575
    %2577 = vmatmul.f32.gmra.mxu0 %v2366
    %v2578 = vpop.f32.mrf.mxu0
    %v2579 = vadd.f32 0.0, %v2578
    %2580 = vmatmul.f32.gmra.mxu0 %v2369
    %v2581 = vpop.f32.mrf.mxu0
    %v2582 = vadd.f32 0.0, %v2581
    %2583 = vmatmul.f32.gmra.mxu0 %v2372
    %v2584 = vpop.f32.mrf.mxu0
    %v2585 = vadd.f32 0.0, %v2584
    %2586 = vmatmul.f32.gmra.mxu0 %v2375
    %v2587 = vpop.f32.mrf.mxu0
    %v2588 = vadd.f32 0.0, %v2587
    %2589 = vmatmul.f32.gmra.mxu0 %v2378
    %v2590 = vpop.f32.mrf.mxu0
    %v2591 = vadd.f32 0.0, %v2590
    %2592 = vmatmul.f32.gmra.mxu0 %v2381
    %v2593 = vpop.f32.mrf.mxu0
    %v2594 = vadd.f32 0.0, %v2593
    %2595 = vmatmul.f32.gmra.mxu0 %v2384
    %v2596 = vpop.f32.mrf.mxu0
    %v2597 = vadd.f32 0.0, %v2596
    %2598 = vmatmul.f32.gmra.mxu0 %v2387
    %v2599 = vpop.f32.mrf.mxu0
    %v2600 = vadd.f32 0.0, %v2599
    %2601 = vmatmul.f32.gmra.mxu0 %v2390
    %v2602 = vpop.f32.mrf.mxu0
    %v2603 = vadd.f32 0.0, %v2602
    %2604 = vmatmul.f32.gmra.mxu0 %v2393
    %v2605 = vpop.f32.mrf.mxu0
    %v2606 = vadd.f32 0.0, %v2605
    %2607 = vmatmul.f32.gmra.mxu0 %v2396
    %v2608 = vpop.f32.mrf.mxu0
    %v2609 = vadd.f32 0.0, %v2608
    %2610 = vmatmul.f32.gmra.mxu0 %v2399
    %v2611 = vpop.f32.mrf.mxu0
    %v2612 = vadd.f32 0.0, %v2611
    %2613 = vmatmul.f32.gmra.mxu0 %v2402
    %v2614 = vpop.f32.mrf.mxu0
    %v2615 = vadd.f32 0.0, %v2614
    %2616 = vmatmul.f32.gmra.mxu0 %v2405
    %v2617 = vpop.f32.mrf.mxu0
    %v2618 = vadd.f32 0.0, %v2617
    %2619 = vmatmul.f32.gmra.mxu0 %v2408
    %v2620 = vpop.f32.mrf.mxu0
    %v2621 = vadd.f32 0.0, %v2620
    %2622 = vmatmul.f32.gmra.mxu0 %v2411
    %v2623 = vpop.f32.mrf.mxu0
    %v2624 = vadd.f32 0.0, %v2623
    %2625 = vmatmul.f32.gmra.mxu0 %v2414
    %v2626 = vpop.f32.mrf.mxu0
    %v2627 = vadd.f32 0.0, %v2626
    %2628 = vmatmul.f32.gmra.mxu0 %v2417
    %v2629 = vpop.f32.mrf.mxu0
    %v2630 = vadd.f32 0.0, %v2629
    %2631 = vmatmul.f32.gmra.mxu0 %v2420
    %v2632 = vpop.f32.mrf.mxu0
    %v2633 = vadd.f32 0.0, %v2632
    %2634 = vmatmul.f32.gmra.mxu0 %v2423
    %v2635 = vpop.f32.mrf.mxu0
    %v2636 = vadd.f32 0.0, %v2635
    %2637 = vmatmul.f32.gmra.mxu0 %v2426
    %v2638 = vpop.f32.mrf.mxu0
    %v2639 = vadd.f32 0.0, %v2638
    %2640 = vmatmul.f32.gmra.mxu0 %v2429
    %v2641 = vpop.f32.mrf.mxu0
    %v2642 = vadd.f32 0.0, %v2641
    %2643 = vmatmul.f32.gmra.mxu0 %v2432
    %v2644 = vpop.f32.mrf.mxu0
    %v2645 = vadd.f32 0.0, %v2644
    %2646 = vmatmul.f32.gmra.mxu0 %v2435
    %v2647 = vpop.f32.mrf.mxu0
    %v2648 = vadd.f32 0.0, %v2647
    %2649 = vmatmul.f32.gmra.mxu0 %v2438
    %v2650 = vpop.f32.mrf.mxu0
    %v2651 = vadd.f32 0.0, %v2650
    %2652 = vmatmul.f32.gmra.mxu0 %v2441
    %v2653 = vpop.f32.mrf.mxu0
    %v2654 = vadd.f32 0.0, %v2653
    %2655 = vmatmul.f32.gmra.mxu0 %v2444
    %v2656 = vpop.f32.mrf.mxu0
    %v2657 = vadd.f32 0.0, %v2656
    %2658 = vmatmul.f32.gmra.mxu0 %v2447
    %v2659 = vpop.f32.mrf.mxu0
    %v2660 = vadd.f32 0.0, %v2659
    %2661 = vdwg.mxu0
    %v2663 = vsel %vm2256, %v1625, 0
    %v2666 = vsel %vm2256, %v1635, 0
    %v2669 = vsel %vm2256, %v1645, 0
    %v2672 = vsel %vm2256, %v1655, 0
    %v2675 = vsel %vm2256, %v1665, 0
    %v2678 = vsel %vm2256, %v1675, 0
    %v2681 = vsel %vm2256, %v1685, 0
    %v2684 = vsel %vm2256, %v1695, 0
    %v2687 = vsel %vm2256, %v1705, 0
    %v2690 = vsel %vm2256, %v1715, 0
    %v2693 = vsel %vm2256, %v1725, 0
    %v2696 = vsel %vm2256, %v1735, 0
    %v2699 = vsel %vm2256, %v1745, 0
    %v2702 = vsel %vm2256, %v1755, 0
    %v2705 = vsel %vm2256, %v1765, 0
    %v2708 = vsel %vm2256, %v1775, 0
    %v2711 = vsel %vm2256, %v1785, 0
    %v2714 = vsel %vm2256, %v1795, 0
    %v2717 = vsel %vm2256, %v1805, 0
    %v2720 = vsel %vm2256, %v1815, 0
    %v2723 = vsel %vm2256, %v1825, 0
    %v2726 = vsel %vm2256, %v1835, 0
    %v2729 = vsel %vm2256, %v1845, 0
    %v2732 = vsel %vm2256, %v1855, 0
    %v2735 = vsel %vm2256, %v1865, 0
    %v2738 = vsel %vm2256, %v1875, 0
    %v2741 = vsel %vm2256, %v1885, 0
    %v2744 = vsel %vm2256, %v1895, 0
    %v2747 = vsel %vm2256, %v1905, 0
    %v2750 = vsel %vm2256, %v1915, 0
    %v2753 = vsel %vm2256, %v1925, 0
    %v2756 = vsel %vm2256, %v1935, 0
    %v2759 = vsel %vm2256, %v1945, 0
    %v2762 = vsel %vm2256, %v1955, 0
    %v2765 = vsel %vm2256, %v1965, 0
    %v2768 = vsel %vm2256, %v1975, 0
    %v2771 = vsel %vm2256, %v1985, 0
    %v2774 = vsel %vm2256, %v1995, 0
    %v2777 = vsel %vm2256, %v2005, 0
    %v2780 = vsel %vm2256, %v2015, 0
    %v2783 = vsel %vm2256, %v2025, 0
    %v2786 = vsel %vm2256, %v2035, 0
    %v2789 = vsel %vm2256, %v2045, 0
    %v2792 = vsel %vm2256, %v2055, 0
    %v2795 = vsel %vm2256, %v2065, 0
    %v2798 = vsel %vm2256, %v2075, 0
    %v2801 = vsel %vm2256, %v2085, 0
    %v2804 = vsel %vm2256, %v2095, 0
    %v2807 = vsel %vm2256, %v2105, 0
    %v2810 = vsel %vm2256, %v2115, 0
    %v2813 = vsel %vm2256, %v2125, 0
    %v2816 = vsel %vm2256, %v2135, 0
    %v2819 = vsel %vm2256, %v2145, 0
    %v2822 = vsel %vm2256, %v2155, 0
    %v2825 = vsel %vm2256, %v2165, 0
    %v2828 = vsel %vm2256, %v2175, 0
    %v2831 = vsel %vm2256, %v2185, 0
    %v2834 = vsel %vm2256, %v2195, 0
    %v2837 = vsel %vm2256, %v2205, 0
    %v2840 = vsel %vm2256, %v2215, 0
    %v2843 = vsel %vm2256, %v2225, 0
    %v2846 = vsel %vm2256, %v2235, 0
    %v2849 = vsel %vm2256, %v2245, 0
    %v2852 = vsel %vm2256, %v2255, 0
    %2854 = vmatpush.msra.mxu0 0.0
    %2855 = vmatpush.msra.mxu0 0.0
    %2856 = vmatpush.msra.mxu0 0.0
    %2857 = vmatpush.msra.mxu0 0.0
    %2858 = vmatpush.msra.mxu0 0.0
    %2859 = vmatpush.msra.mxu0 0.0
    %2860 = vmatpush.msra.mxu0 0.0
    %2861 = vmatpush.msra.mxu0 0.0
    %2862 = vmatpush.msra.mxu0 0.0
    %2863 = vmatpush.msra.mxu0 0.0
    %2864 = vmatpush.msra.mxu0 0.0
    %2865 = vmatpush.msra.mxu0 0.0
    %2866 = vmatpush.msra.mxu0 0.0
    %2867 = vmatpush.msra.mxu0 0.0
    %2868 = vmatpush.msra.mxu0 0.0
    %2869 = vmatpush.msra.mxu0 %v2451
    %2870 = vmatmul.f32.gmra.mxu0 %v2663
    %v2871 = vpop.f32.mrf.mxu0
    %v2872 = vadd.f32 0.0, %v2871
    %2873 = vmatmul.f32.gmra.mxu0 %v2666
    %v2874 = vpop.f32.mrf.mxu0
    %v2875 = vadd.f32 0.0, %v2874
    %2876 = vmatmul.f32.gmra.mxu0 %v2669
    %v2877 = vpop.f32.mrf.mxu0
    %v2878 = vadd.f32 0.0, %v2877
    %2879 = vmatmul.f32.gmra.mxu0 %v2672
    %v2880 = vpop.f32.mrf.mxu0
    %v2881 = vadd.f32 0.0, %v2880
    %2882 = vmatmul.f32.gmra.mxu0 %v2675
    %v2883 = vpop.f32.mrf.mxu0
    %v2884 = vadd.f32 0.0, %v2883
    %2885 = vmatmul.f32.gmra.mxu0 %v2678
    %v2886 = vpop.f32.mrf.mxu0
    %v2887 = vadd.f32 0.0, %v2886
    %2888 = vmatmul.f32.gmra.mxu0 %v2681
    %v2889 = vpop.f32.mrf.mxu0
    %v2890 = vadd.f32 0.0, %v2889
    %2891 = vmatmul.f32.gmra.mxu0 %v2684
    %v2892 = vpop.f32.mrf.mxu0
    %v2893 = vadd.f32 0.0, %v2892
    %2894 = vmatmul.f32.gmra.mxu0 %v2687
    %v2895 = vpop.f32.mrf.mxu0
    %v2896 = vadd.f32 0.0, %v2895
    %2897 = vmatmul.f32.gmra.mxu0 %v2690
    %v2898 = vpop.f32.mrf.mxu0
    %v2899 = vadd.f32 0.0, %v2898
    %2900 = vmatmul.f32.gmra.mxu0 %v2693
    %v2901 = vpop.f32.mrf.mxu0
    %v2902 = vadd.f32 0.0, %v2901
    %2903 = vmatmul.f32.gmra.mxu0 %v2696
    %v2904 = vpop.f32.mrf.mxu0
    %v2905 = vadd.f32 0.0, %v2904
    %2906 = vmatmul.f32.gmra.mxu0 %v2699
    %v2907 = vpop.f32.mrf.mxu0
    %v2908 = vadd.f32 0.0, %v2907
    %2909 = vmatmul.f32.gmra.mxu0 %v2702
    %v2910 = vpop.f32.mrf.mxu0
    %v2911 = vadd.f32 0.0, %v2910
    %2912 = vmatmul.f32.gmra.mxu0 %v2705
    %v2913 = vpop.f32.mrf.mxu0
    %v2914 = vadd.f32 0.0, %v2913
    %2915 = vmatmul.f32.gmra.mxu0 %v2708
    %v2916 = vpop.f32.mrf.mxu0
    %v2917 = vadd.f32 0.0, %v2916
    %2918 = vmatmul.f32.gmra.mxu0 %v2711
    %v2919 = vpop.f32.mrf.mxu0
    %v2920 = vadd.f32 0.0, %v2919
    %2921 = vmatmul.f32.gmra.mxu0 %v2714
    %v2922 = vpop.f32.mrf.mxu0
    %v2923 = vadd.f32 0.0, %v2922
    %2924 = vmatmul.f32.gmra.mxu0 %v2717
    %v2925 = vpop.f32.mrf.mxu0
    %v2926 = vadd.f32 0.0, %v2925
    %2927 = vmatmul.f32.gmra.mxu0 %v2720
    %v2928 = vpop.f32.mrf.mxu0
    %v2929 = vadd.f32 0.0, %v2928
    %2930 = vmatmul.f32.gmra.mxu0 %v2723
    %v2931 = vpop.f32.mrf.mxu0
    %v2932 = vadd.f32 0.0, %v2931
    %2933 = vmatmul.f32.gmra.mxu0 %v2726
    %v2934 = vpop.f32.mrf.mxu0
    %v2935 = vadd.f32 0.0, %v2934
    %2936 = vmatmul.f32.gmra.mxu0 %v2729
    %v2937 = vpop.f32.mrf.mxu0
    %v2938 = vadd.f32 0.0, %v2937
    %2939 = vmatmul.f32.gmra.mxu0 %v2732
    %v2940 = vpop.f32.mrf.mxu0
    %v2941 = vadd.f32 0.0, %v2940
    %2942 = vmatmul.f32.gmra.mxu0 %v2735
    %v2943 = vpop.f32.mrf.mxu0
    %v2944 = vadd.f32 0.0, %v2943
    %2945 = vmatmul.f32.gmra.mxu0 %v2738
    %v2946 = vpop.f32.mrf.mxu0
    %v2947 = vadd.f32 0.0, %v2946
    %2948 = vmatmul.f32.gmra.mxu0 %v2741
    %v2949 = vpop.f32.mrf.mxu0
    %v2950 = vadd.f32 0.0, %v2949
    %2951 = vmatmul.f32.gmra.mxu0 %v2744
    %v2952 = vpop.f32.mrf.mxu0
    %v2953 = vadd.f32 0.0, %v2952
    %2954 = vmatmul.f32.gmra.mxu0 %v2747
    %v2955 = vpop.f32.mrf.mxu0
    %v2956 = vadd.f32 0.0, %v2955
    %2957 = vmatmul.f32.gmra.mxu0 %v2750
    %v2958 = vpop.f32.mrf.mxu0
    %v2959 = vadd.f32 0.0, %v2958
    %2960 = vmatmul.f32.gmra.mxu0 %v2753
    %v2961 = vpop.f32.mrf.mxu0
    %v2962 = vadd.f32 0.0, %v2961
    %2963 = vmatmul.f32.gmra.mxu0 %v2756
    %v2964 = vpop.f32.mrf.mxu0
    %v2965 = vadd.f32 0.0, %v2964
    %2966 = vmatmul.f32.gmra.mxu0 %v2759
    %v2967 = vpop.f32.mrf.mxu0
    %v2968 = vadd.f32 0.0, %v2967
    %2969 = vmatmul.f32.gmra.mxu0 %v2762
    %v2970 = vpop.f32.mrf.mxu0
    %v2971 = vadd.f32 0.0, %v2970
    %2972 = vmatmul.f32.gmra.mxu0 %v2765
    %v2973 = vpop.f32.mrf.mxu0
    %v2974 = vadd.f32 0.0, %v2973
    %2975 = vmatmul.f32.gmra.mxu0 %v2768
    %v2976 = vpop.f32.mrf.mxu0
    %v2977 = vadd.f32 0.0, %v2976
    %2978 = vmatmul.f32.gmra.mxu0 %v2771
    %v2979 = vpop.f32.mrf.mxu0
    %v2980 = vadd.f32 0.0, %v2979
    %2981 = vmatmul.f32.gmra.mxu0 %v2774
    %v2982 = vpop.f32.mrf.mxu0
    %v2983 = vadd.f32 0.0, %v2982
    %2984 = vmatmul.f32.gmra.mxu0 %v2777
    %v2985 = vpop.f32.mrf.mxu0
    %v2986 = vadd.f32 0.0, %v2985
    %2987 = vmatmul.f32.gmra.mxu0 %v2780
    %v2988 = vpop.f32.mrf.mxu0
    %v2989 = vadd.f32 0.0, %v2988
    %2990 = vmatmul.f32.gmra.mxu0 %v2783
    %v2991 = vpop.f32.mrf.mxu0
    %v2992 = vadd.f32 0.0, %v2991
    %2993 = vmatmul.f32.gmra.mxu0 %v2786
    %v2994 = vpop.f32.mrf.mxu0
    %v2995 = vadd.f32 0.0, %v2994
    %2996 = vmatmul.f32.gmra.mxu0 %v2789
    %v2997 = vpop.f32.mrf.mxu0
    %v2998 = vadd.f32 0.0, %v2997
    %2999 = vmatmul.f32.gmra.mxu0 %v2792
    %v3000 = vpop.f32.mrf.mxu0
    %v3001 = vadd.f32 0.0, %v3000
    %3002 = vmatmul.f32.gmra.mxu0 %v2795
    %v3003 = vpop.f32.mrf.mxu0
    %v3004 = vadd.f32 0.0, %v3003
    %3005 = vmatmul.f32.gmra.mxu0 %v2798
    %v3006 = vpop.f32.mrf.mxu0
    %v3007 = vadd.f32 0.0, %v3006
    %3008 = vmatmul.f32.gmra.mxu0 %v2801
    %v3009 = vpop.f32.mrf.mxu0
    %v3010 = vadd.f32 0.0, %v3009
    %3011 = vmatmul.f32.gmra.mxu0 %v2804
    %v3012 = vpop.f32.mrf.mxu0
    %v3013 = vadd.f32 0.0, %v3012
    %3014 = vmatmul.f32.gmra.mxu0 %v2807
    %v3015 = vpop.f32.mrf.mxu0
    %v3016 = vadd.f32 0.0, %v3015
    %3017 = vmatmul.f32.gmra.mxu0 %v2810
    %v3018 = vpop.f32.mrf.mxu0
    %v3019 = vadd.f32 0.0, %v3018
    %3020 = vmatmul.f32.gmra.mxu0 %v2813
    %v3021 = vpop.f32.mrf.mxu0
    %v3022 = vadd.f32 0.0, %v3021
    %3023 = vmatmul.f32.gmra.mxu0 %v2816
    %v3024 = vpop.f32.mrf.mxu0
    %v3025 = vadd.f32 0.0, %v3024
    %3026 = vmatmul.f32.gmra.mxu0 %v2819
    %v3027 = vpop.f32.mrf.mxu0
    %v3028 = vadd.f32 0.0, %v3027
    %3029 = vmatmul.f32.gmra.mxu0 %v2822
    %v3030 = vpop.f32.mrf.mxu0
    %v3031 = vadd.f32 0.0, %v3030
    %3032 = vmatmul.f32.gmra.mxu0 %v2825
    %v3033 = vpop.f32.mrf.mxu0
    %v3034 = vadd.f32 0.0, %v3033
    %3035 = vmatmul.f32.gmra.mxu0 %v2828
    %v3036 = vpop.f32.mrf.mxu0
    %v3037 = vadd.f32 0.0, %v3036
    %3038 = vmatmul.f32.gmra.mxu0 %v2831
    %v3039 = vpop.f32.mrf.mxu0
    %v3040 = vadd.f32 0.0, %v3039
    %3041 = vmatmul.f32.gmra.mxu0 %v2834
    %v3042 = vpop.f32.mrf.mxu0
    %v3043 = vadd.f32 0.0, %v3042
    %3044 = vmatmul.f32.gmra.mxu0 %v2837
    %v3045 = vpop.f32.mrf.mxu0
    %v3046 = vadd.f32 0.0, %v3045
    %3047 = vmatmul.f32.gmra.mxu0 %v2840
    %v3048 = vpop.f32.mrf.mxu0
    %v3049 = vadd.f32 0.0, %v3048
    %3050 = vmatmul.f32.gmra.mxu0 %v2843
    %v3051 = vpop.f32.mrf.mxu0
    %v3052 = vadd.f32 0.0, %v3051
    %3053 = vmatmul.f32.gmra.mxu0 %v2846
    %v3054 = vpop.f32.mrf.mxu0
    %v3055 = vadd.f32 0.0, %v3054
    %3056 = vmatmul.f32.gmra.mxu0 %v2849
    %v3057 = vpop.f32.mrf.mxu0
    %v3058 = vadd.f32 0.0, %v3057
    %3059 = vmatmul.f32.gmra.mxu0 %v2852
    %v3060 = vpop.f32.mrf.mxu0
    %v3061 = vadd.f32 0.0, %v3060
    %3062 = vdwg.mxu0
    %v3063 = vsub.f32 %v271, %v2471
    %v3064 = vsub.f32 %v273, %v2474
    %v3065 = vsub.f32 %v276, %v2477
    %v3066 = vsub.f32 %v278, %v2480
    %v3067 = vsub.f32 %v281, %v2483
    %v3068 = vsub.f32 %v283, %v2486
    %v3069 = vsub.f32 %v286, %v2489
    %v3070 = vsub.f32 %v288, %v2492
    %v3071 = vsub.f32 %v291, %v2495
    %v3072 = vsub.f32 %v293, %v2498
    %v3073 = vsub.f32 %v296, %v2501
    %v3074 = vsub.f32 %v298, %v2504
    %v3075 = vsub.f32 %v301, %v2507
    %v3076 = vsub.f32 %v303, %v2510
    %v3077 = vsub.f32 %v306, %v2513
    %v3078 = vsub.f32 %v308, %v2516
    %v3079 = vsub.f32 %v311, %v2519
    %v3080 = vsub.f32 %v313, %v2522
    %v3081 = vsub.f32 %v316, %v2525
    %v3082 = vsub.f32 %v318, %v2528
    %v3083 = vsub.f32 %v321, %v2531
    %v3084 = vsub.f32 %v323, %v2534
    %v3085 = vsub.f32 %v326, %v2537
    %v3086 = vsub.f32 %v328, %v2540
    %v3087 = vsub.f32 %v331, %v2543
    %v3088 = vsub.f32 %v333, %v2546
    %v3089 = vsub.f32 %v336, %v2549
    %v3090 = vsub.f32 %v338, %v2552
    %v3091 = vsub.f32 %v341, %v2555
    %v3092 = vsub.f32 %v343, %v2558
    %v3093 = vsub.f32 %v346, %v2561
    %v3094 = vsub.f32 %v348, %v2564
    %v3095 = vsub.f32 %v351, %v2567
    %v3096 = vsub.f32 %v353, %v2570
    %v3097 = vsub.f32 %v356, %v2573
    %v3098 = vsub.f32 %v358, %v2576
    %v3099 = vsub.f32 %v361, %v2579
    %v3100 = vsub.f32 %v363, %v2582
    %v3101 = vsub.f32 %v366, %v2585
    %v3102 = vsub.f32 %v368, %v2588
    %v3103 = vsub.f32 %v371, %v2591
    %v3104 = vsub.f32 %v373, %v2594
    %v3105 = vsub.f32 %v376, %v2597
    %v3106 = vsub.f32 %v378, %v2600
    %v3107 = vsub.f32 %v381, %v2603
    %v3108 = vsub.f32 %v383, %v2606
    %v3109 = vsub.f32 %v386, %v2609
    %v3110 = vsub.f32 %v388, %v2612
    %v3111 = vsub.f32 %v391, %v2615
    %v3112 = vsub.f32 %v393, %v2618
    %v3113 = vsub.f32 %v396, %v2621
    %v3114 = vsub.f32 %v398, %v2624
    %v3115 = vsub.f32 %v401, %v2627
    %v3116 = vsub.f32 %v403, %v2630
    %v3117 = vsub.f32 %v406, %v2633
    %v3118 = vsub.f32 %v408, %v2636
    %v3119 = vsub.f32 %v411, %v2639
    %v3120 = vsub.f32 %v413, %v2642
    %v3121 = vsub.f32 %v416, %v2645
    %v3122 = vsub.f32 %v418, %v2648
    %v3123 = vsub.f32 %v421, %v2651
    %v3124 = vsub.f32 %v423, %v2654
    %v3125 = vsub.f32 %v426, %v2657
    %v3126 = vsub.f32 %v428, %v2660
    %v3128 = vperm.slane %v130, 0
    %v3130 = vmul.f32 %v2872, %v3128
    %v3131 = vmul.f32 %v2875, %v3128
    %v3132 = vmul.f32 %v2878, %v3128
    %v3133 = vmul.f32 %v2881, %v3128
    %v3134 = vmul.f32 %v2884, %v3128
    %v3135 = vmul.f32 %v2887, %v3128
    %v3136 = vmul.f32 %v2890, %v3128
    %v3137 = vmul.f32 %v2893, %v3128
    %v3138 = vmul.f32 %v2896, %v3128
    %v3139 = vmul.f32 %v2899, %v3128
    %v3140 = vmul.f32 %v2902, %v3128
    %v3141 = vmul.f32 %v2905, %v3128
    %v3142 = vmul.f32 %v2908, %v3128
    %v3143 = vmul.f32 %v2911, %v3128
    %v3144 = vmul.f32 %v2914, %v3128
    %v3145 = vmul.f32 %v2917, %v3128
    %v3146 = vmul.f32 %v2920, %v3128
    %v3147 = vmul.f32 %v2923, %v3128
    %v3148 = vmul.f32 %v2926, %v3128
    %v3149 = vmul.f32 %v2929, %v3128
    %v3150 = vmul.f32 %v2932, %v3128
    %v3151 = vmul.f32 %v2935, %v3128
    %v3152 = vmul.f32 %v2938, %v3128
    %v3153 = vmul.f32 %v2941, %v3128
    %v3154 = vmul.f32 %v2944, %v3128
    %v3155 = vmul.f32 %v2947, %v3128
    %v3156 = vmul.f32 %v2950, %v3128
    %v3157 = vmul.f32 %v2953, %v3128
    %v3158 = vmul.f32 %v2956, %v3128
    %v3159 = vmul.f32 %v2959, %v3128
    %v3160 = vmul.f32 %v2962, %v3128
    %v3161 = vmul.f32 %v2965, %v3128
    %v3162 = vmul.f32 %v2968, %v3128
    %v3163 = vmul.f32 %v2971, %v3128
    %v3164 = vmul.f32 %v2974, %v3128
    %v3165 = vmul.f32 %v2977, %v3128
    %v3166 = vmul.f32 %v2980, %v3128
    %v3167 = vmul.f32 %v2983, %v3128
    %v3168 = vmul.f32 %v2986, %v3128
    %v3169 = vmul.f32 %v2989, %v3128
    %v3170 = vmul.f32 %v2992, %v3128
    %v3171 = vmul.f32 %v2995, %v3128
    %v3172 = vmul.f32 %v2998, %v3128
    %v3173 = vmul.f32 %v3001, %v3128
    %v3174 = vmul.f32 %v3004, %v3128
    %v3175 = vmul.f32 %v3007, %v3128
    %v3176 = vmul.f32 %v3010, %v3128
    %v3177 = vmul.f32 %v3013, %v3128
    %v3178 = vmul.f32 %v3016, %v3128
    %v3179 = vmul.f32 %v3019, %v3128
    %v3180 = vmul.f32 %v3022, %v3128
    %v3181 = vmul.f32 %v3025, %v3128
    %v3182 = vmul.f32 %v3028, %v3128
    %v3183 = vmul.f32 %v3031, %v3128
    %v3184 = vmul.f32 %v3034, %v3128
    %v3185 = vmul.f32 %v3037, %v3128
    %v3186 = vmul.f32 %v3040, %v3128
    %v3187 = vmul.f32 %v3043, %v3128
    %v3188 = vmul.f32 %v3046, %v3128
    %v3189 = vmul.f32 %v3049, %v3128
    %v3190 = vmul.f32 %v3052, %v3128
    %v3191 = vmul.f32 %v3055, %v3128
    %v3192 = vmul.f32 %v3058, %v3128
    %v3193 = vmul.f32 %v3061, %v3128
    %v3194 = vmul.f32 %v3063, %v3130
    %v3195 = vmul.f32 %v3064, %v3131
    %v3196 = vmul.f32 %v3065, %v3132
    %v3197 = vmul.f32 %v3066, %v3133
    %v3198 = vmul.f32 %v3067, %v3134
    %v3199 = vmul.f32 %v3068, %v3135
    %v3200 = vmul.f32 %v3069, %v3136
    %v3201 = vmul.f32 %v3070, %v3137
    %v3202 = vmul.f32 %v3071, %v3138
    %v3203 = vmul.f32 %v3072, %v3139
    %v3204 = vmul.f32 %v3073, %v3140
    %v3205 = vmul.f32 %v3074, %v3141
    %v3206 = vmul.f32 %v3075, %v3142
    %v3207 = vmul.f32 %v3076, %v3143
    %v3208 = vmul.f32 %v3077, %v3144
    %v3209 = vmul.f32 %v3078, %v3145
    %v3210 = vmul.f32 %v3079, %v3146
    %v3211 = vmul.f32 %v3080, %v3147
    %v3212 = vmul.f32 %v3081, %v3148
    %v3213 = vmul.f32 %v3082, %v3149
    %v3214 = vmul.f32 %v3083, %v3150
    %v3215 = vmul.f32 %v3084, %v3151
    %v3216 = vmul.f32 %v3085, %v3152
    %v3217 = vmul.f32 %v3086, %v3153
    %v3218 = vmul.f32 %v3087, %v3154
    %v3219 = vmul.f32 %v3088, %v3155
    %v3220 = vmul.f32 %v3089, %v3156
    %v3221 = vmul.f32 %v3090, %v3157
    %v3222 = vmul.f32 %v3091, %v3158
    %v3223 = vmul.f32 %v3092, %v3159
    %v3224 = vmul.f32 %v3093, %v3160
    %v3225 = vmul.f32 %v3094, %v3161
    %v3226 = vmul.f32 %v3095, %v3162
    %v3227 = vmul.f32 %v3096, %v3163
    %v3228 = vmul.f32 %v3097, %v3164
    %v3229 = vmul.f32 %v3098, %v3165
    %v3230 = vmul.f32 %v3099, %v3166
    %v3231 = vmul.f32 %v3100, %v3167
    %v3232 = vmul.f32 %v3101, %v3168
    %v3233 = vmul.f32 %v3102, %v3169
    %v3234 = vmul.f32 %v3103, %v3170
    %v3235 = vmul.f32 %v3104, %v3171
    %v3236 = vmul.f32 %v3105, %v3172
    %v3237 = vmul.f32 %v3106, %v3173
    %v3238 = vmul.f32 %v3107, %v3174
    %v3239 = vmul.f32 %v3108, %v3175
    %v3240 = vmul.f32 %v3109, %v3176
    %v3241 = vmul.f32 %v3110, %v3177
    %v3242 = vmul.f32 %v3111, %v3178
    %v3243 = vmul.f32 %v3112, %v3179
    %v3244 = vmul.f32 %v3113, %v3180
    %v3245 = vmul.f32 %v3114, %v3181
    %v3246 = vmul.f32 %v3115, %v3182
    %v3247 = vmul.f32 %v3116, %v3183
    %v3248 = vmul.f32 %v3117, %v3184
    %v3249 = vmul.f32 %v3118, %v3185
    %v3250 = vmul.f32 %v3119, %v3186
    %v3251 = vmul.f32 %v3120, %v3187
    %v3252 = vmul.f32 %v3121, %v3188
    %v3253 = vmul.f32 %v3122, %v3189
    %v3254 = vmul.f32 %v3123, %v3190
    %v3255 = vmul.f32 %v3124, %v3191
    %v3256 = vmul.f32 %v3125, %v3192
    %v3257 = vmul.f32 %v3126, %v3193
    %v3259 = vperm.slane %v131, 0
    %v3261 = vadd.f32 %v3194, %v3259
    %v3262 = vadd.f32 %v3195, %v3259
    %v3263 = vadd.f32 %v3196, %v3259
    %v3264 = vadd.f32 %v3197, %v3259
    %v3265 = vadd.f32 %v3198, %v3259
    %v3266 = vadd.f32 %v3199, %v3259
    %v3267 = vadd.f32 %v3200, %v3259
    %v3268 = vadd.f32 %v3201, %v3259
    %v3269 = vadd.f32 %v3202, %v3259
    %v3270 = vadd.f32 %v3203, %v3259
    %v3271 = vadd.f32 %v3204, %v3259
    %v3272 = vadd.f32 %v3205, %v3259
    %v3273 = vadd.f32 %v3206, %v3259
    %v3274 = vadd.f32 %v3207, %v3259
    %v3275 = vadd.f32 %v3208, %v3259
    %v3276 = vadd.f32 %v3209, %v3259
    %v3277 = vadd.f32 %v3210, %v3259
    %v3278 = vadd.f32 %v3211, %v3259
    %v3279 = vadd.f32 %v3212, %v3259
    %v3280 = vadd.f32 %v3213, %v3259
    %v3281 = vadd.f32 %v3214, %v3259
    %v3282 = vadd.f32 %v3215, %v3259
    %v3283 = vadd.f32 %v3216, %v3259
    %v3284 = vadd.f32 %v3217, %v3259
    %v3285 = vadd.f32 %v3218, %v3259
    %v3286 = vadd.f32 %v3219, %v3259
    %v3287 = vadd.f32 %v3220, %v3259
    %v3288 = vadd.f32 %v3221, %v3259
    %v3289 = vadd.f32 %v3222, %v3259
    %v3290 = vadd.f32 %v3223, %v3259
    %v3291 = vadd.f32 %v3224, %v3259
    %v3292 = vadd.f32 %v3225, %v3259
    %v3293 = vadd.f32 %v3226, %v3259
    %v3294 = vadd.f32 %v3227, %v3259
    %v3295 = vadd.f32 %v3228, %v3259
    %v3296 = vadd.f32 %v3229, %v3259
    %v3297 = vadd.f32 %v3230, %v3259
    %v3298 = vadd.f32 %v3231, %v3259
    %v3299 = vadd.f32 %v3232, %v3259
    %v3300 = vadd.f32 %v3233, %v3259
    %v3301 = vadd.f32 %v3234, %v3259
    %v3302 = vadd.f32 %v3235, %v3259
    %v3303 = vadd.f32 %v3236, %v3259
    %v3304 = vadd.f32 %v3237, %v3259
    %v3305 = vadd.f32 %v3238, %v3259
    %v3306 = vadd.f32 %v3239, %v3259
    %v3307 = vadd.f32 %v3240, %v3259
    %v3308 = vadd.f32 %v3241, %v3259
    %v3309 = vadd.f32 %v3242, %v3259
    %v3310 = vadd.f32 %v3243, %v3259
    %v3311 = vadd.f32 %v3244, %v3259
    %v3312 = vadd.f32 %v3245, %v3259
    %v3313 = vadd.f32 %v3246, %v3259
    %v3314 = vadd.f32 %v3247, %v3259
    %v3315 = vadd.f32 %v3248, %v3259
    %v3316 = vadd.f32 %v3249, %v3259
    %v3317 = vadd.f32 %v3250, %v3259
    %v3318 = vadd.f32 %v3251, %v3259
    %v3319 = vadd.f32 %v3252, %v3259
    %v3320 = vadd.f32 %v3253, %v3259
    %v3321 = vadd.f32 %v3254, %v3259
    %v3322 = vadd.f32 %v3255, %v3259
    %v3323 = vadd.f32 %v3256, %v3259
    %v3324 = vadd.f32 %v3257, %v3259
    %3325 = vst.msk [vmem:[#allocation2] sm:$0xff] %vm164, %v3261
    %3326 = vst.msk [vmem:[#allocation2 + $0x8] sm:$0xff] %vm164, %v3262
    %3327 = vst.msk [vmem:[#allocation2 + $0x20] sm:$0xff] %vm164, %v3263
    %3328 = vst.msk [vmem:[#allocation2 + $0x28] sm:$0xff] %vm164, %v3264
    %3329 = vst.msk [vmem:[#allocation2 + $0x40] sm:$0xff] %vm164, %v3265
    %3330 = vst.msk [vmem:[#allocation2 + $0x48] sm:$0xff] %vm164, %v3266
    %3331 = vst.msk [vmem:[#allocation2 + $0x60] sm:$0xff] %vm164, %v3267
    %3332 = vst.msk [vmem:[#allocation2 + $0x68] sm:$0xff] %vm164, %v3268
    %3333 = vst.msk [vmem:[#allocation2 + $0x80] sm:$0xff] %vm164, %v3269
    %3334 = vst.msk [vmem:[#allocation2 + $0x88] sm:$0xff] %vm164, %v3270
    %3335 = vst.msk [vmem:[#allocation2 + $0xa0] sm:$0xff] %vm164, %v3271
    %3336 = vst.msk [vmem:[#allocation2 + $0xa8] sm:$0xff] %vm164, %v3272
    %3337 = vst.msk [vmem:[#allocation2 + $0xc0] sm:$0xff] %vm164, %v3273
    %3338 = vst.msk [vmem:[#allocation2 + $0xc8] sm:$0xff] %vm164, %v3274
    %3339 = vst.msk [vmem:[#allocation2 + $0xe0] sm:$0xff] %vm164, %v3275
    %3340 = vst.msk [vmem:[#allocation2 + $0xe8] sm:$0xff] %vm164, %v3276
    %3341 = vst.msk [vmem:[#allocation2 + $0x100] sm:$0xff] %vm164, %v3277
    %3342 = vst.msk [vmem:[#allocation2 + $0x108] sm:$0xff] %vm164, %v3278
    %3343 = vst.msk [vmem:[#allocation2 + $0x120] sm:$0xff] %vm164, %v3279
    %3344 = vst.msk [vmem:[#allocation2 + $0x128] sm:$0xff] %vm164, %v3280
    %3345 = vst.msk [vmem:[#allocation2 + $0x140] sm:$0xff] %vm164, %v3281
    %3346 = vst.msk [vmem:[#allocation2 + $0x148] sm:$0xff] %vm164, %v3282
    %3347 = vst.msk [vmem:[#allocation2 + $0x160] sm:$0xff] %vm164, %v3283
    %3348 = vst.msk [vmem:[#allocation2 + $0x168] sm:$0xff] %vm164, %v3284
    %3349 = vst.msk [vmem:[#allocation2 + $0x180] sm:$0xff] %vm164, %v3285
    %3350 = vst.msk [vmem:[#allocation2 + $0x188] sm:$0xff] %vm164, %v3286
    %3351 = vst.msk [vmem:[#allocation2 + $0x1a0] sm:$0xff] %vm164, %v3287
    %3352 = vst.msk [vmem:[#allocation2 + $0x1a8] sm:$0xff] %vm164, %v3288
    %3353 = vst.msk [vmem:[#allocation2 + $0x1c0] sm:$0xff] %vm164, %v3289
    %3354 = vst.msk [vmem:[#allocation2 + $0x1c8] sm:$0xff] %vm164, %v3290
    %3355 = vst.msk [vmem:[#allocation2 + $0x1e0] sm:$0xff] %vm164, %v3291
    %3356 = vst.msk [vmem:[#allocation2 + $0x1e8] sm:$0xff] %vm164, %v3292
    %3357 = vst.msk [vmem:[#allocation2 + $0x200] sm:$0xff] %vm164, %v3293
    %3358 = vst.msk [vmem:[#allocation2 + $0x208] sm:$0xff] %vm164, %v3294
    %3359 = vst.msk [vmem:[#allocation2 + $0x220] sm:$0xff] %vm164, %v3295
    %3360 = vst.msk [vmem:[#allocation2 + $0x228] sm:$0xff] %vm164, %v3296
    %3361 = vst.msk [vmem:[#allocation2 + $0x240] sm:$0xff] %vm164, %v3297
    %3362 = vst.msk [vmem:[#allocation2 + $0x248] sm:$0xff] %vm164, %v3298
    %3363 = vst.msk [vmem:[#allocation2 + $0x260] sm:$0xff] %vm164, %v3299
    %3364 = vst.msk [vmem:[#allocation2 + $0x268] sm:$0xff] %vm164, %v3300
    %3365 = vst.msk [vmem:[#allocation2 + $0x280] sm:$0xff] %vm164, %v3301
    %3366 = vst.msk [vmem:[#allocation2 + $0x288] sm:$0xff] %vm164, %v3302
    %3367 = vst.msk [vmem:[#allocation2 + $0x2a0] sm:$0xff] %vm164, %v3303
    %3368 = vst.msk [vmem:[#allocation2 + $0x2a8] sm:$0xff] %vm164, %v3304
    %3369 = vst.msk [vmem:[#allocation2 + $0x2c0] sm:$0xff] %vm164, %v3305
    %3370 = vst.msk [vmem:[#allocation2 + $0x2c8] sm:$0xff] %vm164, %v3306
    %3371 = vst.msk [vmem:[#allocation2 + $0x2e0] sm:$0xff] %vm164, %v3307
    %3372 = vst.msk [vmem:[#allocation2 + $0x2e8] sm:$0xff] %vm164, %v3308
    %3373 = vst.msk [vmem:[#allocation2 + $0x300] sm:$0xff] %vm164, %v3309
    %3374 = vst.msk [vmem:[#allocation2 + $0x308] sm:$0xff] %vm164, %v3310
    %3375 = vst.msk [vmem:[#allocation2 + $0x320] sm:$0xff] %vm164, %v3311
    %3376 = vst.msk [vmem:[#allocation2 + $0x328] sm:$0xff] %vm164, %v3312
    %3377 = vst.msk [vmem:[#allocation2 + $0x340] sm:$0xff] %vm164, %v3313
    %3378 = vst.msk [vmem:[#allocation2 + $0x348] sm:$0xff] %vm164, %v3314
    %3379 = vst.msk [vmem:[#allocation2 + $0x360] sm:$0xff] %vm164, %v3315
    %3380 = vst.msk [vmem:[#allocation2 + $0x368] sm:$0xff] %vm164, %v3316
    %3381 = vst.msk [vmem:[#allocation2 + $0x380] sm:$0xff] %vm164, %v3317
    %3382 = vst.msk [vmem:[#allocation2 + $0x388] sm:$0xff] %vm164, %v3318
    %3383 = vst.msk [vmem:[#allocation2 + $0x3a0] sm:$0xff] %vm164, %v3319
    %3384 = vst.msk [vmem:[#allocation2 + $0x3a8] sm:$0xff] %vm164, %v3320
    %3385 = vst.msk [vmem:[#allocation2 + $0x3c0] sm:$0xff] %vm164, %v3321
    %3386 = vst.msk [vmem:[#allocation2 + $0x3c8] sm:$0xff] %vm164, %v3322
    %3387 = vst.msk [vmem:[#allocation2 + $0x3e0] sm:$0xff] %vm164, %v3323
    %3388 = vst.msk [vmem:[#allocation2 + $0x3e8] sm:$0xff] %vm164, %v3324
    %s3389 = scalar_lea.vmem %s1, 32
    %v3390 = vld [vmem:[%s3389] sm:$0xf]
    %v3391 = vld [vmem:[%s3389 + $0x4] sm:$0xf]
    %v3392 = vld [vmem:[%s3389 + $0x8] sm:$0xf]
    %v3393 = vld [vmem:[%s3389 + $0xc] sm:$0xf]
    %v3394 = vld [vmem:[%s3389 + $0x10] sm:$0xf]
    %v3395 = vld [vmem:[%s3389 + $0x14] sm:$0xf]
    %v3396 = vld [vmem:[%s3389 + $0x18] sm:$0xf]
    %v3397 = vld [vmem:[%s3389 + $0x1c] sm:$0xf]
    %v3406 = vunpack.c.l.b16 %v3390
    %v3407 = vunpack.c.l.b16 %v3391
    %v3408 = vunpack.c.l.b16 %v3392
    %v3409 = vunpack.c.l.b16 %v3393
    %v3410 = vunpack.c.l.b16 %v3394
    %v3411 = vunpack.c.l.b16 %v3395
    %v3412 = vunpack.c.l.b16 %v3396
    %v3413 = vunpack.c.l.b16 %v3397
    %v3414 = vpack.c.b16 %v3407, %v3406
    %v3415 = vpack.c.b16 %v3409, %v3408
    %v3416 = vpack.c.b16 %v3411, %v3410
    %v3417 = vpack.c.b16 %v3413, %v3412
    %3422 = vmatpush.bf16.msra.mxu0 0
    %3423 = vmatpush.bf16.msra.mxu0 0
    %3424 = vmatpush.bf16.msra.mxu0 0
    %3425 = vmatpush.bf16.msra.mxu0 0
    %3426 = vmatpush.bf16.msra.mxu0 %v3417
    %3427 = vmatpush.bf16.msra.mxu0 %v3416
    %3428 = vmatpush.bf16.msra.mxu0 %v3415
    %3429 = vmatpush.bf16.msra.mxu0 %v3414
    %3430 = vmatmul.bf16.gmra.mxu0 %v166
    %v3431 = vpop.f32.mrf.mxu0
    %v3432 = vadd.f32 0.0, %v3431
    %v3433 = vpop.f32.mrf.mxu0
    %v3434 = vadd.f32 0.0, %v3433
    %3435 = vmatmul.bf16.gmra.mxu0 %v169
    %v3436 = vpop.f32.mrf.mxu0
    %v3437 = vadd.f32 0.0, %v3436
    %v3438 = vpop.f32.mrf.mxu0
    %v3439 = vadd.f32 0.0, %v3438
    %3440 = vmatmul.bf16.gmra.mxu0 %v172
    %v3441 = vpop.f32.mrf.mxu0
    %v3442 = vadd.f32 0.0, %v3441
    %v3443 = vpop.f32.mrf.mxu0
    %v3444 = vadd.f32 0.0, %v3443
    %3445 = vmatmul.bf16.gmra.mxu0 %v175
    %v3446 = vpop.f32.mrf.mxu0
    %v3447 = vadd.f32 0.0, %v3446
    %v3448 = vpop.f32.mrf.mxu0
    %v3449 = vadd.f32 0.0, %v3448
    %3450 = vmatmul.bf16.gmra.mxu0 %v178
    %v3451 = vpop.f32.mrf.mxu0
    %v3452 = vadd.f32 0.0, %v3451
    %v3453 = vpop.f32.mrf.mxu0
    %v3454 = vadd.f32 0.0, %v3453
    %3455 = vmatmul.bf16.gmra.mxu0 %v181
    %v3456 = vpop.f32.mrf.mxu0
    %v3457 = vadd.f32 0.0, %v3456
    %v3458 = vpop.f32.mrf.mxu0
    %v3459 = vadd.f32 0.0, %v3458
    %3460 = vmatmul.bf16.gmra.mxu0 %v184
    %v3461 = vpop.f32.mrf.mxu0
    %v3462 = vadd.f32 0.0, %v3461
    %v3463 = vpop.f32.mrf.mxu0
    %v3464 = vadd.f32 0.0, %v3463
    %3465 = vmatmul.bf16.gmra.mxu0 %v187
    %v3466 = vpop.f32.mrf.mxu0
    %v3467 = vadd.f32 0.0, %v3466
    %v3468 = vpop.f32.mrf.mxu0
    %v3469 = vadd.f32 0.0, %v3468
    %3470 = vmatmul.bf16.gmra.mxu0 %v190
    %v3471 = vpop.f32.mrf.mxu0
    %v3472 = vadd.f32 0.0, %v3471
    %v3473 = vpop.f32.mrf.mxu0
    %v3474 = vadd.f32 0.0, %v3473
    %3475 = vmatmul.bf16.gmra.mxu0 %v193
    %v3476 = vpop.f32.mrf.mxu0
    %v3477 = vadd.f32 0.0, %v3476
    %v3478 = vpop.f32.mrf.mxu0
    %v3479 = vadd.f32 0.0, %v3478
    %3480 = vmatmul.bf16.gmra.mxu0 %v196
    %v3481 = vpop.f32.mrf.mxu0
    %v3482 = vadd.f32 0.0, %v3481
    %v3483 = vpop.f32.mrf.mxu0
    %v3484 = vadd.f32 0.0, %v3483
    %3485 = vmatmul.bf16.gmra.mxu0 %v199
    %v3486 = vpop.f32.mrf.mxu0
    %v3487 = vadd.f32 0.0, %v3486
    %v3488 = vpop.f32.mrf.mxu0
    %v3489 = vadd.f32 0.0, %v3488
    %3490 = vmatmul.bf16.gmra.mxu0 %v202
    %v3491 = vpop.f32.mrf.mxu0
    %v3492 = vadd.f32 0.0, %v3491
    %v3493 = vpop.f32.mrf.mxu0
    %v3494 = vadd.f32 0.0, %v3493
    %3495 = vmatmul.bf16.gmra.mxu0 %v205
    %v3496 = vpop.f32.mrf.mxu0
    %v3497 = vadd.f32 0.0, %v3496
    %v3498 = vpop.f32.mrf.mxu0
    %v3499 = vadd.f32 0.0, %v3498
    %3500 = vmatmul.bf16.gmra.mxu0 %v208
    %v3501 = vpop.f32.mrf.mxu0
    %v3502 = vadd.f32 0.0, %v3501
    %v3503 = vpop.f32.mrf.mxu0
    %v3504 = vadd.f32 0.0, %v3503
    %3505 = vmatmul.bf16.gmra.mxu0 %v211
    %v3506 = vpop.f32.mrf.mxu0
    %v3507 = vadd.f32 0.0, %v3506
    %v3508 = vpop.f32.mrf.mxu0
    %v3509 = vadd.f32 0.0, %v3508
    %3510 = vmatmul.bf16.gmra.mxu0 %v214
    %v3511 = vpop.f32.mrf.mxu0
    %v3512 = vadd.f32 0.0, %v3511
    %v3513 = vpop.f32.mrf.mxu0
    %v3514 = vadd.f32 0.0, %v3513
    %3515 = vmatmul.bf16.gmra.mxu0 %v217
    %v3516 = vpop.f32.mrf.mxu0
    %v3517 = vadd.f32 0.0, %v3516
    %v3518 = vpop.f32.mrf.mxu0
    %v3519 = vadd.f32 0.0, %v3518
    %3520 = vmatmul.bf16.gmra.mxu0 %v220
    %v3521 = vpop.f32.mrf.mxu0
    %v3522 = vadd.f32 0.0, %v3521
    %v3523 = vpop.f32.mrf.mxu0
    %v3524 = vadd.f32 0.0, %v3523
    %3525 = vmatmul.bf16.gmra.mxu0 %v223
    %v3526 = vpop.f32.mrf.mxu0
    %v3527 = vadd.f32 0.0, %v3526
    %v3528 = vpop.f32.mrf.mxu0
    %v3529 = vadd.f32 0.0, %v3528
    %3530 = vmatmul.bf16.gmra.mxu0 %v226
    %v3531 = vpop.f32.mrf.mxu0
    %v3532 = vadd.f32 0.0, %v3531
    %v3533 = vpop.f32.mrf.mxu0
    %v3534 = vadd.f32 0.0, %v3533
    %3535 = vmatmul.bf16.gmra.mxu0 %v229
    %v3536 = vpop.f32.mrf.mxu0
    %v3537 = vadd.f32 0.0, %v3536
    %v3538 = vpop.f32.mrf.mxu0
    %v3539 = vadd.f32 0.0, %v3538
    %3540 = vmatmul.bf16.gmra.mxu0 %v232
    %v3541 = vpop.f32.mrf.mxu0
    %v3542 = vadd.f32 0.0, %v3541
    %v3543 = vpop.f32.mrf.mxu0
    %v3544 = vadd.f32 0.0, %v3543
    %3545 = vmatmul.bf16.gmra.mxu0 %v235
    %v3546 = vpop.f32.mrf.mxu0
    %v3547 = vadd.f32 0.0, %v3546
    %v3548 = vpop.f32.mrf.mxu0
    %v3549 = vadd.f32 0.0, %v3548
    %3550 = vmatmul.bf16.gmra.mxu0 %v238
    %v3551 = vpop.f32.mrf.mxu0
    %v3552 = vadd.f32 0.0, %v3551
    %v3553 = vpop.f32.mrf.mxu0
    %v3554 = vadd.f32 0.0, %v3553
    %3555 = vmatmul.bf16.gmra.mxu0 %v241
    %v3556 = vpop.f32.mrf.mxu0
    %v3557 = vadd.f32 0.0, %v3556
    %v3558 = vpop.f32.mrf.mxu0
    %v3559 = vadd.f32 0.0, %v3558
    %3560 = vmatmul.bf16.gmra.mxu0 %v244
    %v3561 = vpop.f32.mrf.mxu0
    %v3562 = vadd.f32 0.0, %v3561
    %v3563 = vpop.f32.mrf.mxu0
    %v3564 = vadd.f32 0.0, %v3563
    %3565 = vmatmul.bf16.gmra.mxu0 %v247
    %v3566 = vpop.f32.mrf.mxu0
    %v3567 = vadd.f32 0.0, %v3566
    %v3568 = vpop.f32.mrf.mxu0
    %v3569 = vadd.f32 0.0, %v3568
    %3570 = vmatmul.bf16.gmra.mxu0 %v250
    %v3571 = vpop.f32.mrf.mxu0
    %v3572 = vadd.f32 0.0, %v3571
    %v3573 = vpop.f32.mrf.mxu0
    %v3574 = vadd.f32 0.0, %v3573
    %3575 = vmatmul.bf16.gmra.mxu0 %v253
    %v3576 = vpop.f32.mrf.mxu0
    %v3577 = vadd.f32 0.0, %v3576
    %v3578 = vpop.f32.mrf.mxu0
    %v3579 = vadd.f32 0.0, %v3578
    %3580 = vmatmul.bf16.gmra.mxu0 %v256
    %v3581 = vpop.f32.mrf.mxu0
    %v3582 = vadd.f32 0.0, %v3581
    %v3583 = vpop.f32.mrf.mxu0
    %v3584 = vadd.f32 0.0, %v3583
    %3585 = vmatmul.bf16.gmra.mxu0 %v259
    %v3586 = vpop.f32.mrf.mxu0
    %v3587 = vadd.f32 0.0, %v3586
    %v3588 = vpop.f32.mrf.mxu0
    %v3589 = vadd.f32 0.0, %v3588
    %3590 = vdwg.mxu0
    %v3592 = vsel %vm164, %v3432, 0
    %v3595 = vsel %vm164, %v3434, 0
    %v3598 = vsel %vm164, %v3437, 0
    %v3601 = vsel %vm164, %v3439, 0
    %v3604 = vsel %vm164, %v3442, 0
    %v3607 = vsel %vm164, %v3444, 0
    %v3610 = vsel %vm164, %v3447, 0
    %v3613 = vsel %vm164, %v3449, 0
    %v3616 = vsel %vm164, %v3452, 0
    %v3619 = vsel %vm164, %v3454, 0
    %v3622 = vsel %vm164, %v3457, 0
    %v3625 = vsel %vm164, %v3459, 0
    %v3628 = vsel %vm164, %v3462, 0
    %v3631 = vsel %vm164, %v3464, 0
    %v3634 = vsel %vm164, %v3467, 0
    %v3637 = vsel %vm164, %v3469, 0
    %v3640 = vsel %vm164, %v3472, 0
    %v3643 = vsel %vm164, %v3474, 0
    %v3646 = vsel %vm164, %v3477, 0
    %v3649 = vsel %vm164, %v3479, 0
    %v3652 = vsel %vm164, %v3482, 0
    %v3655 = vsel %vm164, %v3484, 0
    %v3658 = vsel %vm164, %v3487, 0
    %v3661 = vsel %vm164, %v3489, 0
    %v3664 = vsel %vm164, %v3492, 0
    %v3667 = vsel %vm164, %v3494, 0
    %v3670 = vsel %vm164, %v3497, 0
    %v3673 = vsel %vm164, %v3499, 0
    %v3676 = vsel %vm164, %v3502, 0
    %v3679 = vsel %vm164, %v3504, 0
    %v3682 = vsel %vm164, %v3507, 0
    %v3685 = vsel %vm164, %v3509, 0
    %v3688 = vsel %vm164, %v3512, 0
    %v3691 = vsel %vm164, %v3514, 0
    %v3694 = vsel %vm164, %v3517, 0
    %v3697 = vsel %vm164, %v3519, 0
    %v3700 = vsel %vm164, %v3522, 0
    %v3703 = vsel %vm164, %v3524, 0
    %v3706 = vsel %vm164, %v3527, 0
    %v3709 = vsel %vm164, %v3529, 0
    %v3712 = vsel %vm164, %v3532, 0
    %v3715 = vsel %vm164, %v3534, 0
    %v3718 = vsel %vm164, %v3537, 0
    %v3721 = vsel %vm164, %v3539, 0
    %v3724 = vsel %vm164, %v3542, 0
    %v3727 = vsel %vm164, %v3544, 0
    %v3730 = vsel %vm164, %v3547, 0
    %v3733 = vsel %vm164, %v3549, 0
    %v3736 = vsel %vm164, %v3552, 0
    %v3739 = vsel %vm164, %v3554, 0
    %v3742 = vsel %vm164, %v3557, 0
    %v3745 = vsel %vm164, %v3559, 0
    %v3748 = vsel %vm164, %v3562, 0
    %v3751 = vsel %vm164, %v3564, 0
    %v3754 = vsel %vm164, %v3567, 0
    %v3757 = vsel %vm164, %v3569, 0
    %v3760 = vsel %vm164, %v3572, 0
    %v3763 = vsel %vm164, %v3574, 0
    %v3766 = vsel %vm164, %v3577, 0
    %v3769 = vsel %vm164, %v3579, 0
    %v3772 = vsel %vm164, %v3582, 0
    %v3775 = vsel %vm164, %v3584, 0
    %v3778 = vsel %vm164, %v3587, 0
    %v3781 = vsel %vm164, %v3589, 0
    %3783 = vmatpush.msra.mxu0 0.0
    %3784 = vmatpush.msra.mxu0 0.0
    %3785 = vmatpush.msra.mxu0 0.0
    %3786 = vmatpush.msra.mxu0 0.0
    %3787 = vmatpush.msra.mxu0 0.0
    %3788 = vmatpush.msra.mxu0 0.0
    %3789 = vmatpush.msra.mxu0 0.0
    %3790 = vmatpush.msra.mxu0 0.0
    %3791 = vmatpush.msra.mxu0 %v128
    %3792 = vmatpush.msra.mxu0 %v127
    %3793 = vmatpush.msra.mxu0 %v126
    %3794 = vmatpush.msra.mxu0 %v125
    %3795 = vmatpush.msra.mxu0 %v124
    %3796 = vmatpush.msra.mxu0 %v123
    %3797 = vmatpush.msra.mxu0 %v122
    %3798 = vmatpush.msra.mxu0 %v121
    %3799 = vmatmul.f32.gmra.mxu0 %v3592
    %v3800 = vpop.f32.mrf.mxu0
    %v3801 = vadd.f32 0.0, %v3800
    %3802 = vmatmul.f32.gmra.mxu0 %v3595
    %v3803 = vpop.f32.mrf.mxu0
    %v3804 = vadd.f32 0.0, %v3803
    %3805 = vmatmul.f32.gmra.mxu0 %v3598
    %v3806 = vpop.f32.mrf.mxu0
    %v3807 = vadd.f32 0.0, %v3806
    %3808 = vmatmul.f32.gmra.mxu0 %v3601
    %v3809 = vpop.f32.mrf.mxu0
    %v3810 = vadd.f32 0.0, %v3809
    %3811 = vmatmul.f32.gmra.mxu0 %v3604
    %v3812 = vpop.f32.mrf.mxu0
    %v3813 = vadd.f32 0.0, %v3812
    %3814 = vmatmul.f32.gmra.mxu0 %v3607
    %v3815 = vpop.f32.mrf.mxu0
    %v3816 = vadd.f32 0.0, %v3815
    %3817 = vmatmul.f32.gmra.mxu0 %v3610
    %v3818 = vpop.f32.mrf.mxu0
    %v3819 = vadd.f32 0.0, %v3818
    %3820 = vmatmul.f32.gmra.mxu0 %v3613
    %v3821 = vpop.f32.mrf.mxu0
    %v3822 = vadd.f32 0.0, %v3821
    %3823 = vmatmul.f32.gmra.mxu0 %v3616
    %v3824 = vpop.f32.mrf.mxu0
    %v3825 = vadd.f32 0.0, %v3824
    %3826 = vmatmul.f32.gmra.mxu0 %v3619
    %v3827 = vpop.f32.mrf.mxu0
    %v3828 = vadd.f32 0.0, %v3827
    %3829 = vmatmul.f32.gmra.mxu0 %v3622
    %v3830 = vpop.f32.mrf.mxu0
    %v3831 = vadd.f32 0.0, %v3830
    %3832 = vmatmul.f32.gmra.mxu0 %v3625
    %v3833 = vpop.f32.mrf.mxu0
    %v3834 = vadd.f32 0.0, %v3833
    %3835 = vmatmul.f32.gmra.mxu0 %v3628
    %v3836 = vpop.f32.mrf.mxu0
    %v3837 = vadd.f32 0.0, %v3836
    %3838 = vmatmul.f32.gmra.mxu0 %v3631
    %v3839 = vpop.f32.mrf.mxu0
    %v3840 = vadd.f32 0.0, %v3839
    %3841 = vmatmul.f32.gmra.mxu0 %v3634
    %v3842 = vpop.f32.mrf.mxu0
    %v3843 = vadd.f32 0.0, %v3842
    %3844 = vmatmul.f32.gmra.mxu0 %v3637
    %v3845 = vpop.f32.mrf.mxu0
    %v3846 = vadd.f32 0.0, %v3845
    %3847 = vmatmul.f32.gmra.mxu0 %v3640
    %v3848 = vpop.f32.mrf.mxu0
    %v3849 = vadd.f32 0.0, %v3848
    %3850 = vmatmul.f32.gmra.mxu0 %v3643
    %v3851 = vpop.f32.mrf.mxu0
    %v3852 = vadd.f32 0.0, %v3851
    %3853 = vmatmul.f32.gmra.mxu0 %v3646
    %v3854 = vpop.f32.mrf.mxu0
    %v3855 = vadd.f32 0.0, %v3854
    %3856 = vmatmul.f32.gmra.mxu0 %v3649
    %v3857 = vpop.f32.mrf.mxu0
    %v3858 = vadd.f32 0.0, %v3857
    %3859 = vmatmul.f32.gmra.mxu0 %v3652
    %v3860 = vpop.f32.mrf.mxu0
    %v3861 = vadd.f32 0.0, %v3860
    %3862 = vmatmul.f32.gmra.mxu0 %v3655
    %v3863 = vpop.f32.mrf.mxu0
    %v3864 = vadd.f32 0.0, %v3863
    %3865 = vmatmul.f32.gmra.mxu0 %v3658
    %v3866 = vpop.f32.mrf.mxu0
    %v3867 = vadd.f32 0.0, %v3866
    %3868 = vmatmul.f32.gmra.mxu0 %v3661
    %v3869 = vpop.f32.mrf.mxu0
    %v3870 = vadd.f32 0.0, %v3869
    %3871 = vmatmul.f32.gmra.mxu0 %v3664
    %v3872 = vpop.f32.mrf.mxu0
    %v3873 = vadd.f32 0.0, %v3872
    %3874 = vmatmul.f32.gmra.mxu0 %v3667
    %v3875 = vpop.f32.mrf.mxu0
    %v3876 = vadd.f32 0.0, %v3875
    %3877 = vmatmul.f32.gmra.mxu0 %v3670
    %v3878 = vpop.f32.mrf.mxu0
    %v3879 = vadd.f32 0.0, %v3878
    %3880 = vmatmul.f32.gmra.mxu0 %v3673
    %v3881 = vpop.f32.mrf.mxu0
    %v3882 = vadd.f32 0.0, %v3881
    %3883 = vmatmul.f32.gmra.mxu0 %v3676
    %v3884 = vpop.f32.mrf.mxu0
    %v3885 = vadd.f32 0.0, %v3884
    %3886 = vmatmul.f32.gmra.mxu0 %v3679
    %v3887 = vpop.f32.mrf.mxu0
    %v3888 = vadd.f32 0.0, %v3887
    %3889 = vmatmul.f32.gmra.mxu0 %v3682
    %v3890 = vpop.f32.mrf.mxu0
    %v3891 = vadd.f32 0.0, %v3890
    %3892 = vmatmul.f32.gmra.mxu0 %v3685
    %v3893 = vpop.f32.mrf.mxu0
    %v3894 = vadd.f32 0.0, %v3893
    %3895 = vmatmul.f32.gmra.mxu0 %v3688
    %v3896 = vpop.f32.mrf.mxu0
    %v3897 = vadd.f32 0.0, %v3896
    %3898 = vmatmul.f32.gmra.mxu0 %v3691
    %v3899 = vpop.f32.mrf.mxu0
    %v3900 = vadd.f32 0.0, %v3899
    %3901 = vmatmul.f32.gmra.mxu0 %v3694
    %v3902 = vpop.f32.mrf.mxu0
    %v3903 = vadd.f32 0.0, %v3902
    %3904 = vmatmul.f32.gmra.mxu0 %v3697
    %v3905 = vpop.f32.mrf.mxu0
    %v3906 = vadd.f32 0.0, %v3905
    %3907 = vmatmul.f32.gmra.mxu0 %v3700
    %v3908 = vpop.f32.mrf.mxu0
    %v3909 = vadd.f32 0.0, %v3908
    %3910 = vmatmul.f32.gmra.mxu0 %v3703
    %v3911 = vpop.f32.mrf.mxu0
    %v3912 = vadd.f32 0.0, %v3911
    %3913 = vmatmul.f32.gmra.mxu0 %v3706
    %v3914 = vpop.f32.mrf.mxu0
    %v3915 = vadd.f32 0.0, %v3914
    %3916 = vmatmul.f32.gmra.mxu0 %v3709
    %v3917 = vpop.f32.mrf.mxu0
    %v3918 = vadd.f32 0.0, %v3917
    %3919 = vmatmul.f32.gmra.mxu0 %v3712
    %v3920 = vpop.f32.mrf.mxu0
    %v3921 = vadd.f32 0.0, %v3920
    %3922 = vmatmul.f32.gmra.mxu0 %v3715
    %v3923 = vpop.f32.mrf.mxu0
    %v3924 = vadd.f32 0.0, %v3923
    %3925 = vmatmul.f32.gmra.mxu0 %v3718
    %v3926 = vpop.f32.mrf.mxu0
    %v3927 = vadd.f32 0.0, %v3926
    %3928 = vmatmul.f32.gmra.mxu0 %v3721
    %v3929 = vpop.f32.mrf.mxu0
    %v3930 = vadd.f32 0.0, %v3929
    %3931 = vmatmul.f32.gmra.mxu0 %v3724
    %v3932 = vpop.f32.mrf.mxu0
    %v3933 = vadd.f32 0.0, %v3932
    %3934 = vmatmul.f32.gmra.mxu0 %v3727
    %v3935 = vpop.f32.mrf.mxu0
    %v3936 = vadd.f32 0.0, %v3935
    %3937 = vmatmul.f32.gmra.mxu0 %v3730
    %v3938 = vpop.f32.mrf.mxu0
    %v3939 = vadd.f32 0.0, %v3938
    %3940 = vmatmul.f32.gmra.mxu0 %v3733
    %v3941 = vpop.f32.mrf.mxu0
    %v3942 = vadd.f32 0.0, %v3941
    %3943 = vmatmul.f32.gmra.mxu0 %v3736
    %v3944 = vpop.f32.mrf.mxu0
    %v3945 = vadd.f32 0.0, %v3944
    %3946 = vmatmul.f32.gmra.mxu0 %v3739
    %v3947 = vpop.f32.mrf.mxu0
    %v3948 = vadd.f32 0.0, %v3947
    %3949 = vmatmul.f32.gmra.mxu0 %v3742
    %v3950 = vpop.f32.mrf.mxu0
    %v3951 = vadd.f32 0.0, %v3950
    %3952 = vmatmul.f32.gmra.mxu0 %v3745
    %v3953 = vpop.f32.mrf.mxu0
    %v3954 = vadd.f32 0.0, %v3953
    %3955 = vmatmul.f32.gmra.mxu0 %v3748
    %v3956 = vpop.f32.mrf.mxu0
    %v3957 = vadd.f32 0.0, %v3956
    %3958 = vmatmul.f32.gmra.mxu0 %v3751
    %v3959 = vpop.f32.mrf.mxu0
    %v3960 = vadd.f32 0.0, %v3959
    %3961 = vmatmul.f32.gmra.mxu0 %v3754
    %v3962 = vpop.f32.mrf.mxu0
    %v3963 = vadd.f32 0.0, %v3962
    %3964 = vmatmul.f32.gmra.mxu0 %v3757
    %v3965 = vpop.f32.mrf.mxu0
    %v3966 = vadd.f32 0.0, %v3965
    %3967 = vmatmul.f32.gmra.mxu0 %v3760
    %v3968 = vpop.f32.mrf.mxu0
    %v3969 = vadd.f32 0.0, %v3968
    %3970 = vmatmul.f32.gmra.mxu0 %v3763
    %v3971 = vpop.f32.mrf.mxu0
    %v3972 = vadd.f32 0.0, %v3971
    %3973 = vmatmul.f32.gmra.mxu0 %v3766
    %v3974 = vpop.f32.mrf.mxu0
    %v3975 = vadd.f32 0.0, %v3974
    %3976 = vmatmul.f32.gmra.mxu0 %v3769
    %v3977 = vpop.f32.mrf.mxu0
    %v3978 = vadd.f32 0.0, %v3977
    %3979 = vmatmul.f32.gmra.mxu0 %v3772
    %v3980 = vpop.f32.mrf.mxu0
    %v3981 = vadd.f32 0.0, %v3980
    %3982 = vmatmul.f32.gmra.mxu0 %v3775
    %v3983 = vpop.f32.mrf.mxu0
    %v3984 = vadd.f32 0.0, %v3983
    %3985 = vmatmul.f32.gmra.mxu0 %v3778
    %v3986 = vpop.f32.mrf.mxu0
    %v3987 = vadd.f32 0.0, %v3986
    %3988 = vmatmul.f32.gmra.mxu0 %v3781
    %v3989 = vpop.f32.mrf.mxu0
    %v3990 = vadd.f32 0.0, %v3989
    %3991 = vdwg.mxu0
    %v3992 = vmul.f32 %v3801, 0.03125
    %v3993 = vmul.f32 %v3804, 0.03125
    %v3994 = vmul.f32 %v3807, 0.03125
    %v3995 = vmul.f32 %v3810, 0.03125
    %v3996 = vmul.f32 %v3813, 0.03125
    %v3997 = vmul.f32 %v3816, 0.03125
    %v3998 = vmul.f32 %v3819, 0.03125
    %v3999 = vmul.f32 %v3822, 0.03125
    %v4000 = vmul.f32 %v3825, 0.03125
    %v4001 = vmul.f32 %v3828, 0.03125
    %v4002 = vmul.f32 %v3831, 0.03125
    %v4003 = vmul.f32 %v3834, 0.03125
    %v4004 = vmul.f32 %v3837, 0.03125
    %v4005 = vmul.f32 %v3840, 0.03125
    %v4006 = vmul.f32 %v3843, 0.03125
    %v4007 = vmul.f32 %v3846, 0.03125
    %v4008 = vmul.f32 %v3849, 0.03125
    %v4009 = vmul.f32 %v3852, 0.03125
    %v4010 = vmul.f32 %v3855, 0.03125
    %v4011 = vmul.f32 %v3858, 0.03125
    %v4012 = vmul.f32 %v3861, 0.03125
    %v4013 = vmul.f32 %v3864, 0.03125
    %v4014 = vmul.f32 %v3867, 0.03125
    %v4015 = vmul.f32 %v3870, 0.03125
    %v4016 = vmul.f32 %v3873, 0.03125
    %v4017 = vmul.f32 %v3876, 0.03125
    %v4018 = vmul.f32 %v3879, 0.03125
    %v4019 = vmul.f32 %v3882, 0.03125
    %v4020 = vmul.f32 %v3885, 0.03125
    %v4021 = vmul.f32 %v3888, 0.03125
    %v4022 = vmul.f32 %v3891, 0.03125
    %v4023 = vmul.f32 %v3894, 0.03125
    %v4024 = vmul.f32 %v3897, 0.03125
    %v4025 = vmul.f32 %v3900, 0.03125
    %v4026 = vmul.f32 %v3903, 0.03125
    %v4027 = vmul.f32 %v3906, 0.03125
    %v4028 = vmul.f32 %v3909, 0.03125
    %v4029 = vmul.f32 %v3912, 0.03125
    %v4030 = vmul.f32 %v3915, 0.03125
    %v4031 = vmul.f32 %v3918, 0.03125
    %v4032 = vmul.f32 %v3921, 0.03125
    %v4033 = vmul.f32 %v3924, 0.03125
    %v4034 = vmul.f32 %v3927, 0.03125
    %v4035 = vmul.f32 %v3930, 0.03125
    %v4036 = vmul.f32 %v3933, 0.03125
    %v4037 = vmul.f32 %v3936, 0.03125
    %v4038 = vmul.f32 %v3939, 0.03125
    %v4039 = vmul.f32 %v3942, 0.03125
    %v4040 = vmul.f32 %v3945, 0.03125
    %v4041 = vmul.f32 %v3948, 0.03125
    %v4042 = vmul.f32 %v3951, 0.03125
    %v4043 = vmul.f32 %v3954, 0.03125
    %v4044 = vmul.f32 %v3957, 0.03125
    %v4045 = vmul.f32 %v3960, 0.03125
    %v4046 = vmul.f32 %v3963, 0.03125
    %v4047 = vmul.f32 %v3966, 0.03125
    %v4048 = vmul.f32 %v3969, 0.03125
    %v4049 = vmul.f32 %v3972, 0.03125
    %v4050 = vmul.f32 %v3975, 0.03125
    %v4051 = vmul.f32 %v3978, 0.03125
    %v4052 = vmul.f32 %v3981, 0.03125
    %v4053 = vmul.f32 %v3984, 0.03125
    %v4054 = vmul.f32 %v3987, 0.03125
    %v4055 = vmul.f32 %v3990, 0.03125
    %v4056 = vmul.f32 %v3432, %v3432
    %v4057 = vmul.f32 %v3434, %v3434
    %v4058 = vmul.f32 %v3437, %v3437
    %v4059 = vmul.f32 %v3439, %v3439
    %v4060 = vmul.f32 %v3442, %v3442
    %v4061 = vmul.f32 %v3444, %v3444
    %v4062 = vmul.f32 %v3447, %v3447
    %v4063 = vmul.f32 %v3449, %v3449
    %v4064 = vmul.f32 %v3452, %v3452
    %v4065 = vmul.f32 %v3454, %v3454
    %v4066 = vmul.f32 %v3457, %v3457
    %v4067 = vmul.f32 %v3459, %v3459
    %v4068 = vmul.f32 %v3462, %v3462
    %v4069 = vmul.f32 %v3464, %v3464
    %v4070 = vmul.f32 %v3467, %v3467
    %v4071 = vmul.f32 %v3469, %v3469
    %v4072 = vmul.f32 %v3472, %v3472
    %v4073 = vmul.f32 %v3474, %v3474
    %v4074 = vmul.f32 %v3477, %v3477
    %v4075 = vmul.f32 %v3479, %v3479
    %v4076 = vmul.f32 %v3482, %v3482
    %v4077 = vmul.f32 %v3484, %v3484
    %v4078 = vmul.f32 %v3487, %v3487
    %v4079 = vmul.f32 %v3489, %v3489
    %v4080 = vmul.f32 %v3492, %v3492
    %v4081 = vmul.f32 %v3494, %v3494
    %v4082 = vmul.f32 %v3497, %v3497
    %v4083 = vmul.f32 %v3499, %v3499
    %v4084 = vmul.f32 %v3502, %v3502
    %v4085 = vmul.f32 %v3504, %v3504
    %v4086 = vmul.f32 %v3507, %v3507
    %v4087 = vmul.f32 %v3509, %v3509
    %v4088 = vmul.f32 %v3512, %v3512
    %v4089 = vmul.f32 %v3514, %v3514
    %v4090 = vmul.f32 %v3517, %v3517
    %v4091 = vmul.f32 %v3519, %v3519
    %v4092 = vmul.f32 %v3522, %v3522
    %v4093 = vmul.f32 %v3524, %v3524
    %v4094 = vmul.f32 %v3527, %v3527
    %v4095 = vmul.f32 %v3529, %v3529
    %v4096 = vmul.f32 %v3532, %v3532
    %v4097 = vmul.f32 %v3534, %v3534
    %v4098 = vmul.f32 %v3537, %v3537
    %v4099 = vmul.f32 %v3539, %v3539
    %v4100 = vmul.f32 %v3542, %v3542
    %v4101 = vmul.f32 %v3544, %v3544
    %v4102 = vmul.f32 %v3547, %v3547
    %v4103 = vmul.f32 %v3549, %v3549
    %v4104 = vmul.f32 %v3552, %v3552
    %v4105 = vmul.f32 %v3554, %v3554
    %v4106 = vmul.f32 %v3557, %v3557
    %v4107 = vmul.f32 %v3559, %v3559
    %v4108 = vmul.f32 %v3562, %v3562
    %v4109 = vmul.f32 %v3564, %v3564
    %v4110 = vmul.f32 %v3567, %v3567
    %v4111 = vmul.f32 %v3569, %v3569
    %v4112 = vmul.f32 %v3572, %v3572
    %v4113 = vmul.f32 %v3574, %v3574
    %v4114 = vmul.f32 %v3577, %v3577
    %v4115 = vmul.f32 %v3579, %v3579
    %v4116 = vmul.f32 %v3582, %v3582
    %v4117 = vmul.f32 %v3584, %v3584
    %v4118 = vmul.f32 %v3587, %v3587
    %v4119 = vmul.f32 %v3589, %v3589
    %v4121 = vsel %vm164, %v4056, 0
    %v4124 = vsel %vm164, %v4057, 0
    %v4127 = vsel %vm164, %v4058, 0
    %v4130 = vsel %vm164, %v4059, 0
    %v4133 = vsel %vm164, %v4060, 0
    %v4136 = vsel %vm164, %v4061, 0
    %v4139 = vsel %vm164, %v4062, 0
    %v4142 = vsel %vm164, %v4063, 0
    %v4145 = vsel %vm164, %v4064, 0
    %v4148 = vsel %vm164, %v4065, 0
    %v4151 = vsel %vm164, %v4066, 0
    %v4154 = vsel %vm164, %v4067, 0
    %v4157 = vsel %vm164, %v4068, 0
    %v4160 = vsel %vm164, %v4069, 0
    %v4163 = vsel %vm164, %v4070, 0
    %v4166 = vsel %vm164, %v4071, 0
    %v4169 = vsel %vm164, %v4072, 0
    %v4172 = vsel %vm164, %v4073, 0
    %v4175 = vsel %vm164, %v4074, 0
    %v4178 = vsel %vm164, %v4075, 0
    %v4181 = vsel %vm164, %v4076, 0
    %v4184 = vsel %vm164, %v4077, 0
    %v4187 = vsel %vm164, %v4078, 0
    %v4190 = vsel %vm164, %v4079, 0
    %v4193 = vsel %vm164, %v4080, 0
    %v4196 = vsel %vm164, %v4081, 0
    %v4199 = vsel %vm164, %v4082, 0
    %v4202 = vsel %vm164, %v4083, 0
    %v4205 = vsel %vm164, %v4084, 0
    %v4208 = vsel %vm164, %v4085, 0
    %v4211 = vsel %vm164, %v4086, 0
    %v4214 = vsel %vm164, %v4087, 0
    %v4217 = vsel %vm164, %v4088, 0
    %v4220 = vsel %vm164, %v4089, 0
    %v4223 = vsel %vm164, %v4090, 0
    %v4226 = vsel %vm164, %v4091, 0
    %v4229 = vsel %vm164, %v4092, 0
    %v4232 = vsel %vm164, %v4093, 0
    %v4235 = vsel %vm164, %v4094, 0
    %v4238 = vsel %vm164, %v4095, 0
    %v4241 = vsel %vm164, %v4096, 0
    %v4244 = vsel %vm164, %v4097, 0
    %v4247 = vsel %vm164, %v4098, 0
    %v4250 = vsel %vm164, %v4099, 0
    %v4253 = vsel %vm164, %v4100, 0
    %v4256 = vsel %vm164, %v4101, 0
    %v4259 = vsel %vm164, %v4102, 0
    %v4262 = vsel %vm164, %v4103, 0
    %v4265 = vsel %vm164, %v4104, 0
    %v4268 = vsel %vm164, %v4105, 0
    %v4271 = vsel %vm164, %v4106, 0
    %v4274 = vsel %vm164, %v4107, 0
    %v4277 = vsel %vm164, %v4108, 0
    %v4280 = vsel %vm164, %v4109, 0
    %v4283 = vsel %vm164, %v4110, 0
    %v4286 = vsel %vm164, %v4111, 0
    %v4289 = vsel %vm164, %v4112, 0
    %v4292 = vsel %vm164, %v4113, 0
    %v4295 = vsel %vm164, %v4114, 0
    %v4298 = vsel %vm164, %v4115, 0
    %v4301 = vsel %vm164, %v4116, 0
    %v4304 = vsel %vm164, %v4117, 0
    %v4307 = vsel %vm164, %v4118, 0
    %v4310 = vsel %vm164, %v4119, 0
    %4312 = vmatpush.msra.mxu0 0.0
    %4313 = vmatpush.msra.mxu0 0.0
    %4314 = vmatpush.msra.mxu0 0.0
    %4315 = vmatpush.msra.mxu0 0.0
    %4316 = vmatpush.msra.mxu0 0.0
    %4317 = vmatpush.msra.mxu0 0.0
    %4318 = vmatpush.msra.mxu0 0.0
    %4319 = vmatpush.msra.mxu0 0.0
    %4320 = vmatpush.msra.mxu0 %v128
    %4321 = vmatpush.msra.mxu0 %v127
    %4322 = vmatpush.msra.mxu0 %v126
    %4323 = vmatpush.msra.mxu0 %v125
    %4324 = vmatpush.msra.mxu0 %v124
    %4325 = vmatpush.msra.mxu0 %v123
    %4326 = vmatpush.msra.mxu0 %v122
    %4327 = vmatpush.msra.mxu0 %v121
    %4328 = vmatmul.f32.gmra.mxu0 %v4121
    %v4329 = vpop.f32.mrf.mxu0
    %v4330 = vadd.f32 0.0, %v4329
    %4331 = vmatmul.f32.gmra.mxu0 %v4124
    %v4332 = vpop.f32.mrf.mxu0
    %v4333 = vadd.f32 0.0, %v4332
    %4334 = vmatmul.f32.gmra.mxu0 %v4127
    %v4335 = vpop.f32.mrf.mxu0
    %v4336 = vadd.f32 0.0, %v4335
    %4337 = vmatmul.f32.gmra.mxu0 %v4130
    %v4338 = vpop.f32.mrf.mxu0
    %v4339 = vadd.f32 0.0, %v4338
    %4340 = vmatmul.f32.gmra.mxu0 %v4133
    %v4341 = vpop.f32.mrf.mxu0
    %v4342 = vadd.f32 0.0, %v4341
    %4343 = vmatmul.f32.gmra.mxu0 %v4136
    %v4344 = vpop.f32.mrf.mxu0
    %v4345 = vadd.f32 0.0, %v4344
    %4346 = vmatmul.f32.gmra.mxu0 %v4139
    %v4347 = vpop.f32.mrf.mxu0
    %v4348 = vadd.f32 0.0, %v4347
    %4349 = vmatmul.f32.gmra.mxu0 %v4142
    %v4350 = vpop.f32.mrf.mxu0
    %v4351 = vadd.f32 0.0, %v4350
    %4352 = vmatmul.f32.gmra.mxu0 %v4145
    %v4353 = vpop.f32.mrf.mxu0
    %v4354 = vadd.f32 0.0, %v4353
    %4355 = vmatmul.f32.gmra.mxu0 %v4148
    %v4356 = vpop.f32.mrf.mxu0
    %v4357 = vadd.f32 0.0, %v4356
    %4358 = vmatmul.f32.gmra.mxu0 %v4151
    %v4359 = vpop.f32.mrf.mxu0
    %v4360 = vadd.f32 0.0, %v4359
    %4361 = vmatmul.f32.gmra.mxu0 %v4154
    %v4362 = vpop.f32.mrf.mxu0
    %v4363 = vadd.f32 0.0, %v4362
    %4364 = vmatmul.f32.gmra.mxu0 %v4157
    %v4365 = vpop.f32.mrf.mxu0
    %v4366 = vadd.f32 0.0, %v4365
    %4367 = vmatmul.f32.gmra.mxu0 %v4160
    %v4368 = vpop.f32.mrf.mxu0
    %v4369 = vadd.f32 0.0, %v4368
    %4370 = vmatmul.f32.gmra.mxu0 %v4163
    %v4371 = vpop.f32.mrf.mxu0
    %v4372 = vadd.f32 0.0, %v4371
    %4373 = vmatmul.f32.gmra.mxu0 %v4166
    %v4374 = vpop.f32.mrf.mxu0
    %v4375 = vadd.f32 0.0, %v4374
    %4376 = vmatmul.f32.gmra.mxu0 %v4169
    %v4377 = vpop.f32.mrf.mxu0
    %v4378 = vadd.f32 0.0, %v4377
    %4379 = vmatmul.f32.gmra.mxu0 %v4172
    %v4380 = vpop.f32.mrf.mxu0
    %v4381 = vadd.f32 0.0, %v4380
    %4382 = vmatmul.f32.gmra.mxu0 %v4175
    %v4383 = vpop.f32.mrf.mxu0
    %v4384 = vadd.f32 0.0, %v4383
    %4385 = vmatmul.f32.gmra.mxu0 %v4178
    %v4386 = vpop.f32.mrf.mxu0
    %v4387 = vadd.f32 0.0, %v4386
    %4388 = vmatmul.f32.gmra.mxu0 %v4181
    %v4389 = vpop.f32.mrf.mxu0
    %v4390 = vadd.f32 0.0, %v4389
    %4391 = vmatmul.f32.gmra.mxu0 %v4184
    %v4392 = vpop.f32.mrf.mxu0
    %v4393 = vadd.f32 0.0, %v4392
    %4394 = vmatmul.f32.gmra.mxu0 %v4187
    %v4395 = vpop.f32.mrf.mxu0
    %v4396 = vadd.f32 0.0, %v4395
    %4397 = vmatmul.f32.gmra.mxu0 %v4190
    %v4398 = vpop.f32.mrf.mxu0
    %v4399 = vadd.f32 0.0, %v4398
    %4400 = vmatmul.f32.gmra.mxu0 %v4193
    %v4401 = vpop.f32.mrf.mxu0
    %v4402 = vadd.f32 0.0, %v4401
    %4403 = vmatmul.f32.gmra.mxu0 %v4196
    %v4404 = vpop.f32.mrf.mxu0
    %v4405 = vadd.f32 0.0, %v4404
    %4406 = vmatmul.f32.gmra.mxu0 %v4199
    %v4407 = vpop.f32.mrf.mxu0
    %v4408 = vadd.f32 0.0, %v4407
    %4409 = vmatmul.f32.gmra.mxu0 %v4202
    %v4410 = vpop.f32.mrf.mxu0
    %v4411 = vadd.f32 0.0, %v4410
    %4412 = vmatmul.f32.gmra.mxu0 %v4205
    %v4413 = vpop.f32.mrf.mxu0
    %v4414 = vadd.f32 0.0, %v4413
    %4415 = vmatmul.f32.gmra.mxu0 %v4208
    %v4416 = vpop.f32.mrf.mxu0
    %v4417 = vadd.f32 0.0, %v4416
    %4418 = vmatmul.f32.gmra.mxu0 %v4211
    %v4419 = vpop.f32.mrf.mxu0
    %v4420 = vadd.f32 0.0, %v4419
    %4421 = vmatmul.f32.gmra.mxu0 %v4214
    %v4422 = vpop.f32.mrf.mxu0
    %v4423 = vadd.f32 0.0, %v4422
    %4424 = vmatmul.f32.gmra.mxu0 %v4217
    %v4425 = vpop.f32.mrf.mxu0
    %v4426 = vadd.f32 0.0, %v4425
    %4427 = vmatmul.f32.gmra.mxu0 %v4220
    %v4428 = vpop.f32.mrf.mxu0
    %v4429 = vadd.f32 0.0, %v4428
    %4430 = vmatmul.f32.gmra.mxu0 %v4223
    %v4431 = vpop.f32.mrf.mxu0
    %v4432 = vadd.f32 0.0, %v4431
    %4433 = vmatmul.f32.gmra.mxu0 %v4226
    %v4434 = vpop.f32.mrf.mxu0
    %v4435 = vadd.f32 0.0, %v4434
    %4436 = vmatmul.f32.gmra.mxu0 %v4229
    %v4437 = vpop.f32.mrf.mxu0
    %v4438 = vadd.f32 0.0, %v4437
    %4439 = vmatmul.f32.gmra.mxu0 %v4232
    %v4440 = vpop.f32.mrf.mxu0
    %v4441 = vadd.f32 0.0, %v4440
    %4442 = vmatmul.f32.gmra.mxu0 %v4235
    %v4443 = vpop.f32.mrf.mxu0
    %v4444 = vadd.f32 0.0, %v4443
    %4445 = vmatmul.f32.gmra.mxu0 %v4238
    %v4446 = vpop.f32.mrf.mxu0
    %v4447 = vadd.f32 0.0, %v4446
    %4448 = vmatmul.f32.gmra.mxu0 %v4241
    %v4449 = vpop.f32.mrf.mxu0
    %v4450 = vadd.f32 0.0, %v4449
    %4451 = vmatmul.f32.gmra.mxu0 %v4244
    %v4452 = vpop.f32.mrf.mxu0
    %v4453 = vadd.f32 0.0, %v4452
    %4454 = vmatmul.f32.gmra.mxu0 %v4247
    %v4455 = vpop.f32.mrf.mxu0
    %v4456 = vadd.f32 0.0, %v4455
    %4457 = vmatmul.f32.gmra.mxu0 %v4250
    %v4458 = vpop.f32.mrf.mxu0
    %v4459 = vadd.f32 0.0, %v4458
    %4460 = vmatmul.f32.gmra.mxu0 %v4253
    %v4461 = vpop.f32.mrf.mxu0
    %v4462 = vadd.f32 0.0, %v4461
    %4463 = vmatmul.f32.gmra.mxu0 %v4256
    %v4464 = vpop.f32.mrf.mxu0
    %v4465 = vadd.f32 0.0, %v4464
    %4466 = vmatmul.f32.gmra.mxu0 %v4259
    %v4467 = vpop.f32.mrf.mxu0
    %v4468 = vadd.f32 0.0, %v4467
    %4469 = vmatmul.f32.gmra.mxu0 %v4262
    %v4470 = vpop.f32.mrf.mxu0
    %v4471 = vadd.f32 0.0, %v4470
    %4472 = vmatmul.f32.gmra.mxu0 %v4265
    %v4473 = vpop.f32.mrf.mxu0
    %v4474 = vadd.f32 0.0, %v4473
    %4475 = vmatmul.f32.gmra.mxu0 %v4268
    %v4476 = vpop.f32.mrf.mxu0
    %v4477 = vadd.f32 0.0, %v4476
    %4478 = vmatmul.f32.gmra.mxu0 %v4271
    %v4479 = vpop.f32.mrf.mxu0
    %v4480 = vadd.f32 0.0, %v4479
    %4481 = vmatmul.f32.gmra.mxu0 %v4274
    %v4482 = vpop.f32.mrf.mxu0
    %v4483 = vadd.f32 0.0, %v4482
    %4484 = vmatmul.f32.gmra.mxu0 %v4277
    %v4485 = vpop.f32.mrf.mxu0
    %v4486 = vadd.f32 0.0, %v4485
    %4487 = vmatmul.f32.gmra.mxu0 %v4280
    %v4488 = vpop.f32.mrf.mxu0
    %v4489 = vadd.f32 0.0, %v4488
    %4490 = vmatmul.f32.gmra.mxu0 %v4283
    %v4491 = vpop.f32.mrf.mxu0
    %v4492 = vadd.f32 0.0, %v4491
    %4493 = vmatmul.f32.gmra.mxu0 %v4286
    %v4494 = vpop.f32.mrf.mxu0
    %v4495 = vadd.f32 0.0, %v4494
    %4496 = vmatmul.f32.gmra.mxu0 %v4289
    %v4497 = vpop.f32.mrf.mxu0
    %v4498 = vadd.f32 0.0, %v4497
    %4499 = vmatmul.f32.gmra.mxu0 %v4292
    %v4500 = vpop.f32.mrf.mxu0
    %v4501 = vadd.f32 0.0, %v4500
    %4502 = vmatmul.f32.gmra.mxu0 %v4295
    %v4503 = vpop.f32.mrf.mxu0
    %v4504 = vadd.f32 0.0, %v4503
    %4505 = vmatmul.f32.gmra.mxu0 %v4298
    %v4506 = vpop.f32.mrf.mxu0
    %v4507 = vadd.f32 0.0, %v4506
    %4508 = vmatmul.f32.gmra.mxu0 %v4301
    %v4509 = vpop.f32.mrf.mxu0
    %v4510 = vadd.f32 0.0, %v4509
    %4511 = vmatmul.f32.gmra.mxu0 %v4304
    %v4512 = vpop.f32.mrf.mxu0
    %v4513 = vadd.f32 0.0, %v4512
    %4514 = vmatmul.f32.gmra.mxu0 %v4307
    %v4515 = vpop.f32.mrf.mxu0
    %v4516 = vadd.f32 0.0, %v4515
    %4517 = vmatmul.f32.gmra.mxu0 %v4310
    %v4518 = vpop.f32.mrf.mxu0
    %v4519 = vadd.f32 0.0, %v4518
    %4520 = vdwg.mxu0
    %v4521 = vmul.f32 %v4330, 0.03125
    %v4522 = vmul.f32 %v4333, 0.03125
    %v4523 = vmul.f32 %v4336, 0.03125
    %v4524 = vmul.f32 %v4339, 0.03125
    %v4525 = vmul.f32 %v4342, 0.03125
    %v4526 = vmul.f32 %v4345, 0.03125
    %v4527 = vmul.f32 %v4348, 0.03125
    %v4528 = vmul.f32 %v4351, 0.03125
    %v4529 = vmul.f32 %v4354, 0.03125
    %v4530 = vmul.f32 %v4357, 0.03125
    %v4531 = vmul.f32 %v4360, 0.03125
    %v4532 = vmul.f32 %v4363, 0.03125
    %v4533 = vmul.f32 %v4366, 0.03125
    %v4534 = vmul.f32 %v4369, 0.03125
    %v4535 = vmul.f32 %v4372, 0.03125
    %v4536 = vmul.f32 %v4375, 0.03125
    %v4537 = vmul.f32 %v4378, 0.03125
    %v4538 = vmul.f32 %v4381, 0.03125
    %v4539 = vmul.f32 %v4384, 0.03125
    %v4540 = vmul.f32 %v4387, 0.03125
    %v4541 = vmul.f32 %v4390, 0.03125
    %v4542 = vmul.f32 %v4393, 0.03125
    %v4543 = vmul.f32 %v4396, 0.03125
    %v4544 = vmul.f32 %v4399, 0.03125
    %v4545 = vmul.f32 %v4402, 0.03125
    %v4546 = vmul.f32 %v4405, 0.03125
    %v4547 = vmul.f32 %v4408, 0.03125
    %v4548 = vmul.f32 %v4411, 0.03125
    %v4549 = vmul.f32 %v4414, 0.03125
    %v4550 = vmul.f32 %v4417, 0.03125
    %v4551 = vmul.f32 %v4420, 0.03125
    %v4552 = vmul.f32 %v4423, 0.03125
    %v4553 = vmul.f32 %v4426, 0.03125
    %v4554 = vmul.f32 %v4429, 0.03125
    %v4555 = vmul.f32 %v4432, 0.03125
    %v4556 = vmul.f32 %v4435, 0.03125
    %v4557 = vmul.f32 %v4438, 0.03125
    %v4558 = vmul.f32 %v4441, 0.03125
    %v4559 = vmul.f32 %v4444, 0.03125
    %v4560 = vmul.f32 %v4447, 0.03125
    %v4561 = vmul.f32 %v4450, 0.03125
    %v4562 = vmul.f32 %v4453, 0.03125
    %v4563 = vmul.f32 %v4456, 0.03125
    %v4564 = vmul.f32 %v4459, 0.03125
    %v4565 = vmul.f32 %v4462, 0.03125
    %v4566 = vmul.f32 %v4465, 0.03125
    %v4567 = vmul.f32 %v4468, 0.03125
    %v4568 = vmul.f32 %v4471, 0.03125
    %v4569 = vmul.f32 %v4474, 0.03125
    %v4570 = vmul.f32 %v4477, 0.03125
    %v4571 = vmul.f32 %v4480, 0.03125
    %v4572 = vmul.f32 %v4483, 0.03125
    %v4573 = vmul.f32 %v4486, 0.03125
    %v4574 = vmul.f32 %v4489, 0.03125
    %v4575 = vmul.f32 %v4492, 0.03125
    %v4576 = vmul.f32 %v4495, 0.03125
    %v4577 = vmul.f32 %v4498, 0.03125
    %v4578 = vmul.f32 %v4501, 0.03125
    %v4579 = vmul.f32 %v4504, 0.03125
    %v4580 = vmul.f32 %v4507, 0.03125
    %v4581 = vmul.f32 %v4510, 0.03125
    %v4582 = vmul.f32 %v4513, 0.03125
    %v4583 = vmul.f32 %v4516, 0.03125
    %v4584 = vmul.f32 %v4519, 0.03125
    %v4585 = vmul.f32 %v3992, %v3992
    %v4586 = vmul.f32 %v3993, %v3993
    %v4587 = vmul.f32 %v3994, %v3994
    %v4588 = vmul.f32 %v3995, %v3995
    %v4589 = vmul.f32 %v3996, %v3996
    %v4590 = vmul.f32 %v3997, %v3997
    %v4591 = vmul.f32 %v3998, %v3998
    %v4592 = vmul.f32 %v3999, %v3999
    %v4593 = vmul.f32 %v4000, %v4000
    %v4594 = vmul.f32 %v4001, %v4001
    %v4595 = vmul.f32 %v4002, %v4002
    %v4596 = vmul.f32 %v4003, %v4003
    %v4597 = vmul.f32 %v4004, %v4004
    %v4598 = vmul.f32 %v4005, %v4005
    %v4599 = vmul.f32 %v4006, %v4006
    %v4600 = vmul.f32 %v4007, %v4007
    %v4601 = vmul.f32 %v4008, %v4008
    %v4602 = vmul.f32 %v4009, %v4009
    %v4603 = vmul.f32 %v4010, %v4010
    %v4604 = vmul.f32 %v4011, %v4011
    %v4605 = vmul.f32 %v4012, %v4012
    %v4606 = vmul.f32 %v4013, %v4013
    %v4607 = vmul.f32 %v4014, %v4014
    %v4608 = vmul.f32 %v4015, %v4015
    %v4609 = vmul.f32 %v4016, %v4016
    %v4610 = vmul.f32 %v4017, %v4017
    %v4611 = vmul.f32 %v4018, %v4018
    %v4612 = vmul.f32 %v4019, %v4019
    %v4613 = vmul.f32 %v4020, %v4020
    %v4614 = vmul.f32 %v4021, %v4021
    %v4615 = vmul.f32 %v4022, %v4022
    %v4616 = vmul.f32 %v4023, %v4023
    %v4617 = vmul.f32 %v4024, %v4024
    %v4618 = vmul.f32 %v4025, %v4025
    %v4619 = vmul.f32 %v4026, %v4026
    %v4620 = vmul.f32 %v4027, %v4027
    %v4621 = vmul.f32 %v4028, %v4028
    %v4622 = vmul.f32 %v4029, %v4029
    %v4623 = vmul.f32 %v4030, %v4030
    %v4624 = vmul.f32 %v4031, %v4031
    %v4625 = vmul.f32 %v4032, %v4032
    %v4626 = vmul.f32 %v4033, %v4033
    %v4627 = vmul.f32 %v4034, %v4034
    %v4628 = vmul.f32 %v4035, %v4035
    %v4629 = vmul.f32 %v4036, %v4036
    %v4630 = vmul.f32 %v4037, %v4037
    %v4631 = vmul.f32 %v4038, %v4038
    %v4632 = vmul.f32 %v4039, %v4039
    %v4633 = vmul.f32 %v4040, %v4040
    %v4634 = vmul.f32 %v4041, %v4041
    %v4635 = vmul.f32 %v4042, %v4042
    %v4636 = vmul.f32 %v4043, %v4043
    %v4637 = vmul.f32 %v4044, %v4044
    %v4638 = vmul.f32 %v4045, %v4045
    %v4639 = vmul.f32 %v4046, %v4046
    %v4640 = vmul.f32 %v4047, %v4047
    %v4641 = vmul.f32 %v4048, %v4048
    %v4642 = vmul.f32 %v4049, %v4049
    %v4643 = vmul.f32 %v4050, %v4050
    %v4644 = vmul.f32 %v4051, %v4051
    %v4645 = vmul.f32 %v4052, %v4052
    %v4646 = vmul.f32 %v4053, %v4053
    %v4647 = vmul.f32 %v4054, %v4054
    %v4648 = vmul.f32 %v4055, %v4055
    %v4649 = vsub.f32 %v4521, %v4585
    %v4650 = vsub.f32 %v4522, %v4586
    %v4651 = vsub.f32 %v4523, %v4587
    %v4652 = vsub.f32 %v4524, %v4588
    %v4653 = vsub.f32 %v4525, %v4589
    %v4654 = vsub.f32 %v4526, %v4590
    %v4655 = vsub.f32 %v4527, %v4591
    %v4656 = vsub.f32 %v4528, %v4592
    %v4657 = vsub.f32 %v4529, %v4593
    %v4658 = vsub.f32 %v4530, %v4594
    %v4659 = vsub.f32 %v4531, %v4595
    %v4660 = vsub.f32 %v4532, %v4596
    %v4661 = vsub.f32 %v4533, %v4597
    %v4662 = vsub.f32 %v4534, %v4598
    %v4663 = vsub.f32 %v4535, %v4599
    %v4664 = vsub.f32 %v4536, %v4600
    %v4665 = vsub.f32 %v4537, %v4601
    %v4666 = vsub.f32 %v4538, %v4602
    %v4667 = vsub.f32 %v4539, %v4603
    %v4668 = vsub.f32 %v4540, %v4604
    %v4669 = vsub.f32 %v4541, %v4605
    %v4670 = vsub.f32 %v4542, %v4606
    %v4671 = vsub.f32 %v4543, %v4607
    %v4672 = vsub.f32 %v4544, %v4608
    %v4673 = vsub.f32 %v4545, %v4609
    %v4674 = vsub.f32 %v4546, %v4610
    %v4675 = vsub.f32 %v4547, %v4611
    %v4676 = vsub.f32 %v4548, %v4612
    %v4677 = vsub.f32 %v4549, %v4613
    %v4678 = vsub.f32 %v4550, %v4614
    %v4679 = vsub.f32 %v4551, %v4615
    %v4680 = vsub.f32 %v4552, %v4616
    %v4681 = vsub.f32 %v4553, %v4617
    %v4682 = vsub.f32 %v4554, %v4618
    %v4683 = vsub.f32 %v4555, %v4619
    %v4684 = vsub.f32 %v4556, %v4620
    %v4685 = vsub.f32 %v4557, %v4621
    %v4686 = vsub.f32 %v4558, %v4622
    %v4687 = vsub.f32 %v4559, %v4623
    %v4688 = vsub.f32 %v4560, %v4624
    %v4689 = vsub.f32 %v4561, %v4625
    %v4690 = vsub.f32 %v4562, %v4626
    %v4691 = vsub.f32 %v4563, %v4627
    %v4692 = vsub.f32 %v4564, %v4628
    %v4693 = vsub.f32 %v4565, %v4629
    %v4694 = vsub.f32 %v4566, %v4630
    %v4695 = vsub.f32 %v4567, %v4631
    %v4696 = vsub.f32 %v4568, %v4632
    %v4697 = vsub.f32 %v4569, %v4633
    %v4698 = vsub.f32 %v4570, %v4634
    %v4699 = vsub.f32 %v4571, %v4635
    %v4700 = vsub.f32 %v4572, %v4636
    %v4701 = vsub.f32 %v4573, %v4637
    %v4702 = vsub.f32 %v4574, %v4638
    %v4703 = vsub.f32 %v4575, %v4639
    %v4704 = vsub.f32 %v4576, %v4640
    %v4705 = vsub.f32 %v4577, %v4641
    %v4706 = vsub.f32 %v4578, %v4642
    %v4707 = vsub.f32 %v4579, %v4643
    %v4708 = vsub.f32 %v4580, %v4644
    %v4709 = vsub.f32 %v4581, %v4645
    %v4710 = vsub.f32 %v4582, %v4646
    %v4711 = vsub.f32 %v4583, %v4647
    %v4712 = vsub.f32 %v4584, %v4648
    %v4713 = vadd.f32 %v4649, 1e-05
    %v4714 = vadd.f32 %v4650, 1e-05
    %v4715 = vadd.f32 %v4651, 1e-05
    %v4716 = vadd.f32 %v4652, 1e-05
    %v4717 = vadd.f32 %v4653, 1e-05
    %v4718 = vadd.f32 %v4654, 1e-05
    %v4719 = vadd.f32 %v4655, 1e-05
    %v4720 = vadd.f32 %v4656, 1e-05
    %v4721 = vadd.f32 %v4657, 1e-05
    %v4722 = vadd.f32 %v4658, 1e-05
    %v4723 = vadd.f32 %v4659, 1e-05
    %v4724 = vadd.f32 %v4660, 1e-05
    %v4725 = vadd.f32 %v4661, 1e-05
    %v4726 = vadd.f32 %v4662, 1e-05
    %v4727 = vadd.f32 %v4663, 1e-05
    %v4728 = vadd.f32 %v4664, 1e-05
    %v4729 = vadd.f32 %v4665, 1e-05
    %v4730 = vadd.f32 %v4666, 1e-05
    %v4731 = vadd.f32 %v4667, 1e-05
    %v4732 = vadd.f32 %v4668, 1e-05
    %v4733 = vadd.f32 %v4669, 1e-05
    %v4734 = vadd.f32 %v4670, 1e-05
    %v4735 = vadd.f32 %v4671, 1e-05
    %v4736 = vadd.f32 %v4672, 1e-05
    %v4737 = vadd.f32 %v4673, 1e-05
    %v4738 = vadd.f32 %v4674, 1e-05
    %v4739 = vadd.f32 %v4675, 1e-05
    %v4740 = vadd.f32 %v4676, 1e-05
    %v4741 = vadd.f32 %v4677, 1e-05
    %v4742 = vadd.f32 %v4678, 1e-05
    %v4743 = vadd.f32 %v4679, 1e-05
    %v4744 = vadd.f32 %v4680, 1e-05
    %v4745 = vadd.f32 %v4681, 1e-05
    %v4746 = vadd.f32 %v4682, 1e-05
    %v4747 = vadd.f32 %v4683, 1e-05
    %v4748 = vadd.f32 %v4684, 1e-05
    %v4749 = vadd.f32 %v4685, 1e-05
    %v4750 = vadd.f32 %v4686, 1e-05
    %v4751 = vadd.f32 %v4687, 1e-05
    %v4752 = vadd.f32 %v4688, 1e-05
    %v4753 = vadd.f32 %v4689, 1e-05
    %v4754 = vadd.f32 %v4690, 1e-05
    %v4755 = vadd.f32 %v4691, 1e-05
    %v4756 = vadd.f32 %v4692, 1e-05
    %v4757 = vadd.f32 %v4693, 1e-05
    %v4758 = vadd.f32 %v4694, 1e-05
    %v4759 = vadd.f32 %v4695, 1e-05
    %v4760 = vadd.f32 %v4696, 1e-05
    %v4761 = vadd.f32 %v4697, 1e-05
    %v4762 = vadd.f32 %v4698, 1e-05
    %v4763 = vadd.f32 %v4699, 1e-05
    %v4764 = vadd.f32 %v4700, 1e-05
    %v4765 = vadd.f32 %v4701, 1e-05
    %v4766 = vadd.f32 %v4702, 1e-05
    %v4767 = vadd.f32 %v4703, 1e-05
    %v4768 = vadd.f32 %v4704, 1e-05
    %v4769 = vadd.f32 %v4705, 1e-05
    %v4770 = vadd.f32 %v4706, 1e-05
    %v4771 = vadd.f32 %v4707, 1e-05
    %v4772 = vadd.f32 %v4708, 1e-05
    %v4773 = vadd.f32 %v4709, 1e-05
    %v4774 = vadd.f32 %v4710, 1e-05
    %v4775 = vadd.f32 %v4711, 1e-05
    %v4776 = vadd.f32 %v4712, 1e-05
    %v4777 = vrsqrt.pop %v4713
    %v4778 = vmul.f32 %v4777, %v4713
    %v4779 = vmul.f32 %v4778, %v4777
    %v4780 = vmul.f32 0.5, %v4779
    %v4781 = vsub.f32 1.5, %v4780
    %v4782 = vmul.f32 %v4777, %v4781
    %vm4783 = vweird.f32 %v4713
    %vm4784 = vweird.f32 %v4777
    %vm4785 = vmor %vm4783, %vm4784
    %v4786 = vsel %vm4785, %v4777, %v4782
    %v4787 = vrsqrt.pop %v4714
    %v4788 = vmul.f32 %v4787, %v4714
    %v4789 = vmul.f32 %v4788, %v4787
    %v4790 = vmul.f32 0.5, %v4789
    %v4791 = vsub.f32 1.5, %v4790
    %v4792 = vmul.f32 %v4787, %v4791
    %vm4793 = vweird.f32 %v4714
    %vm4794 = vweird.f32 %v4787
    %vm4795 = vmor %vm4793, %vm4794
    %v4796 = vsel %vm4795, %v4787, %v4792
    %v4797 = vrsqrt.pop %v4715
    %v4798 = vmul.f32 %v4797, %v4715
    %v4799 = vmul.f32 %v4798, %v4797
    %v4800 = vmul.f32 0.5, %v4799
    %v4801 = vsub.f32 1.5, %v4800
    %v4802 = vmul.f32 %v4797, %v4801
    %vm4803 = vweird.f32 %v4715
    %vm4804 = vweird.f32 %v4797
    %vm4805 = vmor %vm4803, %vm4804
    %v4806 = vsel %vm4805, %v4797, %v4802
    %v4807 = vrsqrt.pop %v4716
    %v4808 = vmul.f32 %v4807, %v4716
    %v4809 = vmul.f32 %v4808, %v4807
    %v4810 = vmul.f32 0.5, %v4809
    %v4811 = vsub.f32 1.5, %v4810
    %v4812 = vmul.f32 %v4807, %v4811
    %vm4813 = vweird.f32 %v4716
    %vm4814 = vweird.f32 %v4807
    %vm4815 = vmor %vm4813, %vm4814
    %v4816 = vsel %vm4815, %v4807, %v4812
    %v4817 = vrsqrt.pop %v4717
    %v4818 = vmul.f32 %v4817, %v4717
    %v4819 = vmul.f32 %v4818, %v4817
    %v4820 = vmul.f32 0.5, %v4819
    %v4821 = vsub.f32 1.5, %v4820
    %v4822 = vmul.f32 %v4817, %v4821
    %vm4823 = vweird.f32 %v4717
    %vm4824 = vweird.f32 %v4817
    %vm4825 = vmor %vm4823, %vm4824
    %v4826 = vsel %vm4825, %v4817, %v4822
    %v4827 = vrsqrt.pop %v4718
    %v4828 = vmul.f32 %v4827, %v4718
    %v4829 = vmul.f32 %v4828, %v4827
    %v4830 = vmul.f32 0.5, %v4829
    %v4831 = vsub.f32 1.5, %v4830
    %v4832 = vmul.f32 %v4827, %v4831
    %vm4833 = vweird.f32 %v4718
    %vm4834 = vweird.f32 %v4827
    %vm4835 = vmor %vm4833, %vm4834
    %v4836 = vsel %vm4835, %v4827, %v4832
    %v4837 = vrsqrt.pop %v4719
    %v4838 = vmul.f32 %v4837, %v4719
    %v4839 = vmul.f32 %v4838, %v4837
    %v4840 = vmul.f32 0.5, %v4839
    %v4841 = vsub.f32 1.5, %v4840
    %v4842 = vmul.f32 %v4837, %v4841
    %vm4843 = vweird.f32 %v4719
    %vm4844 = vweird.f32 %v4837
    %vm4845 = vmor %vm4843, %vm4844
    %v4846 = vsel %vm4845, %v4837, %v4842
    %v4847 = vrsqrt.pop %v4720
    %v4848 = vmul.f32 %v4847, %v4720
    %v4849 = vmul.f32 %v4848, %v4847
    %v4850 = vmul.f32 0.5, %v4849
    %v4851 = vsub.f32 1.5, %v4850
    %v4852 = vmul.f32 %v4847, %v4851
    %vm4853 = vweird.f32 %v4720
    %vm4854 = vweird.f32 %v4847
    %vm4855 = vmor %vm4853, %vm4854
    %v4856 = vsel %vm4855, %v4847, %v4852
    %v4857 = vrsqrt.pop %v4721
    %v4858 = vmul.f32 %v4857, %v4721
    %v4859 = vmul.f32 %v4858, %v4857
    %v4860 = vmul.f32 0.5, %v4859
    %v4861 = vsub.f32 1.5, %v4860
    %v4862 = vmul.f32 %v4857, %v4861
    %vm4863 = vweird.f32 %v4721
    %vm4864 = vweird.f32 %v4857
    %vm4865 = vmor %vm4863, %vm4864
    %v4866 = vsel %vm4865, %v4857, %v4862
    %v4867 = vrsqrt.pop %v4722
    %v4868 = vmul.f32 %v4867, %v4722
    %v4869 = vmul.f32 %v4868, %v4867
    %v4870 = vmul.f32 0.5, %v4869
    %v4871 = vsub.f32 1.5, %v4870
    %v4872 = vmul.f32 %v4867, %v4871
    %vm4873 = vweird.f32 %v4722
    %vm4874 = vweird.f32 %v4867
    %vm4875 = vmor %vm4873, %vm4874
    %v4876 = vsel %vm4875, %v4867, %v4872
    %v4877 = vrsqrt.pop %v4723
    %v4878 = vmul.f32 %v4877, %v4723
    %v4879 = vmul.f32 %v4878, %v4877
    %v4880 = vmul.f32 0.5, %v4879
    %v4881 = vsub.f32 1.5, %v4880
    %v4882 = vmul.f32 %v4877, %v4881
    %vm4883 = vweird.f32 %v4723
    %vm4884 = vweird.f32 %v4877
    %vm4885 = vmor %vm4883, %vm4884
    %v4886 = vsel %vm4885, %v4877, %v4882
    %v4887 = vrsqrt.pop %v4724
    %v4888 = vmul.f32 %v4887, %v4724
    %v4889 = vmul.f32 %v4888, %v4887
    %v4890 = vmul.f32 0.5, %v4889
    %v4891 = vsub.f32 1.5, %v4890
    %v4892 = vmul.f32 %v4887, %v4891
    %vm4893 = vweird.f32 %v4724
    %vm4894 = vweird.f32 %v4887
    %vm4895 = vmor %vm4893, %vm4894
    %v4896 = vsel %vm4895, %v4887, %v4892
    %v4897 = vrsqrt.pop %v4725
    %v4898 = vmul.f32 %v4897, %v4725
    %v4899 = vmul.f32 %v4898, %v4897
    %v4900 = vmul.f32 0.5, %v4899
    %v4901 = vsub.f32 1.5, %v4900
    %v4902 = vmul.f32 %v4897, %v4901
    %vm4903 = vweird.f32 %v4725
    %vm4904 = vweird.f32 %v4897
    %vm4905 = vmor %vm4903, %vm4904
    %v4906 = vsel %vm4905, %v4897, %v4902
    %v4907 = vrsqrt.pop %v4726
    %v4908 = vmul.f32 %v4907, %v4726
    %v4909 = vmul.f32 %v4908, %v4907
    %v4910 = vmul.f32 0.5, %v4909
    %v4911 = vsub.f32 1.5, %v4910
    %v4912 = vmul.f32 %v4907, %v4911
    %vm4913 = vweird.f32 %v4726
    %vm4914 = vweird.f32 %v4907
    %vm4915 = vmor %vm4913, %vm4914
    %v4916 = vsel %vm4915, %v4907, %v4912
    %v4917 = vrsqrt.pop %v4727
    %v4918 = vmul.f32 %v4917, %v4727
    %v4919 = vmul.f32 %v4918, %v4917
    %v4920 = vmul.f32 0.5, %v4919
    %v4921 = vsub.f32 1.5, %v4920
    %v4922 = vmul.f32 %v4917, %v4921
    %vm4923 = vweird.f32 %v4727
    %vm4924 = vweird.f32 %v4917
    %vm4925 = vmor %vm4923, %vm4924
    %v4926 = vsel %vm4925, %v4917, %v4922
    %v4927 = vrsqrt.pop %v4728
    %v4928 = vmul.f32 %v4927, %v4728
    %v4929 = vmul.f32 %v4928, %v4927
    %v4930 = vmul.f32 0.5, %v4929
    %v4931 = vsub.f32 1.5, %v4930
    %v4932 = vmul.f32 %v4927, %v4931
    %vm4933 = vweird.f32 %v4728
    %vm4934 = vweird.f32 %v4927
    %vm4935 = vmor %vm4933, %vm4934
    %v4936 = vsel %vm4935, %v4927, %v4932
    %v4937 = vrsqrt.pop %v4729
    %v4938 = vmul.f32 %v4937, %v4729
    %v4939 = vmul.f32 %v4938, %v4937
    %v4940 = vmul.f32 0.5, %v4939
    %v4941 = vsub.f32 1.5, %v4940
    %v4942 = vmul.f32 %v4937, %v4941
    %vm4943 = vweird.f32 %v4729
    %vm4944 = vweird.f32 %v4937
    %vm4945 = vmor %vm4943, %vm4944
    %v4946 = vsel %vm4945, %v4937, %v4942
    %v4947 = vrsqrt.pop %v4730
    %v4948 = vmul.f32 %v4947, %v4730
    %v4949 = vmul.f32 %v4948, %v4947
    %v4950 = vmul.f32 0.5, %v4949
    %v4951 = vsub.f32 1.5, %v4950
    %v4952 = vmul.f32 %v4947, %v4951
    %vm4953 = vweird.f32 %v4730
    %vm4954 = vweird.f32 %v4947
    %vm4955 = vmor %vm4953, %vm4954
    %v4956 = vsel %vm4955, %v4947, %v4952
    %v4957 = vrsqrt.pop %v4731
    %v4958 = vmul.f32 %v4957, %v4731
    %v4959 = vmul.f32 %v4958, %v4957
    %v4960 = vmul.f32 0.5, %v4959
    %v4961 = vsub.f32 1.5, %v4960
    %v4962 = vmul.f32 %v4957, %v4961
    %vm4963 = vweird.f32 %v4731
    %vm4964 = vweird.f32 %v4957
    %vm4965 = vmor %vm4963, %vm4964
    %v4966 = vsel %vm4965, %v4957, %v4962
    %v4967 = vrsqrt.pop %v4732
    %v4968 = vmul.f32 %v4967, %v4732
    %v4969 = vmul.f32 %v4968, %v4967
    %v4970 = vmul.f32 0.5, %v4969
    %v4971 = vsub.f32 1.5, %v4970
    %v4972 = vmul.f32 %v4967, %v4971
    %vm4973 = vweird.f32 %v4732
    %vm4974 = vweird.f32 %v4967
    %vm4975 = vmor %vm4973, %vm4974
    %v4976 = vsel %vm4975, %v4967, %v4972
    %v4977 = vrsqrt.pop %v4733
    %v4978 = vmul.f32 %v4977, %v4733
    %v4979 = vmul.f32 %v4978, %v4977
    %v4980 = vmul.f32 0.5, %v4979
    %v4981 = vsub.f32 1.5, %v4980
    %v4982 = vmul.f32 %v4977, %v4981
    %vm4983 = vweird.f32 %v4733
    %vm4984 = vweird.f32 %v4977
    %vm4985 = vmor %vm4983, %vm4984
    %v4986 = vsel %vm4985, %v4977, %v4982
    %v4987 = vrsqrt.pop %v4734
    %v4988 = vmul.f32 %v4987, %v4734
    %v4989 = vmul.f32 %v4988, %v4987
    %v4990 = vmul.f32 0.5, %v4989
    %v4991 = vsub.f32 1.5, %v4990
    %v4992 = vmul.f32 %v4987, %v4991
    %vm4993 = vweird.f32 %v4734
    %vm4994 = vweird.f32 %v4987
    %vm4995 = vmor %vm4993, %vm4994
    %v4996 = vsel %vm4995, %v4987, %v4992
    %v4997 = vrsqrt.pop %v4735
    %v4998 = vmul.f32 %v4997, %v4735
    %v4999 = vmul.f32 %v4998, %v4997
    %v5000 = vmul.f32 0.5, %v4999
    %v5001 = vsub.f32 1.5, %v5000
    %v5002 = vmul.f32 %v4997, %v5001
    %vm5003 = vweird.f32 %v4735
    %vm5004 = vweird.f32 %v4997
    %vm5005 = vmor %vm5003, %vm5004
    %v5006 = vsel %vm5005, %v4997, %v5002
    %v5007 = vrsqrt.pop %v4736
    %v5008 = vmul.f32 %v5007, %v4736
    %v5009 = vmul.f32 %v5008, %v5007
    %v5010 = vmul.f32 0.5, %v5009
    %v5011 = vsub.f32 1.5, %v5010
    %v5012 = vmul.f32 %v5007, %v5011
    %vm5013 = vweird.f32 %v4736
    %vm5014 = vweird.f32 %v5007
    %vm5015 = vmor %vm5013, %vm5014
    %v5016 = vsel %vm5015, %v5007, %v5012
    %v5017 = vrsqrt.pop %v4737
    %v5018 = vmul.f32 %v5017, %v4737
    %v5019 = vmul.f32 %v5018, %v5017
    %v5020 = vmul.f32 0.5, %v5019
    %v5021 = vsub.f32 1.5, %v5020
    %v5022 = vmul.f32 %v5017, %v5021
    %vm5023 = vweird.f32 %v4737
    %vm5024 = vweird.f32 %v5017
    %vm5025 = vmor %vm5023, %vm5024
    %v5026 = vsel %vm5025, %v5017, %v5022
    %v5027 = vrsqrt.pop %v4738
    %v5028 = vmul.f32 %v5027, %v4738
    %v5029 = vmul.f32 %v5028, %v5027
    %v5030 = vmul.f32 0.5, %v5029
    %v5031 = vsub.f32 1.5, %v5030
    %v5032 = vmul.f32 %v5027, %v5031
    %vm5033 = vweird.f32 %v4738
    %vm5034 = vweird.f32 %v5027
    %vm5035 = vmor %vm5033, %vm5034
    %v5036 = vsel %vm5035, %v5027, %v5032
    %v5037 = vrsqrt.pop %v4739
    %v5038 = vmul.f32 %v5037, %v4739
    %v5039 = vmul.f32 %v5038, %v5037
    %v5040 = vmul.f32 0.5, %v5039
    %v5041 = vsub.f32 1.5, %v5040
    %v5042 = vmul.f32 %v5037, %v5041
    %vm5043 = vweird.f32 %v4739
    %vm5044 = vweird.f32 %v5037
    %vm5045 = vmor %vm5043, %vm5044
    %v5046 = vsel %vm5045, %v5037, %v5042
    %v5047 = vrsqrt.pop %v4740
    %v5048 = vmul.f32 %v5047, %v4740
    %v5049 = vmul.f32 %v5048, %v5047
    %v5050 = vmul.f32 0.5, %v5049
    %v5051 = vsub.f32 1.5, %v5050
    %v5052 = vmul.f32 %v5047, %v5051
    %vm5053 = vweird.f32 %v4740
    %vm5054 = vweird.f32 %v5047
    %vm5055 = vmor %vm5053, %vm5054
    %v5056 = vsel %vm5055, %v5047, %v5052
    %v5057 = vrsqrt.pop %v4741
    %v5058 = vmul.f32 %v5057, %v4741
    %v5059 = vmul.f32 %v5058, %v5057
    %v5060 = vmul.f32 0.5, %v5059
    %v5061 = vsub.f32 1.5, %v5060
    %v5062 = vmul.f32 %v5057, %v5061
    %vm5063 = vweird.f32 %v4741
    %vm5064 = vweird.f32 %v5057
    %vm5065 = vmor %vm5063, %vm5064
    %v5066 = vsel %vm5065, %v5057, %v5062
    %v5067 = vrsqrt.pop %v4742
    %v5068 = vmul.f32 %v5067, %v4742
    %v5069 = vmul.f32 %v5068, %v5067
    %v5070 = vmul.f32 0.5, %v5069
    %v5071 = vsub.f32 1.5, %v5070
    %v5072 = vmul.f32 %v5067, %v5071
    %vm5073 = vweird.f32 %v4742
    %vm5074 = vweird.f32 %v5067
    %vm5075 = vmor %vm5073, %vm5074
    %v5076 = vsel %vm5075, %v5067, %v5072
    %v5077 = vrsqrt.pop %v4743
    %v5078 = vmul.f32 %v5077, %v4743
    %v5079 = vmul.f32 %v5078, %v5077
    %v5080 = vmul.f32 0.5, %v5079
    %v5081 = vsub.f32 1.5, %v5080
    %v5082 = vmul.f32 %v5077, %v5081
    %vm5083 = vweird.f32 %v4743
    %vm5084 = vweird.f32 %v5077
    %vm5085 = vmor %vm5083, %vm5084
    %v5086 = vsel %vm5085, %v5077, %v5082
    %v5087 = vrsqrt.pop %v4744
    %v5088 = vmul.f32 %v5087, %v4744
    %v5089 = vmul.f32 %v5088, %v5087
    %v5090 = vmul.f32 0.5, %v5089
    %v5091 = vsub.f32 1.5, %v5090
    %v5092 = vmul.f32 %v5087, %v5091
    %vm5093 = vweird.f32 %v4744
    %vm5094 = vweird.f32 %v5087
    %vm5095 = vmor %vm5093, %vm5094
    %v5096 = vsel %vm5095, %v5087, %v5092
    %v5097 = vrsqrt.pop %v4745
    %v5098 = vmul.f32 %v5097, %v4745
    %v5099 = vmul.f32 %v5098, %v5097
    %v5100 = vmul.f32 0.5, %v5099
    %v5101 = vsub.f32 1.5, %v5100
    %v5102 = vmul.f32 %v5097, %v5101
    %vm5103 = vweird.f32 %v4745
    %vm5104 = vweird.f32 %v5097
    %vm5105 = vmor %vm5103, %vm5104
    %v5106 = vsel %vm5105, %v5097, %v5102
    %v5107 = vrsqrt.pop %v4746
    %v5108 = vmul.f32 %v5107, %v4746
    %v5109 = vmul.f32 %v5108, %v5107
    %v5110 = vmul.f32 0.5, %v5109
    %v5111 = vsub.f32 1.5, %v5110
    %v5112 = vmul.f32 %v5107, %v5111
    %vm5113 = vweird.f32 %v4746
    %vm5114 = vweird.f32 %v5107
    %vm5115 = vmor %vm5113, %vm5114
    %v5116 = vsel %vm5115, %v5107, %v5112
    %v5117 = vrsqrt.pop %v4747
    %v5118 = vmul.f32 %v5117, %v4747
    %v5119 = vmul.f32 %v5118, %v5117
    %v5120 = vmul.f32 0.5, %v5119
    %v5121 = vsub.f32 1.5, %v5120
    %v5122 = vmul.f32 %v5117, %v5121
    %vm5123 = vweird.f32 %v4747
    %vm5124 = vweird.f32 %v5117
    %vm5125 = vmor %vm5123, %vm5124
    %v5126 = vsel %vm5125, %v5117, %v5122
    %v5127 = vrsqrt.pop %v4748
    %v5128 = vmul.f32 %v5127, %v4748
    %v5129 = vmul.f32 %v5128, %v5127
    %v5130 = vmul.f32 0.5, %v5129
    %v5131 = vsub.f32 1.5, %v5130
    %v5132 = vmul.f32 %v5127, %v5131
    %vm5133 = vweird.f32 %v4748
    %vm5134 = vweird.f32 %v5127
    %vm5135 = vmor %vm5133, %vm5134
    %v5136 = vsel %vm5135, %v5127, %v5132
    %v5137 = vrsqrt.pop %v4749
    %v5138 = vmul.f32 %v5137, %v4749
    %v5139 = vmul.f32 %v5138, %v5137
    %v5140 = vmul.f32 0.5, %v5139
    %v5141 = vsub.f32 1.5, %v5140
    %v5142 = vmul.f32 %v5137, %v5141
    %vm5143 = vweird.f32 %v4749
    %vm5144 = vweird.f32 %v5137
    %vm5145 = vmor %vm5143, %vm5144
    %v5146 = vsel %vm5145, %v5137, %v5142
    %v5147 = vrsqrt.pop %v4750
    %v5148 = vmul.f32 %v5147, %v4750
    %v5149 = vmul.f32 %v5148, %v5147
    %v5150 = vmul.f32 0.5, %v5149
    %v5151 = vsub.f32 1.5, %v5150
    %v5152 = vmul.f32 %v5147, %v5151
    %vm5153 = vweird.f32 %v4750
    %vm5154 = vweird.f32 %v5147
    %vm5155 = vmor %vm5153, %vm5154
    %v5156 = vsel %vm5155, %v5147, %v5152
    %v5157 = vrsqrt.pop %v4751
    %v5158 = vmul.f32 %v5157, %v4751
    %v5159 = vmul.f32 %v5158, %v5157
    %v5160 = vmul.f32 0.5, %v5159
    %v5161 = vsub.f32 1.5, %v5160
    %v5162 = vmul.f32 %v5157, %v5161
    %vm5163 = vweird.f32 %v4751
    %vm5164 = vweird.f32 %v5157
    %vm5165 = vmor %vm5163, %vm5164
    %v5166 = vsel %vm5165, %v5157, %v5162
    %v5167 = vrsqrt.pop %v4752
    %v5168 = vmul.f32 %v5167, %v4752
    %v5169 = vmul.f32 %v5168, %v5167
    %v5170 = vmul.f32 0.5, %v5169
    %v5171 = vsub.f32 1.5, %v5170
    %v5172 = vmul.f32 %v5167, %v5171
    %vm5173 = vweird.f32 %v4752
    %vm5174 = vweird.f32 %v5167
    %vm5175 = vmor %vm5173, %vm5174
    %v5176 = vsel %vm5175, %v5167, %v5172
    %v5177 = vrsqrt.pop %v4753
    %v5178 = vmul.f32 %v5177, %v4753
    %v5179 = vmul.f32 %v5178, %v5177
    %v5180 = vmul.f32 0.5, %v5179
    %v5181 = vsub.f32 1.5, %v5180
    %v5182 = vmul.f32 %v5177, %v5181
    %vm5183 = vweird.f32 %v4753
    %vm5184 = vweird.f32 %v5177
    %vm5185 = vmor %vm5183, %vm5184
    %v5186 = vsel %vm5185, %v5177, %v5182
    %v5187 = vrsqrt.pop %v4754
    %v5188 = vmul.f32 %v5187, %v4754
    %v5189 = vmul.f32 %v5188, %v5187
    %v5190 = vmul.f32 0.5, %v5189
    %v5191 = vsub.f32 1.5, %v5190
    %v5192 = vmul.f32 %v5187, %v5191
    %vm5193 = vweird.f32 %v4754
    %vm5194 = vweird.f32 %v5187
    %vm5195 = vmor %vm5193, %vm5194
    %v5196 = vsel %vm5195, %v5187, %v5192
    %v5197 = vrsqrt.pop %v4755
    %v5198 = vmul.f32 %v5197, %v4755
    %v5199 = vmul.f32 %v5198, %v5197
    %v5200 = vmul.f32 0.5, %v5199
    %v5201 = vsub.f32 1.5, %v5200
    %v5202 = vmul.f32 %v5197, %v5201
    %vm5203 = vweird.f32 %v4755
    %vm5204 = vweird.f32 %v5197
    %vm5205 = vmor %vm5203, %vm5204
    %v5206 = vsel %vm5205, %v5197, %v5202
    %v5207 = vrsqrt.pop %v4756
    %v5208 = vmul.f32 %v5207, %v4756
    %v5209 = vmul.f32 %v5208, %v5207
    %v5210 = vmul.f32 0.5, %v5209
    %v5211 = vsub.f32 1.5, %v5210
    %v5212 = vmul.f32 %v5207, %v5211
    %vm5213 = vweird.f32 %v4756
    %vm5214 = vweird.f32 %v5207
    %vm5215 = vmor %vm5213, %vm5214
    %v5216 = vsel %vm5215, %v5207, %v5212
    %v5217 = vrsqrt.pop %v4757
    %v5218 = vmul.f32 %v5217, %v4757
    %v5219 = vmul.f32 %v5218, %v5217
    %v5220 = vmul.f32 0.5, %v5219
    %v5221 = vsub.f32 1.5, %v5220
    %v5222 = vmul.f32 %v5217, %v5221
    %vm5223 = vweird.f32 %v4757
    %vm5224 = vweird.f32 %v5217
    %vm5225 = vmor %vm5223, %vm5224
    %v5226 = vsel %vm5225, %v5217, %v5222
    %v5227 = vrsqrt.pop %v4758
    %v5228 = vmul.f32 %v5227, %v4758
    %v5229 = vmul.f32 %v5228, %v5227
    %v5230 = vmul.f32 0.5, %v5229
    %v5231 = vsub.f32 1.5, %v5230
    %v5232 = vmul.f32 %v5227, %v5231
    %vm5233 = vweird.f32 %v4758
    %vm5234 = vweird.f32 %v5227
    %vm5235 = vmor %vm5233, %vm5234
    %v5236 = vsel %vm5235, %v5227, %v5232
    %v5237 = vrsqrt.pop %v4759
    %v5238 = vmul.f32 %v5237, %v4759
    %v5239 = vmul.f32 %v5238, %v5237
    %v5240 = vmul.f32 0.5, %v5239
    %v5241 = vsub.f32 1.5, %v5240
    %v5242 = vmul.f32 %v5237, %v5241
    %vm5243 = vweird.f32 %v4759
    %vm5244 = vweird.f32 %v5237
    %vm5245 = vmor %vm5243, %vm5244
    %v5246 = vsel %vm5245, %v5237, %v5242
    %v5247 = vrsqrt.pop %v4760
    %v5248 = vmul.f32 %v5247, %v4760
    %v5249 = vmul.f32 %v5248, %v5247
    %v5250 = vmul.f32 0.5, %v5249
    %v5251 = vsub.f32 1.5, %v5250
    %v5252 = vmul.f32 %v5247, %v5251
    %vm5253 = vweird.f32 %v4760
    %vm5254 = vweird.f32 %v5247
    %vm5255 = vmor %vm5253, %vm5254
    %v5256 = vsel %vm5255, %v5247, %v5252
    %v5257 = vrsqrt.pop %v4761
    %v5258 = vmul.f32 %v5257, %v4761
    %v5259 = vmul.f32 %v5258, %v5257
    %v5260 = vmul.f32 0.5, %v5259
    %v5261 = vsub.f32 1.5, %v5260
    %v5262 = vmul.f32 %v5257, %v5261
    %vm5263 = vweird.f32 %v4761
    %vm5264 = vweird.f32 %v5257
    %vm5265 = vmor %vm5263, %vm5264
    %v5266 = vsel %vm5265, %v5257, %v5262
    %v5267 = vrsqrt.pop %v4762
    %v5268 = vmul.f32 %v5267, %v4762
    %v5269 = vmul.f32 %v5268, %v5267
    %v5270 = vmul.f32 0.5, %v5269
    %v5271 = vsub.f32 1.5, %v5270
    %v5272 = vmul.f32 %v5267, %v5271
    %vm5273 = vweird.f32 %v4762
    %vm5274 = vweird.f32 %v5267
    %vm5275 = vmor %vm5273, %vm5274
    %v5276 = vsel %vm5275, %v5267, %v5272
    %v5277 = vrsqrt.pop %v4763
    %v5278 = vmul.f32 %v5277, %v4763
    %v5279 = vmul.f32 %v5278, %v5277
    %v5280 = vmul.f32 0.5, %v5279
    %v5281 = vsub.f32 1.5, %v5280
    %v5282 = vmul.f32 %v5277, %v5281
    %vm5283 = vweird.f32 %v4763
    %vm5284 = vweird.f32 %v5277
    %vm5285 = vmor %vm5283, %vm5284
    %v5286 = vsel %vm5285, %v5277, %v5282
    %v5287 = vrsqrt.pop %v4764
    %v5288 = vmul.f32 %v5287, %v4764
    %v5289 = vmul.f32 %v5288, %v5287
    %v5290 = vmul.f32 0.5, %v5289
    %v5291 = vsub.f32 1.5, %v5290
    %v5292 = vmul.f32 %v5287, %v5291
    %vm5293 = vweird.f32 %v4764
    %vm5294 = vweird.f32 %v5287
    %vm5295 = vmor %vm5293, %vm5294
    %v5296 = vsel %vm5295, %v5287, %v5292
    %v5297 = vrsqrt.pop %v4765
    %v5298 = vmul.f32 %v5297, %v4765
    %v5299 = vmul.f32 %v5298, %v5297
    %v5300 = vmul.f32 0.5, %v5299
    %v5301 = vsub.f32 1.5, %v5300
    %v5302 = vmul.f32 %v5297, %v5301
    %vm5303 = vweird.f32 %v4765
    %vm5304 = vweird.f32 %v5297
    %vm5305 = vmor %vm5303, %vm5304
    %v5306 = vsel %vm5305, %v5297, %v5302
    %v5307 = vrsqrt.pop %v4766
    %v5308 = vmul.f32 %v5307, %v4766
    %v5309 = vmul.f32 %v5308, %v5307
    %v5310 = vmul.f32 0.5, %v5309
    %v5311 = vsub.f32 1.5, %v5310
    %v5312 = vmul.f32 %v5307, %v5311
    %vm5313 = vweird.f32 %v4766
    %vm5314 = vweird.f32 %v5307
    %vm5315 = vmor %vm5313, %vm5314
    %v5316 = vsel %vm5315, %v5307, %v5312
    %v5317 = vrsqrt.pop %v4767
    %v5318 = vmul.f32 %v5317, %v4767
    %v5319 = vmul.f32 %v5318, %v5317
    %v5320 = vmul.f32 0.5, %v5319
    %v5321 = vsub.f32 1.5, %v5320
    %v5322 = vmul.f32 %v5317, %v5321
    %vm5323 = vweird.f32 %v4767
    %vm5324 = vweird.f32 %v5317
    %vm5325 = vmor %vm5323, %vm5324
    %v5326 = vsel %vm5325, %v5317, %v5322
    %v5327 = vrsqrt.pop %v4768
    %v5328 = vmul.f32 %v5327, %v4768
    %v5329 = vmul.f32 %v5328, %v5327
    %v5330 = vmul.f32 0.5, %v5329
    %v5331 = vsub.f32 1.5, %v5330
    %v5332 = vmul.f32 %v5327, %v5331
    %vm5333 = vweird.f32 %v4768
    %vm5334 = vweird.f32 %v5327
    %vm5335 = vmor %vm5333, %vm5334
    %v5336 = vsel %vm5335, %v5327, %v5332
    %v5337 = vrsqrt.pop %v4769
    %v5338 = vmul.f32 %v5337, %v4769
    %v5339 = vmul.f32 %v5338, %v5337
    %v5340 = vmul.f32 0.5, %v5339
    %v5341 = vsub.f32 1.5, %v5340
    %v5342 = vmul.f32 %v5337, %v5341
    %vm5343 = vweird.f32 %v4769
    %vm5344 = vweird.f32 %v5337
    %vm5345 = vmor %vm5343, %vm5344
    %v5346 = vsel %vm5345, %v5337, %v5342
    %v5347 = vrsqrt.pop %v4770
    %v5348 = vmul.f32 %v5347, %v4770
    %v5349 = vmul.f32 %v5348, %v5347
    %v5350 = vmul.f32 0.5, %v5349
    %v5351 = vsub.f32 1.5, %v5350
    %v5352 = vmul.f32 %v5347, %v5351
    %vm5353 = vweird.f32 %v4770
    %vm5354 = vweird.f32 %v5347
    %vm5355 = vmor %vm5353, %vm5354
    %v5356 = vsel %vm5355, %v5347, %v5352
    %v5357 = vrsqrt.pop %v4771
    %v5358 = vmul.f32 %v5357, %v4771
    %v5359 = vmul.f32 %v5358, %v5357
    %v5360 = vmul.f32 0.5, %v5359
    %v5361 = vsub.f32 1.5, %v5360
    %v5362 = vmul.f32 %v5357, %v5361
    %vm5363 = vweird.f32 %v4771
    %vm5364 = vweird.f32 %v5357
    %vm5365 = vmor %vm5363, %vm5364
    %v5366 = vsel %vm5365, %v5357, %v5362
    %v5367 = vrsqrt.pop %v4772
    %v5368 = vmul.f32 %v5367, %v4772
    %v5369 = vmul.f32 %v5368, %v5367
    %v5370 = vmul.f32 0.5, %v5369
    %v5371 = vsub.f32 1.5, %v5370
    %v5372 = vmul.f32 %v5367, %v5371
    %vm5373 = vweird.f32 %v4772
    %vm5374 = vweird.f32 %v5367
    %vm5375 = vmor %vm5373, %vm5374
    %v5376 = vsel %vm5375, %v5367, %v5372
    %v5377 = vrsqrt.pop %v4773
    %v5378 = vmul.f32 %v5377, %v4773
    %v5379 = vmul.f32 %v5378, %v5377
    %v5380 = vmul.f32 0.5, %v5379
    %v5381 = vsub.f32 1.5, %v5380
    %v5382 = vmul.f32 %v5377, %v5381
    %vm5383 = vweird.f32 %v4773
    %vm5384 = vweird.f32 %v5377
    %vm5385 = vmor %vm5383, %vm5384
    %v5386 = vsel %vm5385, %v5377, %v5382
    %v5387 = vrsqrt.pop %v4774
    %v5388 = vmul.f32 %v5387, %v4774
    %v5389 = vmul.f32 %v5388, %v5387
    %v5390 = vmul.f32 0.5, %v5389
    %v5391 = vsub.f32 1.5, %v5390
    %v5392 = vmul.f32 %v5387, %v5391
    %vm5393 = vweird.f32 %v4774
    %vm5394 = vweird.f32 %v5387
    %vm5395 = vmor %vm5393, %vm5394
    %v5396 = vsel %vm5395, %v5387, %v5392
    %v5397 = vrsqrt.pop %v4775
    %v5398 = vmul.f32 %v5397, %v4775
    %v5399 = vmul.f32 %v5398, %v5397
    %v5400 = vmul.f32 0.5, %v5399
    %v5401 = vsub.f32 1.5, %v5400
    %v5402 = vmul.f32 %v5397, %v5401
    %vm5403 = vweird.f32 %v4775
    %vm5404 = vweird.f32 %v5397
    %vm5405 = vmor %vm5403, %vm5404
    %v5406 = vsel %vm5405, %v5397, %v5402
    %v5407 = vrsqrt.pop %v4776
    %v5408 = vmul.f32 %v5407, %v4776
    %v5409 = vmul.f32 %v5408, %v5407
    %v5410 = vmul.f32 0.5, %v5409
    %v5411 = vsub.f32 1.5, %v5410
    %v5412 = vmul.f32 %v5407, %v5411
    %vm5413 = vweird.f32 %v4776
    %vm5414 = vweird.f32 %v5407
    %vm5415 = vmor %vm5413, %vm5414
    %v5416 = vsel %vm5415, %v5407, %v5412
    %v5418 = vsel %vm2256, %v3992, 0
    %v5421 = vsel %vm2256, %v3993, 0
    %v5424 = vsel %vm2256, %v3994, 0
    %v5427 = vsel %vm2256, %v3995, 0
    %v5430 = vsel %vm2256, %v3996, 0
    %v5433 = vsel %vm2256, %v3997, 0
    %v5436 = vsel %vm2256, %v3998, 0
    %v5439 = vsel %vm2256, %v3999, 0
    %v5442 = vsel %vm2256, %v4000, 0
    %v5445 = vsel %vm2256, %v4001, 0
    %v5448 = vsel %vm2256, %v4002, 0
    %v5451 = vsel %vm2256, %v4003, 0
    %v5454 = vsel %vm2256, %v4004, 0
    %v5457 = vsel %vm2256, %v4005, 0
    %v5460 = vsel %vm2256, %v4006, 0
    %v5463 = vsel %vm2256, %v4007, 0
    %v5466 = vsel %vm2256, %v4008, 0
    %v5469 = vsel %vm2256, %v4009, 0
    %v5472 = vsel %vm2256, %v4010, 0
    %v5475 = vsel %vm2256, %v4011, 0
    %v5478 = vsel %vm2256, %v4012, 0
    %v5481 = vsel %vm2256, %v4013, 0
    %v5484 = vsel %vm2256, %v4014, 0
    %v5487 = vsel %vm2256, %v4015, 0
    %v5490 = vsel %vm2256, %v4016, 0
    %v5493 = vsel %vm2256, %v4017, 0
    %v5496 = vsel %vm2256, %v4018, 0
    %v5499 = vsel %vm2256, %v4019, 0
    %v5502 = vsel %vm2256, %v4020, 0
    %v5505 = vsel %vm2256, %v4021, 0
    %v5508 = vsel %vm2256, %v4022, 0
    %v5511 = vsel %vm2256, %v4023, 0
    %v5514 = vsel %vm2256, %v4024, 0
    %v5517 = vsel %vm2256, %v4025, 0
    %v5520 = vsel %vm2256, %v4026, 0
    %v5523 = vsel %vm2256, %v4027, 0
    %v5526 = vsel %vm2256, %v4028, 0
    %v5529 = vsel %vm2256, %v4029, 0
    %v5532 = vsel %vm2256, %v4030, 0
    %v5535 = vsel %vm2256, %v4031, 0
    %v5538 = vsel %vm2256, %v4032, 0
    %v5541 = vsel %vm2256, %v4033, 0
    %v5544 = vsel %vm2256, %v4034, 0
    %v5547 = vsel %vm2256, %v4035, 0
    %v5550 = vsel %vm2256, %v4036, 0
    %v5553 = vsel %vm2256, %v4037, 0
    %v5556 = vsel %vm2256, %v4038, 0
    %v5559 = vsel %vm2256, %v4039, 0
    %v5562 = vsel %vm2256, %v4040, 0
    %v5565 = vsel %vm2256, %v4041, 0
    %v5568 = vsel %vm2256, %v4042, 0
    %v5571 = vsel %vm2256, %v4043, 0
    %v5574 = vsel %vm2256, %v4044, 0
    %v5577 = vsel %vm2256, %v4045, 0
    %v5580 = vsel %vm2256, %v4046, 0
    %v5583 = vsel %vm2256, %v4047, 0
    %v5586 = vsel %vm2256, %v4048, 0
    %v5589 = vsel %vm2256, %v4049, 0
    %v5592 = vsel %vm2256, %v4050, 0
    %v5595 = vsel %vm2256, %v4051, 0
    %v5598 = vsel %vm2256, %v4052, 0
    %v5601 = vsel %vm2256, %v4053, 0
    %v5604 = vsel %vm2256, %v4054, 0
    %v5607 = vsel %vm2256, %v4055, 0
    %5609 = vmatpush.msra.mxu0 0.0
    %5610 = vmatpush.msra.mxu0 0.0
    %5611 = vmatpush.msra.mxu0 0.0
    %5612 = vmatpush.msra.mxu0 0.0
    %5613 = vmatpush.msra.mxu0 0.0
    %5614 = vmatpush.msra.mxu0 0.0
    %5615 = vmatpush.msra.mxu0 0.0
    %5616 = vmatpush.msra.mxu0 0.0
    %5617 = vmatpush.msra.mxu0 0.0
    %5618 = vmatpush.msra.mxu0 0.0
    %5619 = vmatpush.msra.mxu0 0.0
    %5620 = vmatpush.msra.mxu0 0.0
    %5621 = vmatpush.msra.mxu0 0.0
    %5622 = vmatpush.msra.mxu0 0.0
    %5623 = vmatpush.msra.mxu0 0.0
    %5624 = vmatpush.msra.mxu0 %v2451
    %5625 = vmatmul.f32.gmra.mxu0 %v5418
    %v5626 = vpop.f32.mrf.mxu0
    %v5627 = vadd.f32 0.0, %v5626
    %5628 = vmatmul.f32.gmra.mxu0 %v5421
    %v5629 = vpop.f32.mrf.mxu0
    %v5630 = vadd.f32 0.0, %v5629
    %5631 = vmatmul.f32.gmra.mxu0 %v5424
    %v5632 = vpop.f32.mrf.mxu0
    %v5633 = vadd.f32 0.0, %v5632
    %5634 = vmatmul.f32.gmra.mxu0 %v5427
    %v5635 = vpop.f32.mrf.mxu0
    %v5636 = vadd.f32 0.0, %v5635
    %5637 = vmatmul.f32.gmra.mxu0 %v5430
    %v5638 = vpop.f32.mrf.mxu0
    %v5639 = vadd.f32 0.0, %v5638
    %5640 = vmatmul.f32.gmra.mxu0 %v5433
    %v5641 = vpop.f32.mrf.mxu0
    %v5642 = vadd.f32 0.0, %v5641
    %5643 = vmatmul.f32.gmra.mxu0 %v5436
    %v5644 = vpop.f32.mrf.mxu0
    %v5645 = vadd.f32 0.0, %v5644
    %5646 = vmatmul.f32.gmra.mxu0 %v5439
    %v5647 = vpop.f32.mrf.mxu0
    %v5648 = vadd.f32 0.0, %v5647
    %5649 = vmatmul.f32.gmra.mxu0 %v5442
    %v5650 = vpop.f32.mrf.mxu0
    %v5651 = vadd.f32 0.0, %v5650
    %5652 = vmatmul.f32.gmra.mxu0 %v5445
    %v5653 = vpop.f32.mrf.mxu0
    %v5654 = vadd.f32 0.0, %v5653
    %5655 = vmatmul.f32.gmra.mxu0 %v5448
    %v5656 = vpop.f32.mrf.mxu0
    %v5657 = vadd.f32 0.0, %v5656
    %5658 = vmatmul.f32.gmra.mxu0 %v5451
    %v5659 = vpop.f32.mrf.mxu0
    %v5660 = vadd.f32 0.0, %v5659
    %5661 = vmatmul.f32.gmra.mxu0 %v5454
    %v5662 = vpop.f32.mrf.mxu0
    %v5663 = vadd.f32 0.0, %v5662
    %5664 = vmatmul.f32.gmra.mxu0 %v5457
    %v5665 = vpop.f32.mrf.mxu0
    %v5666 = vadd.f32 0.0, %v5665
    %5667 = vmatmul.f32.gmra.mxu0 %v5460
    %v5668 = vpop.f32.mrf.mxu0
    %v5669 = vadd.f32 0.0, %v5668
    %5670 = vmatmul.f32.gmra.mxu0 %v5463
    %v5671 = vpop.f32.mrf.mxu0
    %v5672 = vadd.f32 0.0, %v5671
    %5673 = vmatmul.f32.gmra.mxu0 %v5466
    %v5674 = vpop.f32.mrf.mxu0
    %v5675 = vadd.f32 0.0, %v5674
    %5676 = vmatmul.f32.gmra.mxu0 %v5469
    %v5677 = vpop.f32.mrf.mxu0
    %v5678 = vadd.f32 0.0, %v5677
    %5679 = vmatmul.f32.gmra.mxu0 %v5472
    %v5680 = vpop.f32.mrf.mxu0
    %v5681 = vadd.f32 0.0, %v5680
    %5682 = vmatmul.f32.gmra.mxu0 %v5475
    %v5683 = vpop.f32.mrf.mxu0
    %v5684 = vadd.f32 0.0, %v5683
    %5685 = vmatmul.f32.gmra.mxu0 %v5478
    %v5686 = vpop.f32.mrf.mxu0
    %v5687 = vadd.f32 0.0, %v5686
    %5688 = vmatmul.f32.gmra.mxu0 %v5481
    %v5689 = vpop.f32.mrf.mxu0
    %v5690 = vadd.f32 0.0, %v5689
    %5691 = vmatmul.f32.gmra.mxu0 %v5484
    %v5692 = vpop.f32.mrf.mxu0
    %v5693 = vadd.f32 0.0, %v5692
    %5694 = vmatmul.f32.gmra.mxu0 %v5487
    %v5695 = vpop.f32.mrf.mxu0
    %v5696 = vadd.f32 0.0, %v5695
    %5697 = vmatmul.f32.gmra.mxu0 %v5490
    %v5698 = vpop.f32.mrf.mxu0
    %v5699 = vadd.f32 0.0, %v5698
    %5700 = vmatmul.f32.gmra.mxu0 %v5493
    %v5701 = vpop.f32.mrf.mxu0
    %v5702 = vadd.f32 0.0, %v5701
    %5703 = vmatmul.f32.gmra.mxu0 %v5496
    %v5704 = vpop.f32.mrf.mxu0
    %v5705 = vadd.f32 0.0, %v5704
    %5706 = vmatmul.f32.gmra.mxu0 %v5499
    %v5707 = vpop.f32.mrf.mxu0
    %v5708 = vadd.f32 0.0, %v5707
    %5709 = vmatmul.f32.gmra.mxu0 %v5502
    %v5710 = vpop.f32.mrf.mxu0
    %v5711 = vadd.f32 0.0, %v5710
    %5712 = vmatmul.f32.gmra.mxu0 %v5505
    %v5713 = vpop.f32.mrf.mxu0
    %v5714 = vadd.f32 0.0, %v5713
    %5715 = vmatmul.f32.gmra.mxu0 %v5508
    %v5716 = vpop.f32.mrf.mxu0
    %v5717 = vadd.f32 0.0, %v5716
    %5718 = vmatmul.f32.gmra.mxu0 %v5511
    %v5719 = vpop.f32.mrf.mxu0
    %v5720 = vadd.f32 0.0, %v5719
    %5721 = vmatmul.f32.gmra.mxu0 %v5514
    %v5722 = vpop.f32.mrf.mxu0
    %v5723 = vadd.f32 0.0, %v5722
    %5724 = vmatmul.f32.gmra.mxu0 %v5517
    %v5725 = vpop.f32.mrf.mxu0
    %v5726 = vadd.f32 0.0, %v5725
    %5727 = vmatmul.f32.gmra.mxu0 %v5520
    %v5728 = vpop.f32.mrf.mxu0
    %v5729 = vadd.f32 0.0, %v5728
    %5730 = vmatmul.f32.gmra.mxu0 %v5523
    %v5731 = vpop.f32.mrf.mxu0
    %v5732 = vadd.f32 0.0, %v5731
    %5733 = vmatmul.f32.gmra.mxu0 %v5526
    %v5734 = vpop.f32.mrf.mxu0
    %v5735 = vadd.f32 0.0, %v5734
    %5736 = vmatmul.f32.gmra.mxu0 %v5529
    %v5737 = vpop.f32.mrf.mxu0
    %v5738 = vadd.f32 0.0, %v5737
    %5739 = vmatmul.f32.gmra.mxu0 %v5532
    %v5740 = vpop.f32.mrf.mxu0
    %v5741 = vadd.f32 0.0, %v5740
    %5742 = vmatmul.f32.gmra.mxu0 %v5535
    %v5743 = vpop.f32.mrf.mxu0
    %v5744 = vadd.f32 0.0, %v5743
    %5745 = vmatmul.f32.gmra.mxu0 %v5538
    %v5746 = vpop.f32.mrf.mxu0
    %v5747 = vadd.f32 0.0, %v5746
    %5748 = vmatmul.f32.gmra.mxu0 %v5541
    %v5749 = vpop.f32.mrf.mxu0
    %v5750 = vadd.f32 0.0, %v5749
    %5751 = vmatmul.f32.gmra.mxu0 %v5544
    %v5752 = vpop.f32.mrf.mxu0
    %v5753 = vadd.f32 0.0, %v5752
    %5754 = vmatmul.f32.gmra.mxu0 %v5547
    %v5755 = vpop.f32.mrf.mxu0
    %v5756 = vadd.f32 0.0, %v5755
    %5757 = vmatmul.f32.gmra.mxu0 %v5550
    %v5758 = vpop.f32.mrf.mxu0
    %v5759 = vadd.f32 0.0, %v5758
    %5760 = vmatmul.f32.gmra.mxu0 %v5553
    %v5761 = vpop.f32.mrf.mxu0
    %v5762 = vadd.f32 0.0, %v5761
    %5763 = vmatmul.f32.gmra.mxu0 %v5556
    %v5764 = vpop.f32.mrf.mxu0
    %v5765 = vadd.f32 0.0, %v5764
    %5766 = vmatmul.f32.gmra.mxu0 %v5559
    %v5767 = vpop.f32.mrf.mxu0
    %v5768 = vadd.f32 0.0, %v5767
    %5769 = vmatmul.f32.gmra.mxu0 %v5562
    %v5770 = vpop.f32.mrf.mxu0
    %v5771 = vadd.f32 0.0, %v5770
    %5772 = vmatmul.f32.gmra.mxu0 %v5565
    %v5773 = vpop.f32.mrf.mxu0
    %v5774 = vadd.f32 0.0, %v5773
    %5775 = vmatmul.f32.gmra.mxu0 %v5568
    %v5776 = vpop.f32.mrf.mxu0
    %v5777 = vadd.f32 0.0, %v5776
    %5778 = vmatmul.f32.gmra.mxu0 %v5571
    %v5779 = vpop.f32.mrf.mxu0
    %v5780 = vadd.f32 0.0, %v5779
    %5781 = vmatmul.f32.gmra.mxu0 %v5574
    %v5782 = vpop.f32.mrf.mxu0
    %v5783 = vadd.f32 0.0, %v5782
    %5784 = vmatmul.f32.gmra.mxu0 %v5577
    %v5785 = vpop.f32.mrf.mxu0
    %v5786 = vadd.f32 0.0, %v5785
    %5787 = vmatmul.f32.gmra.mxu0 %v5580
    %v5788 = vpop.f32.mrf.mxu0
    %v5789 = vadd.f32 0.0, %v5788
    %5790 = vmatmul.f32.gmra.mxu0 %v5583
    %v5791 = vpop.f32.mrf.mxu0
    %v5792 = vadd.f32 0.0, %v5791
    %5793 = vmatmul.f32.gmra.mxu0 %v5586
    %v5794 = vpop.f32.mrf.mxu0
    %v5795 = vadd.f32 0.0, %v5794
    %5796 = vmatmul.f32.gmra.mxu0 %v5589
    %v5797 = vpop.f32.mrf.mxu0
    %v5798 = vadd.f32 0.0, %v5797
    %5799 = vmatmul.f32.gmra.mxu0 %v5592
    %v5800 = vpop.f32.mrf.mxu0
    %v5801 = vadd.f32 0.0, %v5800
    %5802 = vmatmul.f32.gmra.mxu0 %v5595
    %v5803 = vpop.f32.mrf.mxu0
    %v5804 = vadd.f32 0.0, %v5803
    %5805 = vmatmul.f32.gmra.mxu0 %v5598
    %v5806 = vpop.f32.mrf.mxu0
    %v5807 = vadd.f32 0.0, %v5806
    %5808 = vmatmul.f32.gmra.mxu0 %v5601
    %v5809 = vpop.f32.mrf.mxu0
    %v5810 = vadd.f32 0.0, %v5809
    %5811 = vmatmul.f32.gmra.mxu0 %v5604
    %v5812 = vpop.f32.mrf.mxu0
    %v5813 = vadd.f32 0.0, %v5812
    %5814 = vmatmul.f32.gmra.mxu0 %v5607
    %v5815 = vpop.f32.mrf.mxu0
    %v5816 = vadd.f32 0.0, %v5815
    %5817 = vdwg.mxu0
    %v5819 = vsel %vm2256, %v4786, 0
    %v5822 = vsel %vm2256, %v4796, 0
    %v5825 = vsel %vm2256, %v4806, 0
    %v5828 = vsel %vm2256, %v4816, 0
    %v5831 = vsel %vm2256, %v4826, 0
    %v5834 = vsel %vm2256, %v4836, 0
    %v5837 = vsel %vm2256, %v4846, 0
    %v5840 = vsel %vm2256, %v4856, 0
    %v5843 = vsel %vm2256, %v4866, 0
    %v5846 = vsel %vm2256, %v4876, 0
    %v5849 = vsel %vm2256, %v4886, 0
    %v5852 = vsel %vm2256, %v4896, 0
    %v5855 = vsel %vm2256, %v4906, 0
    %v5858 = vsel %vm2256, %v4916, 0
    %v5861 = vsel %vm2256, %v4926, 0
    %v5864 = vsel %vm2256, %v4936, 0
    %v5867 = vsel %vm2256, %v4946, 0
    %v5870 = vsel %vm2256, %v4956, 0
    %v5873 = vsel %vm2256, %v4966, 0
    %v5876 = vsel %vm2256, %v4976, 0
    %v5879 = vsel %vm2256, %v4986, 0
    %v5882 = vsel %vm2256, %v4996, 0
    %v5885 = vsel %vm2256, %v5006, 0
    %v5888 = vsel %vm2256, %v5016, 0
    %v5891 = vsel %vm2256, %v5026, 0
    %v5894 = vsel %vm2256, %v5036, 0
    %v5897 = vsel %vm2256, %v5046, 0
    %v5900 = vsel %vm2256, %v5056, 0
    %v5903 = vsel %vm2256, %v5066, 0
    %v5906 = vsel %vm2256, %v5076, 0
    %v5909 = vsel %vm2256, %v5086, 0
    %v5912 = vsel %vm2256, %v5096, 0
    %v5915 = vsel %vm2256, %v5106, 0
    %v5918 = vsel %vm2256, %v5116, 0
    %v5921 = vsel %vm2256, %v5126, 0
    %v5924 = vsel %vm2256, %v5136, 0
    %v5927 = vsel %vm2256, %v5146, 0
    %v5930 = vsel %vm2256, %v5156, 0
    %v5933 = vsel %vm2256, %v5166, 0
    %v5936 = vsel %vm2256, %v5176, 0
    %v5939 = vsel %vm2256, %v5186, 0
    %v5942 = vsel %vm2256, %v5196, 0
    %v5945 = vsel %vm2256, %v5206, 0
    %v5948 = vsel %vm2256, %v5216, 0
    %v5951 = vsel %vm2256, %v5226, 0
    %v5954 = vsel %vm2256, %v5236, 0
    %v5957 = vsel %vm2256, %v5246, 0
    %v5960 = vsel %vm2256, %v5256, 0
    %v5963 = vsel %vm2256, %v5266, 0
    %v5966 = vsel %vm2256, %v5276, 0
    %v5969 = vsel %vm2256, %v5286, 0
    %v5972 = vsel %vm2256, %v5296, 0
    %v5975 = vsel %vm2256, %v5306, 0
    %v5978 = vsel %vm2256, %v5316, 0
    %v5981 = vsel %vm2256, %v5326, 0
    %v5984 = vsel %vm2256, %v5336, 0
    %v5987 = vsel %vm2256, %v5346, 0
    %v5990 = vsel %vm2256, %v5356, 0
    %v5993 = vsel %vm2256, %v5366, 0
    %v5996 = vsel %vm2256, %v5376, 0
    %v5999 = vsel %vm2256, %v5386, 0
    %v6002 = vsel %vm2256, %v5396, 0
    %v6005 = vsel %vm2256, %v5406, 0
    %v6008 = vsel %vm2256, %v5416, 0
    %6010 = vmatpush.msra.mxu0 0.0
    %6011 = vmatpush.msra.mxu0 0.0
    %6012 = vmatpush.msra.mxu0 0.0
    %6013 = vmatpush.msra.mxu0 0.0
    %6014 = vmatpush.msra.mxu0 0.0
    %6015 = vmatpush.msra.mxu0 0.0
    %6016 = vmatpush.msra.mxu0 0.0
    %6017 = vmatpush.msra.mxu0 0.0
    %6018 = vmatpush.msra.mxu0 0.0
    %6019 = vmatpush.msra.mxu0 0.0
    %6020 = vmatpush.msra.mxu0 0.0
    %6021 = vmatpush.msra.mxu0 0.0
    %6022 = vmatpush.msra.mxu0 0.0
    %6023 = vmatpush.msra.mxu0 0.0
    %6024 = vmatpush.msra.mxu0 0.0
    %6025 = vmatpush.msra.mxu0 %v2451
    %6026 = vmatmul.f32.gmra.mxu0 %v5819
    %v6027 = vpop.f32.mrf.mxu0
    %v6028 = vadd.f32 0.0, %v6027
    %6029 = vmatmul.f32.gmra.mxu0 %v5822
    %v6030 = vpop.f32.mrf.mxu0
    %v6031 = vadd.f32 0.0, %v6030
    %6032 = vmatmul.f32.gmra.mxu0 %v5825
    %v6033 = vpop.f32.mrf.mxu0
    %v6034 = vadd.f32 0.0, %v6033
    %6035 = vmatmul.f32.gmra.mxu0 %v5828
    %v6036 = vpop.f32.mrf.mxu0
    %v6037 = vadd.f32 0.0, %v6036
    %6038 = vmatmul.f32.gmra.mxu0 %v5831
    %v6039 = vpop.f32.mrf.mxu0
    %v6040 = vadd.f32 0.0, %v6039
    %6041 = vmatmul.f32.gmra.mxu0 %v5834
    %v6042 = vpop.f32.mrf.mxu0
    %v6043 = vadd.f32 0.0, %v6042
    %6044 = vmatmul.f32.gmra.mxu0 %v5837
    %v6045 = vpop.f32.mrf.mxu0
    %v6046 = vadd.f32 0.0, %v6045
    %6047 = vmatmul.f32.gmra.mxu0 %v5840
    %v6048 = vpop.f32.mrf.mxu0
    %v6049 = vadd.f32 0.0, %v6048
    %6050 = vmatmul.f32.gmra.mxu0 %v5843
    %v6051 = vpop.f32.mrf.mxu0
    %v6052 = vadd.f32 0.0, %v6051
    %6053 = vmatmul.f32.gmra.mxu0 %v5846
    %v6054 = vpop.f32.mrf.mxu0
    %v6055 = vadd.f32 0.0, %v6054
    %6056 = vmatmul.f32.gmra.mxu0 %v5849
    %v6057 = vpop.f32.mrf.mxu0
    %v6058 = vadd.f32 0.0, %v6057
    %6059 = vmatmul.f32.gmra.mxu0 %v5852
    %v6060 = vpop.f32.mrf.mxu0
    %v6061 = vadd.f32 0.0, %v6060
    %6062 = vmatmul.f32.gmra.mxu0 %v5855
    %v6063 = vpop.f32.mrf.mxu0
    %v6064 = vadd.f32 0.0, %v6063
    %6065 = vmatmul.f32.gmra.mxu0 %v5858
    %v6066 = vpop.f32.mrf.mxu0
    %v6067 = vadd.f32 0.0, %v6066
    %6068 = vmatmul.f32.gmra.mxu0 %v5861
    %v6069 = vpop.f32.mrf.mxu0
    %v6070 = vadd.f32 0.0, %v6069
    %6071 = vmatmul.f32.gmra.mxu0 %v5864
    %v6072 = vpop.f32.mrf.mxu0
    %v6073 = vadd.f32 0.0, %v6072
    %6074 = vmatmul.f32.gmra.mxu0 %v5867
    %v6075 = vpop.f32.mrf.mxu0
    %v6076 = vadd.f32 0.0, %v6075
    %6077 = vmatmul.f32.gmra.mxu0 %v5870
    %v6078 = vpop.f32.mrf.mxu0
    %v6079 = vadd.f32 0.0, %v6078
    %6080 = vmatmul.f32.gmra.mxu0 %v5873
    %v6081 = vpop.f32.mrf.mxu0
    %v6082 = vadd.f32 0.0, %v6081
    %6083 = vmatmul.f32.gmra.mxu0 %v5876
    %v6084 = vpop.f32.mrf.mxu0
    %v6085 = vadd.f32 0.0, %v6084
    %6086 = vmatmul.f32.gmra.mxu0 %v5879
    %v6087 = vpop.f32.mrf.mxu0
    %v6088 = vadd.f32 0.0, %v6087
    %6089 = vmatmul.f32.gmra.mxu0 %v5882
    %v6090 = vpop.f32.mrf.mxu0
    %v6091 = vadd.f32 0.0, %v6090
    %6092 = vmatmul.f32.gmra.mxu0 %v5885
    %v6093 = vpop.f32.mrf.mxu0
    %v6094 = vadd.f32 0.0, %v6093
    %6095 = vmatmul.f32.gmra.mxu0 %v5888
    %v6096 = vpop.f32.mrf.mxu0
    %v6097 = vadd.f32 0.0, %v6096
    %6098 = vmatmul.f32.gmra.mxu0 %v5891
    %v6099 = vpop.f32.mrf.mxu0
    %v6100 = vadd.f32 0.0, %v6099
    %6101 = vmatmul.f32.gmra.mxu0 %v5894
    %v6102 = vpop.f32.mrf.mxu0
    %v6103 = vadd.f32 0.0, %v6102
    %6104 = vmatmul.f32.gmra.mxu0 %v5897
    %v6105 = vpop.f32.mrf.mxu0
    %v6106 = vadd.f32 0.0, %v6105
    %6107 = vmatmul.f32.gmra.mxu0 %v5900
    %v6108 = vpop.f32.mrf.mxu0
    %v6109 = vadd.f32 0.0, %v6108
    %6110 = vmatmul.f32.gmra.mxu0 %v5903
    %v6111 = vpop.f32.mrf.mxu0
    %v6112 = vadd.f32 0.0, %v6111
    %6113 = vmatmul.f32.gmra.mxu0 %v5906
    %v6114 = vpop.f32.mrf.mxu0
    %v6115 = vadd.f32 0.0, %v6114
    %6116 = vmatmul.f32.gmra.mxu0 %v5909
    %v6117 = vpop.f32.mrf.mxu0
    %v6118 = vadd.f32 0.0, %v6117
    %6119 = vmatmul.f32.gmra.mxu0 %v5912
    %v6120 = vpop.f32.mrf.mxu0
    %v6121 = vadd.f32 0.0, %v6120
    %6122 = vmatmul.f32.gmra.mxu0 %v5915
    %v6123 = vpop.f32.mrf.mxu0
    %v6124 = vadd.f32 0.0, %v6123
    %6125 = vmatmul.f32.gmra.mxu0 %v5918
    %v6126 = vpop.f32.mrf.mxu0
    %v6127 = vadd.f32 0.0, %v6126
    %6128 = vmatmul.f32.gmra.mxu0 %v5921
    %v6129 = vpop.f32.mrf.mxu0
    %v6130 = vadd.f32 0.0, %v6129
    %6131 = vmatmul.f32.gmra.mxu0 %v5924
    %v6132 = vpop.f32.mrf.mxu0
    %v6133 = vadd.f32 0.0, %v6132
    %6134 = vmatmul.f32.gmra.mxu0 %v5927
    %v6135 = vpop.f32.mrf.mxu0
    %v6136 = vadd.f32 0.0, %v6135
    %6137 = vmatmul.f32.gmra.mxu0 %v5930
    %v6138 = vpop.f32.mrf.mxu0
    %v6139 = vadd.f32 0.0, %v6138
    %6140 = vmatmul.f32.gmra.mxu0 %v5933
    %v6141 = vpop.f32.mrf.mxu0
    %v6142 = vadd.f32 0.0, %v6141
    %6143 = vmatmul.f32.gmra.mxu0 %v5936
    %v6144 = vpop.f32.mrf.mxu0
    %v6145 = vadd.f32 0.0, %v6144
    %6146 = vmatmul.f32.gmra.mxu0 %v5939
    %v6147 = vpop.f32.mrf.mxu0
    %v6148 = vadd.f32 0.0, %v6147
    %6149 = vmatmul.f32.gmra.mxu0 %v5942
    %v6150 = vpop.f32.mrf.mxu0
    %v6151 = vadd.f32 0.0, %v6150
    %6152 = vmatmul.f32.gmra.mxu0 %v5945
    %v6153 = vpop.f32.mrf.mxu0
    %v6154 = vadd.f32 0.0, %v6153
    %6155 = vmatmul.f32.gmra.mxu0 %v5948
    %v6156 = vpop.f32.mrf.mxu0
    %v6157 = vadd.f32 0.0, %v6156
    %6158 = vmatmul.f32.gmra.mxu0 %v5951
    %v6159 = vpop.f32.mrf.mxu0
    %v6160 = vadd.f32 0.0, %v6159
    %6161 = vmatmul.f32.gmra.mxu0 %v5954
    %v6162 = vpop.f32.mrf.mxu0
    %v6163 = vadd.f32 0.0, %v6162
    %6164 = vmatmul.f32.gmra.mxu0 %v5957
    %v6165 = vpop.f32.mrf.mxu0
    %v6166 = vadd.f32 0.0, %v6165
    %6167 = vmatmul.f32.gmra.mxu0 %v5960
    %v6168 = vpop.f32.mrf.mxu0
    %v6169 = vadd.f32 0.0, %v6168
    %6170 = vmatmul.f32.gmra.mxu0 %v5963
    %v6171 = vpop.f32.mrf.mxu0
    %v6172 = vadd.f32 0.0, %v6171
    %6173 = vmatmul.f32.gmra.mxu0 %v5966
    %v6174 = vpop.f32.mrf.mxu0
    %v6175 = vadd.f32 0.0, %v6174
    %6176 = vmatmul.f32.gmra.mxu0 %v5969
    %v6177 = vpop.f32.mrf.mxu0
    %v6178 = vadd.f32 0.0, %v6177
    %6179 = vmatmul.f32.gmra.mxu0 %v5972
    %v6180 = vpop.f32.mrf.mxu0
    %v6181 = vadd.f32 0.0, %v6180
    %6182 = vmatmul.f32.gmra.mxu0 %v5975
    %v6183 = vpop.f32.mrf.mxu0
    %v6184 = vadd.f32 0.0, %v6183
    %6185 = vmatmul.f32.gmra.mxu0 %v5978
    %v6186 = vpop.f32.mrf.mxu0
    %v6187 = vadd.f32 0.0, %v6186
    %6188 = vmatmul.f32.gmra.mxu0 %v5981
    %v6189 = vpop.f32.mrf.mxu0
    %v6190 = vadd.f32 0.0, %v6189
    %6191 = vmatmul.f32.gmra.mxu0 %v5984
    %v6192 = vpop.f32.mrf.mxu0
    %v6193 = vadd.f32 0.0, %v6192
    %6194 = vmatmul.f32.gmra.mxu0 %v5987
    %v6195 = vpop.f32.mrf.mxu0
    %v6196 = vadd.f32 0.0, %v6195
    %6197 = vmatmul.f32.gmra.mxu0 %v5990
    %v6198 = vpop.f32.mrf.mxu0
    %v6199 = vadd.f32 0.0, %v6198
    %6200 = vmatmul.f32.gmra.mxu0 %v5993
    %v6201 = vpop.f32.mrf.mxu0
    %v6202 = vadd.f32 0.0, %v6201
    %6203 = vmatmul.f32.gmra.mxu0 %v5996
    %v6204 = vpop.f32.mrf.mxu0
    %v6205 = vadd.f32 0.0, %v6204
    %6206 = vmatmul.f32.gmra.mxu0 %v5999
    %v6207 = vpop.f32.mrf.mxu0
    %v6208 = vadd.f32 0.0, %v6207
    %6209 = vmatmul.f32.gmra.mxu0 %v6002
    %v6210 = vpop.f32.mrf.mxu0
    %v6211 = vadd.f32 0.0, %v6210
    %6212 = vmatmul.f32.gmra.mxu0 %v6005
    %v6213 = vpop.f32.mrf.mxu0
    %v6214 = vadd.f32 0.0, %v6213
    %6215 = vmatmul.f32.gmra.mxu0 %v6008
    %v6216 = vpop.f32.mrf.mxu0
    %v6217 = vadd.f32 0.0, %v6216
    %6218 = vdwg.mxu0
    %v6219 = vsub.f32 %v3432, %v5627
    %v6220 = vsub.f32 %v3434, %v5630
    %v6221 = vsub.f32 %v3437, %v5633
    %v6222 = vsub.f32 %v3439, %v5636
    %v6223 = vsub.f32 %v3442, %v5639
    %v6224 = vsub.f32 %v3444, %v5642
    %v6225 = vsub.f32 %v3447, %v5645
    %v6226 = vsub.f32 %v3449, %v5648
    %v6227 = vsub.f32 %v3452, %v5651
    %v6228 = vsub.f32 %v3454, %v5654
    %v6229 = vsub.f32 %v3457, %v5657
    %v6230 = vsub.f32 %v3459, %v5660
    %v6231 = vsub.f32 %v3462, %v5663
    %v6232 = vsub.f32 %v3464, %v5666
    %v6233 = vsub.f32 %v3467, %v5669
    %v6234 = vsub.f32 %v3469, %v5672
    %v6235 = vsub.f32 %v3472, %v5675
    %v6236 = vsub.f32 %v3474, %v5678
    %v6237 = vsub.f32 %v3477, %v5681
    %v6238 = vsub.f32 %v3479, %v5684
    %v6239 = vsub.f32 %v3482, %v5687
    %v6240 = vsub.f32 %v3484, %v5690
    %v6241 = vsub.f32 %v3487, %v5693
    %v6242 = vsub.f32 %v3489, %v5696
    %v6243 = vsub.f32 %v3492, %v5699
    %v6244 = vsub.f32 %v3494, %v5702
    %v6245 = vsub.f32 %v3497, %v5705
    %v6246 = vsub.f32 %v3499, %v5708
    %v6247 = vsub.f32 %v3502, %v5711
    %v6248 = vsub.f32 %v3504, %v5714
    %v6249 = vsub.f32 %v3507, %v5717
    %v6250 = vsub.f32 %v3509, %v5720
    %v6251 = vsub.f32 %v3512, %v5723
    %v6252 = vsub.f32 %v3514, %v5726
    %v6253 = vsub.f32 %v3517, %v5729
    %v6254 = vsub.f32 %v3519, %v5732
    %v6255 = vsub.f32 %v3522, %v5735
    %v6256 = vsub.f32 %v3524, %v5738
    %v6257 = vsub.f32 %v3527, %v5741
    %v6258 = vsub.f32 %v3529, %v5744
    %v6259 = vsub.f32 %v3532, %v5747
    %v6260 = vsub.f32 %v3534, %v5750
    %v6261 = vsub.f32 %v3537, %v5753
    %v6262 = vsub.f32 %v3539, %v5756
    %v6263 = vsub.f32 %v3542, %v5759
    %v6264 = vsub.f32 %v3544, %v5762
    %v6265 = vsub.f32 %v3547, %v5765
    %v6266 = vsub.f32 %v3549, %v5768
    %v6267 = vsub.f32 %v3552, %v5771
    %v6268 = vsub.f32 %v3554, %v5774
    %v6269 = vsub.f32 %v3557, %v5777
    %v6270 = vsub.f32 %v3559, %v5780
    %v6271 = vsub.f32 %v3562, %v5783
    %v6272 = vsub.f32 %v3564, %v5786
    %v6273 = vsub.f32 %v3567, %v5789
    %v6274 = vsub.f32 %v3569, %v5792
    %v6275 = vsub.f32 %v3572, %v5795
    %v6276 = vsub.f32 %v3574, %v5798
    %v6277 = vsub.f32 %v3577, %v5801
    %v6278 = vsub.f32 %v3579, %v5804
    %v6279 = vsub.f32 %v3582, %v5807
    %v6280 = vsub.f32 %v3584, %v5810
    %v6281 = vsub.f32 %v3587, %v5813
    %v6282 = vsub.f32 %v3589, %v5816
    %v6283 = vmul.f32 %v6028, %v3128
    %v6284 = vmul.f32 %v6031, %v3128
    %v6285 = vmul.f32 %v6034, %v3128
    %v6286 = vmul.f32 %v6037, %v3128
    %v6287 = vmul.f32 %v6040, %v3128
    %v6288 = vmul.f32 %v6043, %v3128
    %v6289 = vmul.f32 %v6046, %v3128
    %v6290 = vmul.f32 %v6049, %v3128
    %v6291 = vmul.f32 %v6052, %v3128
    %v6292 = vmul.f32 %v6055, %v3128
    %v6293 = vmul.f32 %v6058, %v3128
    %v6294 = vmul.f32 %v6061, %v3128
    %v6295 = vmul.f32 %v6064, %v3128
    %v6296 = vmul.f32 %v6067, %v3128
    %v6297 = vmul.f32 %v6070, %v3128
    %v6298 = vmul.f32 %v6073, %v3128
    %v6299 = vmul.f32 %v6076, %v3128
    %v6300 = vmul.f32 %v6079, %v3128
    %v6301 = vmul.f32 %v6082, %v3128
    %v6302 = vmul.f32 %v6085, %v3128
    %v6303 = vmul.f32 %v6088, %v3128
    %v6304 = vmul.f32 %v6091, %v3128
    %v6305 = vmul.f32 %v6094, %v3128
    %v6306 = vmul.f32 %v6097, %v3128
    %v6307 = vmul.f32 %v6100, %v3128
    %v6308 = vmul.f32 %v6103, %v3128
    %v6309 = vmul.f32 %v6106, %v3128
    %v6310 = vmul.f32 %v6109, %v3128
    %v6311 = vmul.f32 %v6112, %v3128
    %v6312 = vmul.f32 %v6115, %v3128
    %v6313 = vmul.f32 %v6118, %v3128
    %v6314 = vmul.f32 %v6121, %v3128
    %v6315 = vmul.f32 %v6124, %v3128
    %v6316 = vmul.f32 %v6127, %v3128
    %v6317 = vmul.f32 %v6130, %v3128
    %v6318 = vmul.f32 %v6133, %v3128
    %v6319 = vmul.f32 %v6136, %v3128
    %v6320 = vmul.f32 %v6139, %v3128
    %v6321 = vmul.f32 %v6142, %v3128
    %v6322 = vmul.f32 %v6145, %v3128
    %v6323 = vmul.f32 %v6148, %v3128
    %v6324 = vmul.f32 %v6151, %v3128
    %v6325 = vmul.f32 %v6154, %v3128
    %v6326 = vmul.f32 %v6157, %v3128
    %v6327 = vmul.f32 %v6160, %v3128
    %v6328 = vmul.f32 %v6163, %v3128
    %v6329 = vmul.f32 %v6166, %v3128
    %v6330 = vmul.f32 %v6169, %v3128
    %v6331 = vmul.f32 %v6172, %v3128
    %v6332 = vmul.f32 %v6175, %v3128
    %v6333 = vmul.f32 %v6178, %v3128
    %v6334 = vmul.f32 %v6181, %v3128
    %v6335 = vmul.f32 %v6184, %v3128
    %v6336 = vmul.f32 %v6187, %v3128
    %v6337 = vmul.f32 %v6190, %v3128
    %v6338 = vmul.f32 %v6193, %v3128
    %v6339 = vmul.f32 %v6196, %v3128
    %v6340 = vmul.f32 %v6199, %v3128
    %v6341 = vmul.f32 %v6202, %v3128
    %v6342 = vmul.f32 %v6205, %v3128
    %v6343 = vmul.f32 %v6208, %v3128
    %v6344 = vmul.f32 %v6211, %v3128
    %v6345 = vmul.f32 %v6214, %v3128
    %v6346 = vmul.f32 %v6217, %v3128
    %v6347 = vmul.f32 %v6219, %v6283
    %v6348 = vmul.f32 %v6220, %v6284
    %v6349 = vmul.f32 %v6221, %v6285
    %v6350 = vmul.f32 %v6222, %v6286
    %v6351 = vmul.f32 %v6223, %v6287
    %v6352 = vmul.f32 %v6224, %v6288
    %v6353 = vmul.f32 %v6225, %v6289
    %v6354 = vmul.f32 %v6226, %v6290
    %v6355 = vmul.f32 %v6227, %v6291
    %v6356 = vmul.f32 %v6228, %v6292
    %v6357 = vmul.f32 %v6229, %v6293
    %v6358 = vmul.f32 %v6230, %v6294
    %v6359 = vmul.f32 %v6231, %v6295
    %v6360 = vmul.f32 %v6232, %v6296
    %v6361 = vmul.f32 %v6233, %v6297
    %v6362 = vmul.f32 %v6234, %v6298
    %v6363 = vmul.f32 %v6235, %v6299
    %v6364 = vmul.f32 %v6236, %v6300
    %v6365 = vmul.f32 %v6237, %v6301
    %v6366 = vmul.f32 %v6238, %v6302
    %v6367 = vmul.f32 %v6239, %v6303
    %v6368 = vmul.f32 %v6240, %v6304
    %v6369 = vmul.f32 %v6241, %v6305
    %v6370 = vmul.f32 %v6242, %v6306
    %v6371 = vmul.f32 %v6243, %v6307
    %v6372 = vmul.f32 %v6244, %v6308
    %v6373 = vmul.f32 %v6245, %v6309
    %v6374 = vmul.f32 %v6246, %v6310
    %v6375 = vmul.f32 %v6247, %v6311
    %v6376 = vmul.f32 %v6248, %v6312
    %v6377 = vmul.f32 %v6249, %v6313
    %v6378 = vmul.f32 %v6250, %v6314
    %v6379 = vmul.f32 %v6251, %v6315
    %v6380 = vmul.f32 %v6252, %v6316
    %v6381 = vmul.f32 %v6253, %v6317
    %v6382 = vmul.f32 %v6254, %v6318
    %v6383 = vmul.f32 %v6255, %v6319
    %v6384 = vmul.f32 %v6256, %v6320
    %v6385 = vmul.f32 %v6257, %v6321
    %v6386 = vmul.f32 %v6258, %v6322
    %v6387 = vmul.f32 %v6259, %v6323
    %v6388 = vmul.f32 %v6260, %v6324
    %v6389 = vmul.f32 %v6261, %v6325
    %v6390 = vmul.f32 %v6262, %v6326
    %v6391 = vmul.f32 %v6263, %v6327
    %v6392 = vmul.f32 %v6264, %v6328
    %v6393 = vmul.f32 %v6265, %v6329
    %v6394 = vmul.f32 %v6266, %v6330
    %v6395 = vmul.f32 %v6267, %v6331
    %v6396 = vmul.f32 %v6268, %v6332
    %v6397 = vmul.f32 %v6269, %v6333
    %v6398 = vmul.f32 %v6270, %v6334
    %v6399 = vmul.f32 %v6271, %v6335
    %v6400 = vmul.f32 %v6272, %v6336
    %v6401 = vmul.f32 %v6273, %v6337
    %v6402 = vmul.f32 %v6274, %v6338
    %v6403 = vmul.f32 %v6275, %v6339
    %v6404 = vmul.f32 %v6276, %v6340
    %v6405 = vmul.f32 %v6277, %v6341
    %v6406 = vmul.f32 %v6278, %v6342
    %v6407 = vmul.f32 %v6279, %v6343
    %v6408 = vmul.f32 %v6280, %v6344
    %v6409 = vmul.f32 %v6281, %v6345
    %v6410 = vmul.f32 %v6282, %v6346
    %v6411 = vadd.f32 %v6347, %v3259
    %v6412 = vadd.f32 %v6348, %v3259
    %v6413 = vadd.f32 %v6349, %v3259
    %v6414 = vadd.f32 %v6350, %v3259
    %v6415 = vadd.f32 %v6351, %v3259
    %v6416 = vadd.f32 %v6352, %v3259
    %v6417 = vadd.f32 %v6353, %v3259
    %v6418 = vadd.f32 %v6354, %v3259
    %v6419 = vadd.f32 %v6355, %v3259
    %v6420 = vadd.f32 %v6356, %v3259
    %v6421 = vadd.f32 %v6357, %v3259
    %v6422 = vadd.f32 %v6358, %v3259
    %v6423 = vadd.f32 %v6359, %v3259
    %v6424 = vadd.f32 %v6360, %v3259
    %v6425 = vadd.f32 %v6361, %v3259
    %v6426 = vadd.f32 %v6362, %v3259
    %v6427 = vadd.f32 %v6363, %v3259
    %v6428 = vadd.f32 %v6364, %v3259
    %v6429 = vadd.f32 %v6365, %v3259
    %v6430 = vadd.f32 %v6366, %v3259
    %v6431 = vadd.f32 %v6367, %v3259
    %v6432 = vadd.f32 %v6368, %v3259
    %v6433 = vadd.f32 %v6369, %v3259
    %v6434 = vadd.f32 %v6370, %v3259
    %v6435 = vadd.f32 %v6371, %v3259
    %v6436 = vadd.f32 %v6372, %v3259
    %v6437 = vadd.f32 %v6373, %v3259
    %v6438 = vadd.f32 %v6374, %v3259
    %v6439 = vadd.f32 %v6375, %v3259
    %v6440 = vadd.f32 %v6376, %v3259
    %v6441 = vadd.f32 %v6377, %v3259
    %v6442 = vadd.f32 %v6378, %v3259
    %v6443 = vadd.f32 %v6379, %v3259
    %v6444 = vadd.f32 %v6380, %v3259
    %v6445 = vadd.f32 %v6381, %v3259
    %v6446 = vadd.f32 %v6382, %v3259
    %v6447 = vadd.f32 %v6383, %v3259
    %v6448 = vadd.f32 %v6384, %v3259
    %v6449 = vadd.f32 %v6385, %v3259
    %v6450 = vadd.f32 %v6386, %v3259
    %v6451 = vadd.f32 %v6387, %v3259
    %v6452 = vadd.f32 %v6388, %v3259
    %v6453 = vadd.f32 %v6389, %v3259
    %v6454 = vadd.f32 %v6390, %v3259
    %v6455 = vadd.f32 %v6391, %v3259
    %v6456 = vadd.f32 %v6392, %v3259
    %v6457 = vadd.f32 %v6393, %v3259
    %v6458 = vadd.f32 %v6394, %v3259
    %v6459 = vadd.f32 %v6395, %v3259
    %v6460 = vadd.f32 %v6396, %v3259
    %v6461 = vadd.f32 %v6397, %v3259
    %v6462 = vadd.f32 %v6398, %v3259
    %v6463 = vadd.f32 %v6399, %v3259
    %v6464 = vadd.f32 %v6400, %v3259
    %v6465 = vadd.f32 %v6401, %v3259
    %v6466 = vadd.f32 %v6402, %v3259
    %v6467 = vadd.f32 %v6403, %v3259
    %v6468 = vadd.f32 %v6404, %v3259
    %v6469 = vadd.f32 %v6405, %v3259
    %v6470 = vadd.f32 %v6406, %v3259
    %v6471 = vadd.f32 %v6407, %v3259
    %v6472 = vadd.f32 %v6408, %v3259
    %v6473 = vadd.f32 %v6409, %v3259
    %v6474 = vadd.f32 %v6410, %v3259
    %s6475 = scalar_lea.vmem [#allocation2], 16
    %6476 = vst.msk [vmem:[%s6475] sm:$0xff] %vm164, %v6411
    %6477 = vst.msk [vmem:[%s6475 + $0x8] sm:$0xff] %vm164, %v6412
    %6478 = vst.msk [vmem:[%s6475 + $0x20] sm:$0xff] %vm164, %v6413
    %6479 = vst.msk [vmem:[%s6475 + $0x28] sm:$0xff] %vm164, %v6414
    %6480 = vst.msk [vmem:[%s6475 + $0x40] sm:$0xff] %vm164, %v6415
    %6481 = vst.msk [vmem:[%s6475 + $0x48] sm:$0xff] %vm164, %v6416
    %6482 = vst.msk [vmem:[%s6475 + $0x60] sm:$0xff] %vm164, %v6417
    %6483 = vst.msk [vmem:[%s6475 + $0x68] sm:$0xff] %vm164, %v6418
    %6484 = vst.msk [vmem:[%s6475 + $0x80] sm:$0xff] %vm164, %v6419
    %6485 = vst.msk [vmem:[%s6475 + $0x88] sm:$0xff] %vm164, %v6420
    %6486 = vst.msk [vmem:[%s6475 + $0xa0] sm:$0xff] %vm164, %v6421
    %6487 = vst.msk [vmem:[%s6475 + $0xa8] sm:$0xff] %vm164, %v6422
    %6488 = vst.msk [vmem:[%s6475 + $0xc0] sm:$0xff] %vm164, %v6423
    %6489 = vst.msk [vmem:[%s6475 + $0xc8] sm:$0xff] %vm164, %v6424
    %6490 = vst.msk [vmem:[%s6475 + $0xe0] sm:$0xff] %vm164, %v6425
    %6491 = vst.msk [vmem:[%s6475 + $0xe8] sm:$0xff] %vm164, %v6426
    %6492 = vst.msk [vmem:[%s6475 + $0x100] sm:$0xff] %vm164, %v6427
    %6493 = vst.msk [vmem:[%s6475 + $0x108] sm:$0xff] %vm164, %v6428
    %6494 = vst.msk [vmem:[%s6475 + $0x120] sm:$0xff] %vm164, %v6429
    %6495 = vst.msk [vmem:[%s6475 + $0x128] sm:$0xff] %vm164, %v6430
    %6496 = vst.msk [vmem:[%s6475 + $0x140] sm:$0xff] %vm164, %v6431
    %6497 = vst.msk [vmem:[%s6475 + $0x148] sm:$0xff] %vm164, %v6432
    %6498 = vst.msk [vmem:[%s6475 + $0x160] sm:$0xff] %vm164, %v6433
    %6499 = vst.msk [vmem:[%s6475 + $0x168] sm:$0xff] %vm164, %v6434
    %6500 = vst.msk [vmem:[%s6475 + $0x180] sm:$0xff] %vm164, %v6435
    %6501 = vst.msk [vmem:[%s6475 + $0x188] sm:$0xff] %vm164, %v6436
    %6502 = vst.msk [vmem:[%s6475 + $0x1a0] sm:$0xff] %vm164, %v6437
    %6503 = vst.msk [vmem:[%s6475 + $0x1a8] sm:$0xff] %vm164, %v6438
    %6504 = vst.msk [vmem:[%s6475 + $0x1c0] sm:$0xff] %vm164, %v6439
    %6505 = vst.msk [vmem:[%s6475 + $0x1c8] sm:$0xff] %vm164, %v6440
    %6506 = vst.msk [vmem:[%s6475 + $0x1e0] sm:$0xff] %vm164, %v6441
    %6507 = vst.msk [vmem:[%s6475 + $0x1e8] sm:$0xff] %vm164, %v6442
    %6508 = vst.msk [vmem:[%s6475 + $0x200] sm:$0xff] %vm164, %v6443
    %6509 = vst.msk [vmem:[%s6475 + $0x208] sm:$0xff] %vm164, %v6444
    %6510 = vst.msk [vmem:[%s6475 + $0x220] sm:$0xff] %vm164, %v6445
    %6511 = vst.msk [vmem:[%s6475 + $0x228] sm:$0xff] %vm164, %v6446
    %6512 = vst.msk [vmem:[%s6475 + $0x240] sm:$0xff] %vm164, %v6447
    %6513 = vst.msk [vmem:[%s6475 + $0x248] sm:$0xff] %vm164, %v6448
    %6514 = vst.msk [vmem:[%s6475 + $0x260] sm:$0xff] %vm164, %v6449
    %6515 = vst.msk [vmem:[%s6475 + $0x268] sm:$0xff] %vm164, %v6450
    %6516 = vst.msk [vmem:[%s6475 + $0x280] sm:$0xff] %vm164, %v6451
    %6517 = vst.msk [vmem:[%s6475 + $0x288] sm:$0xff] %vm164, %v6452
    %6518 = vst.msk [vmem:[%s6475 + $0x2a0] sm:$0xff] %vm164, %v6453
    %6519 = vst.msk [vmem:[%s6475 + $0x2a8] sm:$0xff] %vm164, %v6454
    %6520 = vst.msk [vmem:[%s6475 + $0x2c0] sm:$0xff] %vm164, %v6455
    %6521 = vst.msk [vmem:[%s6475 + $0x2c8] sm:$0xff] %vm164, %v6456
    %6522 = vst.msk [vmem:[%s6475 + $0x2e0] sm:$0xff] %vm164, %v6457
    %6523 = vst.msk [vmem:[%s6475 + $0x2e8] sm:$0xff] %vm164, %v6458
    %6524 = vst.msk [vmem:[%s6475 + $0x300] sm:$0xff] %vm164, %v6459
    %6525 = vst.msk [vmem:[%s6475 + $0x308] sm:$0xff] %vm164, %v6460
    %6526 = vst.msk [vmem:[%s6475 + $0x320] sm:$0xff] %vm164, %v6461
    %6527 = vst.msk [vmem:[%s6475 + $0x328] sm:$0xff] %vm164, %v6462
    %6528 = vst.msk [vmem:[%s6475 + $0x340] sm:$0xff] %vm164, %v6463
    %6529 = vst.msk [vmem:[%s6475 + $0x348] sm:$0xff] %vm164, %v6464
    %6530 = vst.msk [vmem:[%s6475 + $0x360] sm:$0xff] %vm164, %v6465
    %6531 = vst.msk [vmem:[%s6475 + $0x368] sm:$0xff] %vm164, %v6466
    %6532 = vst.msk [vmem:[%s6475 + $0x380] sm:$0xff] %vm164, %v6467
    %6533 = vst.msk [vmem:[%s6475 + $0x388] sm:$0xff] %vm164, %v6468
    %6534 = vst.msk [vmem:[%s6475 + $0x3a0] sm:$0xff] %vm164, %v6469
    %6535 = vst.msk [vmem:[%s6475 + $0x3a8] sm:$0xff] %vm164, %v6470
    %6536 = vst.msk [vmem:[%s6475 + $0x3c0] sm:$0xff] %vm164, %v6471
    %6537 = vst.msk [vmem:[%s6475 + $0x3c8] sm:$0xff] %vm164, %v6472
    %6538 = vst.msk [vmem:[%s6475 + $0x3e0] sm:$0xff] %vm164, %v6473
    %6539 = vst.msk [vmem:[%s6475 + $0x3e8] sm:$0xff] %vm164, %v6474
    // Predicated region
    $region26: #{tpu_custom_call.1} parent=1 // pred_check
      _
    $region27: #{tpu_custom_call.1} parent=1 // pred_check_branch
      %6541 = sbr.rel (0) target = $region29
    $region28: #{tpu_custom_call.1} parent=1 // pred_region
      %6543 = vsyncadd [#allocation3], 0
      %s6544 = sshll.u32 [#allocation2], 4
      %s6545 = int_to_ptr.vmem [resolvable:$true] %s6544
      %s6546 = sshll.u32 %s6, 4
      %s6547 = int_to_ptr.hbm [resolvable:$true] %s6546
      %6552 = dma.vmem_to_hbm [thread:$0]  %s6545, 16384, %s6547, [#allocation3], 128, 128, 8
    $region29: #{tpu_custom_call.1} parent=1 // pred_fallthru
      _
    // Predicated region
    $region30: #{tpu_custom_call.1} parent=1 // pred_check
      _
    $region31: #{tpu_custom_call.1} parent=1 // pred_check_branch
      %6554 = sbr.rel (0) target = $region33
    $region32: #{tpu_custom_call.1} parent=1 // pred_region
      %6556 = dma.done [#allocation3], 16384
    $region33: #{tpu_custom_call.1} parent=1 // pred_fallthru
      _
    %6557 = vsyncpa [#allocation3], 1

</llo_original>
